<compile_context>
chip_gen: v7x
topology: tpu7x:2x2x1
jax: 0.10.0
libtpu: 0.0.40
codegen_flags: <defaults>
</compile_context>

<pallas_src>
import functools

import jax
import jax.numpy as jnp
from jax.experimental import pallas as pl
from jax.experimental.pallas import tpu as pltpu


def _layer_norm(z, gamma, beta, eps=1e-5):
    mu = jnp.mean(z, axis=-1, keepdims=True)
    var = jnp.mean((z - mu) * (z - mu), axis=-1, keepdims=True)
    return (z - mu) * jax.lax.rsqrt(var + eps) * gamma + beta


def _transformer_block_kernel(
    x_ref,        # (BBLK, T, K) activations (input dtype)
    *refs,        # weight/bias refs (layout depends on `fused`) + output ref last
    heads: int, k: int, t: int, bblk: int,
    ff: bool, residual: bool, norm: bool, masked: bool, fused: bool,
):
    o_ref = refs[-1]
    wrefs = refs[:-1]
    if fused:
        (wqkv_ref, wu_ref, bu_ref, g1_ref, be1_ref, g2_ref, be2_ref,
         w1_ref, bf1_ref, w2_ref, bf2_ref) = wrefs
    else:
        (wq_ref, wk_ref, wv_ref, wu_ref, bu_ref, g1_ref, be1_ref, g2_ref,
         be2_ref, w1_ref, bf1_ref, w2_ref, bf2_ref) = wrefs

    n = bblk * t
    x_in = x_ref[...]                                   # (BBLK, T, K)
    x_lo = x_in.reshape(n, k).astype(jnp.bfloat16)      # token-major (MXU M dim)
    # f32 token copy is only needed for the residual add (fewer live vregs).
    x_f32 = x_in.reshape(n, k).astype(jnp.float32) if residual else None

    # Hoisted causal mask: built once, reused by every head.
    if masked:
        row = jax.lax.broadcasted_iota(jnp.int32, (bblk, t, t), 1)
        col = jax.lax.broadcasted_iota(jnp.int32, (bblk, t, t), 2)
        causal = col > row

    def head_attention(qh, kh, vh):
        # qh/kh/vh: (BBLK, T, K) bf16; 1/sqrt(k) already folded into Q weights.
        logits = jax.lax.dot_general(
            qh, kh, (((2,), (2,)), ((0,), (0,))),
            preferred_element_type=jnp.float32)          # (BBLK, T, T) f32
        if masked:
            # -1e30 (not -inf): after row-max subtraction exp underflows to 0
            # exactly, so a fully-masked row can never turn into NaN.
            logits = jnp.where(causal, jnp.float32(-1e30), logits)
        logits = logits - jnp.max(logits, axis=-1, keepdims=True)
        p = jnp.exp(logits)
        p = p * pl.reciprocal(jnp.sum(p, axis=-1, keepdims=True), approx=True)
        return jax.lax.dot_general(
            p.astype(jnp.bfloat16), vh, (((2,), (1,)), ((0,), (0,))),
            preferred_element_type=jnp.float32)          # (BBLK, T, K) f32

    hk = heads * k
    if fused:
        # One wide MXU matmul for Q/K/V across all heads; head slices land on
        # 128-aligned lane offsets -> free.
        qkv = jnp.dot(x_lo, wqkv_ref[...],
                      preferred_element_type=jnp.float32)          # (n, 3*H*K)
        heads_out = []
        for h in range(heads):
            qh = qkv[:, h * k:(h + 1) * k]
            kh = qkv[:, hk + h * k:hk + (h + 1) * k]
            vh = qkv[:, 2 * hk + h * k:2 * hk + (h + 1) * k]
            qh = qh.astype(jnp.bfloat16).reshape(bblk, t, k)
            kh = kh.astype(jnp.bfloat16).reshape(bblk, t, k)
            vh = vh.astype(jnp.bfloat16).reshape(bblk, t, k)
            ho = head_attention(qh, kh, vh)
            heads_out.append(ho.reshape(n, k).astype(jnp.bfloat16))
        cat = heads_out[0] if heads == 1 else jnp.concatenate(heads_out, axis=-1)
        attn = jnp.dot(cat, wu_ref[...], preferred_element_type=jnp.float32)
    else:
        # K not a multiple of 128: per-head weights on a leading head axis
        # (no unaligned lane slicing); unify projection accumulated per head.
        attn = jnp.zeros((n, k), jnp.float32)
        for h in range(heads):
            qh = jnp.dot(x_lo, wq_ref[h], preferred_element_type=jnp.float32)
            kh = jnp.dot(x_lo, wk_ref[h], preferred_element_type=jnp.float32)
            vh = jnp.dot(x_lo, wv_ref[h], preferred_element_type=jnp.float32)
            qh = qh.astype(jnp.bfloat16).reshape(bblk, t, k)
            kh = kh.astype(jnp.bfloat16).reshape(bblk, t, k)
            vh = vh.astype(jnp.bfloat16).reshape(bblk, t, k)
            ho = head_attention(qh, kh, vh)
            attn = attn + jnp.dot(ho.reshape(n, k).astype(jnp.bfloat16),
                                  wu_ref[h], preferred_element_type=jnp.float32)

    y = attn + bu_ref[...]
    if residual:
        y = x_f32 + y
    if norm:
        y = _layer_norm(y, g1_ref[...], be1_ref[...])
    if ff:
        h1 = jnp.dot(y.astype(jnp.bfloat16), w1_ref[...],
                     preferred_element_type=jnp.float32) + bf1_ref[...]
        h1 = jnp.maximum(h1, 0.0)
        h2 = jnp.dot(h1.astype(jnp.bfloat16), w2_ref[...],
                     preferred_element_type=jnp.float32) + bf2_ref[...]
        y = y + h2 if residual else h2
    if norm:
        y = _layer_norm(y, g2_ref[...], be2_ref[...])

    o_ref[...] = y.reshape(bblk, t, k).astype(o_ref.dtype)


def prepare_params(params, *, heads, k, compute_dtype=jnp.bfloat16):
    """Pre-transpose / pre-cast PyTorch-layout weights into kernel layout once,
    outside the kernel (no per-step transposes); folds 1/sqrt(k) into Wq."""
    h = heads
    fused = (k % 128 == 0)
    scale = jnp.float32(1.0 / (k ** 0.5))          # folds the two 1/k**0.25 divides
    wq_t = params["wq"].T.astype(jnp.float32) * scale      # (K, H*K), pre-scaled
    wk_t = params["wk"].T.astype(jnp.float32)
    wv_t = params["wv"].T.astype(jnp.float32)
    f32 = lambda a: a.astype(jnp.float32)
    common = (f32(params["bu"]), f32(params["g1"]), f32(params["be1"]),
              f32(params["g2"]), f32(params["be2"]),
              params["w1"].T.astype(compute_dtype), f32(params["bf1"]),
              params["w2"].T.astype(compute_dtype), f32(params["bf2"]))
    if fused:
        wqkv = jnp.concatenate([wq_t, wk_t, wv_t], axis=1).astype(compute_dtype)
        wu = params["wu"].T.astype(compute_dtype)           # (H*K, K)
        return (wqkv, wu) + common
    per_head = lambda w_t: jnp.transpose(
        w_t.reshape(k, h, k), (1, 0, 2)).astype(compute_dtype)   # (H, K_in, K_out)
    wu = params["wu"].T.reshape(h, k, k).astype(compute_dtype)   # (H, K_in, K_out)
    return (per_head(wq_t), per_head(wk_t), per_head(wv_t), wu) + common


def _chip_info():
    """(physical VMEM bytes, #TensorCores); conservative defaults if unknown."""
    vmem = 64 * 1024 * 1024
    cores = 1
    try:
        info = pltpu.get_tpu_info()
        vmem = int(getattr(info, "vmem_capacity_bytes", vmem))
        for attr in ("num_tensorcores", "tensorcores_per_chip", "num_cores",
                     "cores_per_chip"):
            v = getattr(info, attr, None)
            try:
                v = int(v)
            except (TypeError, ValueError):
                continue
            if v > 0:
                cores = v
                break
    except Exception:
        pass
    return vmem, cores


def _choose_batch_block(b, t, *, target_tokens, min_steps):
    """Batch rows per grid step: fill the MXU M dim, but keep >= min_steps grid
    steps only when requested (>=2 TensorCores)."""
    cap = max(1, target_tokens // max(t, 1))
    divisors = [d for d in range(1, b + 1) if b % d == 0]
    good = [d for d in divisors if d <= cap and (b // d) >= min_steps]
    if not good:
        good = [d for d in divisors if d <= cap] or [1]
    return max(good)


def _vmem_limit_bytes(vmem_physical, *, bblk, t, k, heads, weight_args,
                      x_itemsize, ff):
    n = bblk * t
    act_block = bblk * t * k * x_itemsize
    need = 2 * 2 * act_block                      # double-buffered in + out blocks
    need += sum(int(w.size) * w.dtype.itemsize for w in weight_args)
    # Rough f32 live intermediates: qkv, logits/probs, head outs, ff hidden.
    need += 4 * (3 * n * heads * k + 2 * bblk * t * t + n * heads * k
                 + (4 * n * k if ff else 0))
    need += 4 << 20                               # compiler internal-scratch margin
    cap = int(0.75 * vmem_physical)               # ~48 MiB on v7x, ~96 MiB on v5e/v6e
    return max(min(2 * need, cap), min(32 << 20, cap))


def transformer_block(x, params, *, heads, k, ff=True, residual=False,
                      norm=False, masked=False, prepared=None):
    b, t, k_in = x.shape
    assert k_in == k
    fused = (k % 128 == 0)

    weight_args = prepared if prepared is not None else prepare_params(
        params, heads=heads, k=k)

    vmem_physical, num_tc = _chip_info()
    # 128-MiB-VMEM chips (v5e/v6e) can take much larger token blocks; only force
    # >=2 grid steps when there are >=2 TensorCores to shard them onto (v7x).
    target_tokens = 1024 if vmem_physical >= (96 << 20) else 256
    min_steps = 2 if (num_tc >= 2 and b >= 2) else 1
    bblk = _choose_batch_block(b, t, target_tokens=target_tokens,
                               min_steps=min_steps)
    grid = (b // bblk,)

    kernel = functools.partial(
        _transformer_block_kernel,
        heads=heads, k=k, t=t, bblk=bblk,
        ff=ff, residual=residual, norm=norm, masked=masked, fused=fused)

    vmem_limit = _vmem_limit_bytes(
        vmem_physical, bblk=bblk, t=t, k=k, heads=heads,
        weight_args=weight_args, x_itemsize=x.dtype.itemsize, ff=ff)

    # Advisory cost for XLA scheduling around the custom call.
    hk = heads * k
    flops = 2 * b * t * k * 3 * hk + 4 * b * heads * t * t * k + 2 * b * t * hk * k
    if ff:
        flops += 16 * b * t * k * k
    transcendentals = b * heads * t * t + (4 * b * t if norm else 0)
    bytes_accessed = (2 * b * t * k * x.dtype.itemsize
                      + sum(int(w.size) * w.dtype.itemsize for w in weight_args))
    cost = pl.CostEstimate(flops=int(flops), transcendentals=int(transcendentals),
                           bytes_accessed=int(bytes_accessed))

    def build(weight_spec_fn):
        in_specs = [pl.BlockSpec((bblk, t, k), lambda i: (i, 0, 0))]
        in_specs += [weight_spec_fn(w) for w in weight_args]
        return pl.pallas_call(
            kernel,
            out_shape=jax.ShapeDtypeStruct((b, t, k), x.dtype),
            grid=grid,
            in_specs=in_specs,
            out_specs=pl.BlockSpec((bblk, t, k), lambda i: (i, 0, 0)),
            compiler_params=pltpu.CompilerParams(
                dimension_semantics=("parallel",),
                vmem_limit_bytes=int(vmem_limit)),
            cost_estimate=cost)

    def resident_vmem_spec(w):
        # Grid-invariant weights: whole array resident in VMEM, single buffer
        # (no wasted double-buffering for operands that never change block).
        return pl.BlockSpec(memory_space=pltpu.MemorySpace.VMEM)

    def blocked_const_spec(w):
        nd = w.ndim
        return pl.BlockSpec(w.shape, lambda i, _nd=nd: (0,) * _nd)

    try:
        return build(resident_vmem_spec)(x, *weight_args)
    except Exception:
        # Fallback: full-shape block with a constant index map (proven path).
        return build(blocked_const_spec)(x, *weight_args)


def _reference(x, params, *, heads, k, ff, residual, norm, masked):
    """Pure-JAX f32 reference mirroring the PyTorch forward exactly."""
    b, t, _ = x.shape
    h = heads

    def lin(z, w, bias=None):
        y = jnp.einsum("btk,ok->bto", z, w)
        return y if bias is None else y + bias[0]

    q = lin(x, params["wq"]).reshape(b, t, h, k)
    kk = lin(x, params["wk"]).reshape(b, t, h, k)
    v = lin(x, params["wv"]).reshape(b, t, h, k)
    q = jnp.transpose(q, (0, 2, 1, 3)).reshape(b * h, t, k) / k ** 0.25
    kk = jnp.transpose(kk, (0, 2, 1, 3)).reshape(b * h, t, k) / k ** 0.25
    v = jnp.transpose(v, (0, 2, 1, 3)).reshape(b * h, t, k)
    dot = jnp.einsum("btk,bsk->bts", q, kk)
    if masked:
        row = jnp.arange(t)[:, None]
        col = jnp.arange(t)[None, :]
        dot = jnp.where(col > row, -jnp.inf, dot)
    dot = jax.nn.softmax(dot, axis=2)
    out = jnp.einsum("bts,bsk->btk", dot, v).reshape(b, h, t, k)
    out = jnp.transpose(out, (0, 2, 1, 3)).reshape(b, t, h * k)
    attn = jnp.einsum("bto,ko->btk", out, params["wu"]) + params["bu"][0]

    y = x + attn if residual else attn

    def ln(z, g, be):
        mu = jnp.mean(z, -1, keepdims=True)
        var = jnp.mean((z - mu) ** 2, -1, keepdims=True)
        return (z - mu) * jax.lax.rsqrt(var + 1e-5) * g[0] + be[0]

    if norm:
        y = ln(y, params["g1"], params["be1"])
    if ff:
        h1 = jax.nn.relu(lin(y, params["w1"], params["bf1"]))
        h2 = lin(h1, params["w2"], params["bf2"])
        y = y + h2 if residual else h2
    if norm:
        y = ln(y, params["g2"], params["be2"])
    return y


if __name__ == "__main__":
    def make_params(key, k, h):
        ks = jax.random.split(key, 9)
        s = 0.1
        return {
            "wq": s * jax.random.normal(ks[0], (h * k, k), jnp.float32),
            "wk": s * jax.random.normal(ks[1], (h * k, k), jnp.float32),
            "wv": s * jax.random.normal(ks[2], (h * k, k), jnp.float32),
            "wu": s * jax.random.normal(ks[3], (k, h * k), jnp.float32),
            "bu": s * jax.random.normal(ks[4], (1, k), jnp.float32),
            "g1": jnp.ones((1, k), jnp.float32),
            "be1": jnp.zeros((1, k), jnp.float32),
            "g2": jnp.ones((1, k), jnp.float32),
            "be2": jnp.zeros((1, k), jnp.float32),
            "w1": s * jax.random.normal(ks[5], (4 * k, k), jnp.float32),
            "bf1": s * jax.random.normal(ks[6], (1, 4 * k), jnp.float32),
            "w2": s * jax.random.normal(ks[7], (k, 4 * k), jnp.float32),
            "bf2": s * jax.random.normal(ks[8], (1, k), jnp.float32),
        }

    key = jax.random.PRNGKey(0)
    kp1, kx1, kp2, kx2 = jax.random.split(key, 4)

    # Config 1: module defaults at toy size (K < 128 -> per-head weight path).
    B, T, K, H = 2, 8, 32, 2
    params = make_params(kp1, K, H)
    x = jax.random.normal(kx1, (B, T, K), jnp.float32)
    out = transformer_block(x, params, heads=H, k=K, ff=True,
                            residual=False, norm=False, masked=False)
    out = jax.block_until_ready(out)
    ref = _reference(x, params, heads=H, k=K, ff=True,
                     residual=False, norm=False, masked=False)
    assert out.shape == (B, T, K)
    # bf16 matmul operands (f32 accumulation) -> looser tolerance than pure-f32.
    assert jnp.allclose(out, ref, rtol=3e-2, atol=3e-2), "config1 mismatch"

    # Config 2: K = 128 exercises the fused wide-QKV path (lane-dense stores,
    # 128-aligned head slices) plus the masked / residual / LayerNorm branches.
    B2, T2, K2, H2 = 2, 8, 128, 2
    params2 = make_params(kp2, K2, H2)
    x2 = jax.random.normal(kx2, (B2, T2, K2), jnp.float32)
    out2 = transformer_block(x2, params2, heads=H2, k=K2, ff=True,
                             residual=True, norm=True, masked=True)
    out2 = jax.block_until_ready(out2)
    ref2 = _reference(x2, params2, heads=H2, k=K2, ff=True,
                      residual=True, norm=True, masked=True)
    assert out2.shape == (B2, T2, K2)
    assert jnp.allclose(out2, ref2, rtol=5e-2, atol=5e-2), "config2 mismatch"

    print("KERNEL_OK")
</pallas_src>

<mosaic_0001>
module attributes {stable_mosaic.version = 11 : i64} {
  func.func @_transformer_block_kernel(%arg0: i32, %arg1: memref<2x8x32xf32, #tpu.memory_space<vmem>>, %arg2: memref<2x32x32xbf16, #tpu.memory_space<vmem>>, %arg3: memref<2x32x32xbf16, #tpu.memory_space<vmem>>, %arg4: memref<2x32x32xbf16, #tpu.memory_space<vmem>>, %arg5: memref<2x32x32xbf16, #tpu.memory_space<vmem>>, %arg6: memref<1x32xf32, #tpu.memory_space<vmem>>, %arg7: memref<1x32xf32, #tpu.memory_space<vmem>>, %arg8: memref<1x32xf32, #tpu.memory_space<vmem>>, %arg9: memref<1x32xf32, #tpu.memory_space<vmem>>, %arg10: memref<1x32xf32, #tpu.memory_space<vmem>>, %arg11: memref<32x128xbf16, #tpu.memory_space<vmem>>, %arg12: memref<1x128xf32, #tpu.memory_space<vmem>>, %arg13: memref<128x32xbf16, #tpu.memory_space<vmem>>, %arg14: memref<1x32xf32, #tpu.memory_space<vmem>>, %arg15: memref<2x8x32xf32, #tpu.memory_space<vmem>>) attributes {dimension_semantics = [#tpu.dimension_semantics<parallel>], iteration_bounds = array<i64: 1>, scalar_prefetch = 0 : i64, scratch_operands = 0 : i64, tpu.core_type = #tpu.core_type<tc>, window_params = [{transform_indices = @transform_0, window_bounds = array<i64: 2, 8, 32>}, {pipeline_mode = #tpu.pipeline_mode<synchronous>, transform_indices = @transform_1, window_bounds = array<i64: 2, 32, 32>}, {pipeline_mode = #tpu.pipeline_mode<synchronous>, transform_indices = @transform_2, window_bounds = array<i64: 2, 32, 32>}, {pipeline_mode = #tpu.pipeline_mode<synchronous>, transform_indices = @transform_3, window_bounds = array<i64: 2, 32, 32>}, {pipeline_mode = #tpu.pipeline_mode<synchronous>, transform_indices = @transform_4, window_bounds = array<i64: 2, 32, 32>}, {pipeline_mode = #tpu.pipeline_mode<synchronous>, transform_indices = @transform_5, window_bounds = array<i64: 1, 32>}, {pipeline_mode = #tpu.pipeline_mode<synchronous>, transform_indices = @transform_6, window_bounds = array<i64: 1, 32>}, {pipeline_mode = #tpu.pipeline_mode<synchronous>, transform_indices = @transform_7, window_bounds = array<i64: 1, 32>}, {pipeline_mode = #tpu.pipeline_mode<synchronous>, transform_indices = @transform_8, window_bounds = array<i64: 1, 32>}, {pipeline_mode = #tpu.pipeline_mode<synchronous>, transform_indices = @transform_9, window_bounds = array<i64: 1, 32>}, {pipeline_mode = #tpu.pipeline_mode<synchronous>, transform_indices = @transform_10, window_bounds = array<i64: 32, 128>}, {pipeline_mode = #tpu.pipeline_mode<synchronous>, transform_indices = @transform_11, window_bounds = array<i64: 1, 128>}, {pipeline_mode = #tpu.pipeline_mode<synchronous>, transform_indices = @transform_12, window_bounds = array<i64: 128, 32>}, {pipeline_mode = #tpu.pipeline_mode<synchronous>, transform_indices = @transform_13, window_bounds = array<i64: 1, 32>}, {transform_indices = @transform_14, window_bounds = array<i64: 2, 8, 32>}]} {
    %c0 = arith.constant 0 : index
    %c0_0 = arith.constant 0 : index
    %c0_1 = arith.constant 0 : index
    %0 = vector.load %arg1[%c0, %c0_0, %c0_1] : memref<2x8x32xf32, #tpu.memory_space<vmem>>, vector<2x8x32xf32>
    %1 = vector.shape_cast %0 : vector<2x8x32xf32> to vector<16x32xf32>
    %2 = arith.truncf %1 : vector<16x32xf32> to vector<16x32xbf16>
    %cst = arith.constant 0.000000e+00 : f32
    %3 = vector.broadcast %cst : f32 to vector<16x32xf32>
    %c0_2 = arith.constant 0 : index
    %c0_3 = arith.constant 0 : index
    %c0_4 = arith.constant 0 : index
    %4 = vector.load %arg2[%c0_2, %c0_3, %c0_4] : memref<2x32x32xbf16, #tpu.memory_space<vmem>>, vector<1x32x32xbf16>
    %5 = vector.shape_cast %4 : vector<1x32x32xbf16> to vector<32x32xbf16>
    %cst_5 = arith.constant dense<0.000000e+00> : vector<16x32xf32>
    %6 = tpu.matmul %2, %5, %cst_5 {dimension_numbers = #tpu.dot_dimension_numbers<[1], [0], [0], [1], [0, 0, 1, 1], [], []>} : vector<16x32xbf16>, vector<32x32xbf16>, vector<16x32xf32> -> vector<16x32xf32>
    %c0_6 = arith.constant 0 : index
    %c0_7 = arith.constant 0 : index
    %c0_8 = arith.constant 0 : index
    %7 = vector.load %arg3[%c0_6, %c0_7, %c0_8] : memref<2x32x32xbf16, #tpu.memory_space<vmem>>, vector<1x32x32xbf16>
    %8 = vector.shape_cast %7 : vector<1x32x32xbf16> to vector<32x32xbf16>
    %cst_9 = arith.constant dense<0.000000e+00> : vector<16x32xf32>
    %9 = tpu.matmul %2, %8, %cst_9 {dimension_numbers = #tpu.dot_dimension_numbers<[1], [0], [0], [1], [0, 0, 1, 1], [], []>} : vector<16x32xbf16>, vector<32x32xbf16>, vector<16x32xf32> -> vector<16x32xf32>
    %c0_10 = arith.constant 0 : index
    %c0_11 = arith.constant 0 : index
    %c0_12 = arith.constant 0 : index
    %10 = vector.load %arg4[%c0_10, %c0_11, %c0_12] : memref<2x32x32xbf16, #tpu.memory_space<vmem>>, vector<1x32x32xbf16>
    %11 = vector.shape_cast %10 : vector<1x32x32xbf16> to vector<32x32xbf16>
    %cst_13 = arith.constant dense<0.000000e+00> : vector<16x32xf32>
    %12 = tpu.matmul %2, %11, %cst_13 {dimension_numbers = #tpu.dot_dimension_numbers<[1], [0], [0], [1], [0, 0, 1, 1], [], []>} : vector<16x32xbf16>, vector<32x32xbf16>, vector<16x32xf32> -> vector<16x32xf32>
    %13 = arith.truncf %6 : vector<16x32xf32> to vector<16x32xbf16>
    %14 = vector.shape_cast %13 : vector<16x32xbf16> to vector<2x8x32xbf16>
    %15 = arith.truncf %9 : vector<16x32xf32> to vector<16x32xbf16>
    %16 = vector.shape_cast %15 : vector<16x32xbf16> to vector<2x8x32xbf16>
    %17 = arith.truncf %12 : vector<16x32xf32> to vector<16x32xbf16>
    %18 = vector.shape_cast %17 : vector<16x32xbf16> to vector<2x8x32xbf16>
    %cst_14 = arith.constant dense<0.000000e+00> : vector<2x8x8xf32>
    %19 = tpu.matmul %14, %16, %cst_14 {dimension_numbers = #tpu.dot_dimension_numbers<[2], [2], [1], [1], [0, 0, 0, 1, 1, 1], [0], [0]>} : vector<2x8x32xbf16>, vector<2x8x32xbf16>, vector<2x8x8xf32> -> vector<2x8x8xf32>
    %cst_15 = arith.constant dense<0xFF800000> : vector<2x8xf32>
    %20 = vector.multi_reduction <maximumf>, %19, %cst_15 [2] : vector<2x8x8xf32> to vector<2x8xf32>
    %21 = vector.shape_cast %20 : vector<2x8xf32> to vector<2x8x1xf32>
    %22 = vector.broadcast %21 : vector<2x8x1xf32> to vector<2x8x8xf32>
    %23 = arith.subf %19, %22 : vector<2x8x8xf32>
    %24 = math.exp %23 : vector<2x8x8xf32>
    %cst_16 = arith.constant dense<0.000000e+00> : vector<2x8xf32>
    %25 = vector.multi_reduction <add>, %24, %cst_16 [2] : vector<2x8x8xf32> to vector<2x8xf32>
    %26 = vector.shape_cast %25 : vector<2x8xf32> to vector<2x8x1xf32>
    %27 = tpu.reciprocal %26 {approx = true} : vector<2x8x1xf32> -> vector<2x8x1xf32>
    %28 = vector.broadcast %27 : vector<2x8x1xf32> to vector<2x8x8xf32>
    %29 = arith.mulf %24, %28 : vector<2x8x8xf32>
    %30 = arith.truncf %29 : vector<2x8x8xf32> to vector<2x8x8xbf16>
    %cst_17 = arith.constant dense<0.000000e+00> : vector<2x8x32xf32>
    %31 = tpu.matmul %30, %18, %cst_17 {dimension_numbers = #tpu.dot_dimension_numbers<[2], [1], [1], [2], [0, 0, 0, 1, 1, 2], [0], [0]>} : vector<2x8x8xbf16>, vector<2x8x32xbf16>, vector<2x8x32xf32> -> vector<2x8x32xf32>
    %32 = vector.shape_cast %31 : vector<2x8x32xf32> to vector<16x32xf32>
    %33 = arith.truncf %32 : vector<16x32xf32> to vector<16x32xbf16>
    %c0_18 = arith.constant 0 : index
    %c0_19 = arith.constant 0 : index
    %c0_20 = arith.constant 0 : index
    %34 = vector.load %arg5[%c0_18, %c0_19, %c0_20] : memref<2x32x32xbf16, #tpu.memory_space<vmem>>, vector<1x32x32xbf16>
    %35 = vector.shape_cast %34 : vector<1x32x32xbf16> to vector<32x32xbf16>
    %cst_21 = arith.constant dense<0.000000e+00> : vector<16x32xf32>
    %36 = tpu.matmul %33, %35, %cst_21 {dimension_numbers = #tpu.dot_dimension_numbers<[1], [0], [0], [1], [0, 0, 1, 1], [], []>} : vector<16x32xbf16>, vector<32x32xbf16>, vector<16x32xf32> -> vector<16x32xf32>
    %37 = arith.addf %3, %36 : vector<16x32xf32>
    %c1 = arith.constant 1 : index
    %c0_22 = arith.constant 0 : index
    %c0_23 = arith.constant 0 : index
    %38 = vector.load %arg2[%c1, %c0_22, %c0_23] : memref<2x32x32xbf16, #tpu.memory_space<vmem>>, vector<1x32x32xbf16>
    %39 = vector.shape_cast %38 : vector<1x32x32xbf16> to vector<32x32xbf16>
    %cst_24 = arith.constant dense<0.000000e+00> : vector<16x32xf32>
    %40 = tpu.matmul %2, %39, %cst_24 {dimension_numbers = #tpu.dot_dimension_numbers<[1], [0], [0], [1], [0, 0, 1, 1], [], []>} : vector<16x32xbf16>, vector<32x32xbf16>, vector<16x32xf32> -> vector<16x32xf32>
    %c1_25 = arith.constant 1 : index
    %c0_26 = arith.constant 0 : index
    %c0_27 = arith.constant 0 : index
    %41 = vector.load %arg3[%c1_25, %c0_26, %c0_27] : memref<2x32x32xbf16, #tpu.memory_space<vmem>>, vector<1x32x32xbf16>
    %42 = vector.shape_cast %41 : vector<1x32x32xbf16> to vector<32x32xbf16>
    %cst_28 = arith.constant dense<0.000000e+00> : vector<16x32xf32>
    %43 = tpu.matmul %2, %42, %cst_28 {dimension_numbers = #tpu.dot_dimension_numbers<[1], [0], [0], [1], [0, 0, 1, 1], [], []>} : vector<16x32xbf16>, vector<32x32xbf16>, vector<16x32xf32> -> vector<16x32xf32>
    %c1_29 = arith.constant 1 : index
    %c0_30 = arith.constant 0 : index
    %c0_31 = arith.constant 0 : index
    %44 = vector.load %arg4[%c1_29, %c0_30, %c0_31] : memref<2x32x32xbf16, #tpu.memory_space<vmem>>, vector<1x32x32xbf16>
    %45 = vector.shape_cast %44 : vector<1x32x32xbf16> to vector<32x32xbf16>
    %cst_32 = arith.constant dense<0.000000e+00> : vector<16x32xf32>
    %46 = tpu.matmul %2, %45, %cst_32 {dimension_numbers = #tpu.dot_dimension_numbers<[1], [0], [0], [1], [0, 0, 1, 1], [], []>} : vector<16x32xbf16>, vector<32x32xbf16>, vector<16x32xf32> -> vector<16x32xf32>
    %47 = arith.truncf %40 : vector<16x32xf32> to vector<16x32xbf16>
    %48 = vector.shape_cast %47 : vector<16x32xbf16> to vector<2x8x32xbf16>
    %49 = arith.truncf %43 : vector<16x32xf32> to vector<16x32xbf16>
    %50 = vector.shape_cast %49 : vector<16x32xbf16> to vector<2x8x32xbf16>
    %51 = arith.truncf %46 : vector<16x32xf32> to vector<16x32xbf16>
    %52 = vector.shape_cast %51 : vector<16x32xbf16> to vector<2x8x32xbf16>
    %cst_33 = arith.constant dense<0.000000e+00> : vector<2x8x8xf32>
    %53 = tpu.matmul %48, %50, %cst_33 {dimension_numbers = #tpu.dot_dimension_numbers<[2], [2], [1], [1], [0, 0, 0, 1, 1, 1], [0], [0]>} : vector<2x8x32xbf16>, vector<2x8x32xbf16>, vector<2x8x8xf32> -> vector<2x8x8xf32>
    %cst_34 = arith.constant dense<0xFF800000> : vector<2x8xf32>
    %54 = vector.multi_reduction <maximumf>, %53, %cst_34 [2] : vector<2x8x8xf32> to vector<2x8xf32>
    %55 = vector.shape_cast %54 : vector<2x8xf32> to vector<2x8x1xf32>
    %56 = vector.broadcast %55 : vector<2x8x1xf32> to vector<2x8x8xf32>
    %57 = arith.subf %53, %56 : vector<2x8x8xf32>
    %58 = math.exp %57 : vector<2x8x8xf32>
    %cst_35 = arith.constant dense<0.000000e+00> : vector<2x8xf32>
    %59 = vector.multi_reduction <add>, %58, %cst_35 [2] : vector<2x8x8xf32> to vector<2x8xf32>
    %60 = vector.shape_cast %59 : vector<2x8xf32> to vector<2x8x1xf32>
    %61 = tpu.reciprocal %60 {approx = true} : vector<2x8x1xf32> -> vector<2x8x1xf32>
    %62 = vector.broadcast %61 : vector<2x8x1xf32> to vector<2x8x8xf32>
    %63 = arith.mulf %58, %62 : vector<2x8x8xf32>
    %64 = arith.truncf %63 : vector<2x8x8xf32> to vector<2x8x8xbf16>
    %cst_36 = arith.constant dense<0.000000e+00> : vector<2x8x32xf32>
    %65 = tpu.matmul %64, %52, %cst_36 {dimension_numbers = #tpu.dot_dimension_numbers<[2], [1], [1], [2], [0, 0, 0, 1, 1, 2], [0], [0]>} : vector<2x8x8xbf16>, vector<2x8x32xbf16>, vector<2x8x32xf32> -> vector<2x8x32xf32>
    %66 = vector.shape_cast %65 : vector<2x8x32xf32> to vector<16x32xf32>
    %67 = arith.truncf %66 : vector<16x32xf32> to vector<16x32xbf16>
    %c1_37 = arith.constant 1 : index
    %c0_38 = arith.constant 0 : index
    %c0_39 = arith.constant 0 : index
    %68 = vector.load %arg5[%c1_37, %c0_38, %c0_39] : memref<2x32x32xbf16, #tpu.memory_space<vmem>>, vector<1x32x32xbf16>
    %69 = vector.shape_cast %68 : vector<1x32x32xbf16> to vector<32x32xbf16>
    %cst_40 = arith.constant dense<0.000000e+00> : vector<16x32xf32>
    %70 = tpu.matmul %67, %69, %cst_40 {dimension_numbers = #tpu.dot_dimension_numbers<[1], [0], [0], [1], [0, 0, 1, 1], [], []>} : vector<16x32xbf16>, vector<32x32xbf16>, vector<16x32xf32> -> vector<16x32xf32>
    %71 = arith.addf %37, %70 : vector<16x32xf32>
    %c0_41 = arith.constant 0 : index
    %c0_42 = arith.constant 0 : index
    %72 = vector.load %arg6[%c0_41, %c0_42] : memref<1x32xf32, #tpu.memory_space<vmem>>, vector<1x32xf32>
    %73 = vector.broadcast %72 : vector<1x32xf32> to vector<16x32xf32>
    %74 = arith.addf %71, %73 : vector<16x32xf32>
    %75 = arith.truncf %74 : vector<16x32xf32> to vector<16x32xbf16>
    %c0_43 = arith.constant 0 : index
    %c0_44 = arith.constant 0 : index
    %76 = vector.load %arg11[%c0_43, %c0_44] : memref<32x128xbf16, #tpu.memory_space<vmem>>, vector<32x128xbf16>
    %cst_45 = arith.constant dense<0.000000e+00> : vector<16x128xf32>
    %77 = tpu.matmul %75, %76, %cst_45 {dimension_numbers = #tpu.dot_dimension_numbers<[1], [0], [0], [1], [0, 0, 1, 1], [], []>} : vector<16x32xbf16>, vector<32x128xbf16>, vector<16x128xf32> -> vector<16x128xf32>
    %c0_46 = arith.constant 0 : index
    %c0_47 = arith.constant 0 : index
    %78 = vector.load %arg12[%c0_46, %c0_47] : memref<1x128xf32, #tpu.memory_space<vmem>>, vector<1x128xf32>
    %79 = vector.broadcast %78 : vector<1x128xf32> to vector<16x128xf32>
    %80 = arith.addf %77, %79 : vector<16x128xf32>
    %cst_48 = arith.constant 0.000000e+00 : f32
    %81 = vector.broadcast %cst_48 : f32 to vector<16x128xf32>
    %82 = arith.maximumf %80, %81 : vector<16x128xf32>
    %83 = arith.truncf %82 : vector<16x128xf32> to vector<16x128xbf16>
    %c0_49 = arith.constant 0 : index
    %c0_50 = arith.constant 0 : index
    %84 = vector.load %arg13[%c0_49, %c0_50] : memref<128x32xbf16, #tpu.memory_space<vmem>>, vector<128x32xbf16>
    %cst_51 = arith.constant dense<0.000000e+00> : vector<16x32xf32>
    %85 = tpu.matmul %83, %84, %cst_51 {dimension_numbers = #tpu.dot_dimension_numbers<[1], [0], [0], [1], [0, 0, 1, 1], [], []>} : vector<16x128xbf16>, vector<128x32xbf16>, vector<16x32xf32> -> vector<16x32xf32>
    %c0_52 = arith.constant 0 : index
    %c0_53 = arith.constant 0 : index
    %86 = vector.load %arg14[%c0_52, %c0_53] : memref<1x32xf32, #tpu.memory_space<vmem>>, vector<1x32xf32>
    %87 = vector.broadcast %86 : vector<1x32xf32> to vector<16x32xf32>
    %88 = arith.addf %85, %87 : vector<16x32xf32>
    %89 = vector.shape_cast %88 : vector<16x32xf32> to vector<2x8x32xf32>
    %c0_54 = arith.constant 0 : index
    %c0_55 = arith.constant 0 : index
    %c0_56 = arith.constant 0 : index
    %90 = vector.load %arg15[%c0_54, %c0_55, %c0_56] : memref<2x8x32xf32, #tpu.memory_space<vmem>>, vector<2x8x32xf32>
    tpu.vector_store %arg15[%c0_54, %c0_55, %c0_56], %89 {strides = array<i32>} : memref<2x8x32xf32, #tpu.memory_space<vmem>>, vector<2x8x32xf32>,
    return
  }
  func.func @transform_0(%arg0: i32) -> (i32, i32, i32) {
    %c0_i32 = arith.constant 0 : i32
    %c0_i32_0 = arith.constant 0 : i32
    %c0_i32_1 = arith.constant 0 : i32
    return %arg0, %c0_i32, %c0_i32_0 : i32, i32, i32
  }
  func.func @transform_1(%arg0: i32) -> (i32, i32, i32) {
    %c0_i32 = arith.constant 0 : i32
    %c0_i32_0 = arith.constant 0 : i32
    %c0_i32_1 = arith.constant 0 : i32
    %c0_i32_2 = arith.constant 0 : i32
    return %c0_i32, %c0_i32_0, %c0_i32_1 : i32, i32, i32
  }
  func.func @transform_2(%arg0: i32) -> (i32, i32, i32) {
    %c0_i32 = arith.constant 0 : i32
    %c0_i32_0 = arith.constant 0 : i32
    %c0_i32_1 = arith.constant 0 : i32
    %c0_i32_2 = arith.constant 0 : i32
    return %c0_i32, %c0_i32_0, %c0_i32_1 : i32, i32, i32
  }
  func.func @transform_3(%arg0: i32) -> (i32, i32, i32) {
    %c0_i32 = arith.constant 0 : i32
    %c0_i32_0 = arith.constant 0 : i32
    %c0_i32_1 = arith.constant 0 : i32
    %c0_i32_2 = arith.constant 0 : i32
    return %c0_i32, %c0_i32_0, %c0_i32_1 : i32, i32, i32
  }
  func.func @transform_4(%arg0: i32) -> (i32, i32, i32) {
    %c0_i32 = arith.constant 0 : i32
    %c0_i32_0 = arith.constant 0 : i32
    %c0_i32_1 = arith.constant 0 : i32
    %c0_i32_2 = arith.constant 0 : i32
    return %c0_i32, %c0_i32_0, %c0_i32_1 : i32, i32, i32
  }
  func.func @transform_5(%arg0: i32) -> (i32, i32) {
    %c0_i32 = arith.constant 0 : i32
    %c0_i32_0 = arith.constant 0 : i32
    %c0_i32_1 = arith.constant 0 : i32
    return %c0_i32, %c0_i32_0 : i32, i32
  }
  func.func @transform_6(%arg0: i32) -> (i32, i32) {
    %c0_i32 = arith.constant 0 : i32
    %c0_i32_0 = arith.constant 0 : i32
    %c0_i32_1 = arith.constant 0 : i32
    return %c0_i32, %c0_i32_0 : i32, i32
  }
  func.func @transform_7(%arg0: i32) -> (i32, i32) {
    %c0_i32 = arith.constant 0 : i32
    %c0_i32_0 = arith.constant 0 : i32
    %c0_i32_1 = arith.constant 0 : i32
    return %c0_i32, %c0_i32_0 : i32, i32
  }
  func.func @transform_8(%arg0: i32) -> (i32, i32) {
    %c0_i32 = arith.constant 0 : i32
    %c0_i32_0 = arith.constant 0 : i32
    %c0_i32_1 = arith.constant 0 : i32
    return %c0_i32, %c0_i32_0 : i32, i32
  }
  func.func @transform_9(%arg0: i32) -> (i32, i32) {
    %c0_i32 = arith.constant 0 : i32
    %c0_i32_0 = arith.constant 0 : i32
    %c0_i32_1 = arith.constant 0 : i32
    return %c0_i32, %c0_i32_0 : i32, i32
  }
  func.func @transform_10(%arg0: i32) -> (i32, i32) {
    %c0_i32 = arith.constant 0 : i32
    %c0_i32_0 = arith.constant 0 : i32
    %c0_i32_1 = arith.constant 0 : i32
    return %c0_i32, %c0_i32_0 : i32, i32
  }
  func.func @transform_11(%arg0: i32) -> (i32, i32) {
    %c0_i32 = arith.constant 0 : i32
    %c0_i32_0 = arith.constant 0 : i32
    %c0_i32_1 = arith.constant 0 : i32
    return %c0_i32, %c0_i32_0 : i32, i32
  }
  func.func @transform_12(%arg0: i32) -> (i32, i32) {
    %c0_i32 = arith.constant 0 : i32
    %c0_i32_0 = arith.constant 0 : i32
    %c0_i32_1 = arith.constant 0 : i32
    return %c0_i32, %c0_i32_0 : i32, i32
  }
  func.func @transform_13(%arg0: i32) -> (i32, i32) {
    %c0_i32 = arith.constant 0 : i32
    %c0_i32_0 = arith.constant 0 : i32
    %c0_i32_1 = arith.constant 0 : i32
    return %c0_i32, %c0_i32_0 : i32, i32
  }
  func.func @transform_14(%arg0: i32) -> (i32, i32, i32) {
    %c0_i32 = arith.constant 0 : i32
    %c0_i32_0 = arith.constant 0 : i32
    %c0_i32_1 = arith.constant 0 : i32
    return %arg0, %c0_i32, %c0_i32_0 : i32, i32, i32
  }
}

module attributes {stable_mosaic.version = 11 : i64} {
  func.func @_transformer_block_kernel(%arg0: i32, %arg1: memref<2x8x32xf32, #tpu.memory_space<vmem>>, %arg2: memref<2x32x32xbf16, #tpu.memory_space<vmem>>, %arg3: memref<2x32x32xbf16, #tpu.memory_space<vmem>>, %arg4: memref<2x32x32xbf16, #tpu.memory_space<vmem>>, %arg5: memref<2x32x32xbf16, #tpu.memory_space<vmem>>, %arg6: memref<1x32xf32, #tpu.memory_space<vmem>>, %arg7: memref<1x32xf32, #tpu.memory_space<vmem>>, %arg8: memref<1x32xf32, #tpu.memory_space<vmem>>, %arg9: memref<1x32xf32, #tpu.memory_space<vmem>>, %arg10: memref<1x32xf32, #tpu.memory_space<vmem>>, %arg11: memref<32x128xbf16, #tpu.memory_space<vmem>>, %arg12: memref<1x128xf32, #tpu.memory_space<vmem>>, %arg13: memref<128x32xbf16, #tpu.memory_space<vmem>>, %arg14: memref<1x32xf32, #tpu.memory_space<vmem>>, %arg15: memref<2x8x32xf32, #tpu.memory_space<vmem>>) attributes {dimension_semantics = [#tpu.dimension_semantics<parallel>], iteration_bounds = array<i64: 1>, scalar_prefetch = 0 : i64, scratch_operands = 0 : i64, tpu.core_type = #tpu.core_type<tc>, window_params = [{transform_indices = @transform_0, window_bounds = array<i64: 2, 8, 32>}, {pipeline_mode = #tpu.pipeline_mode<synchronous>, transform_indices = @transform_1, window_bounds = array<i64: 2, 32, 32>}, {pipeline_mode = #tpu.pipeline_mode<synchronous>, transform_indices = @transform_2, window_bounds = array<i64: 2, 32, 32>}, {pipeline_mode = #tpu.pipeline_mode<synchronous>, transform_indices = @transform_3, window_bounds = array<i64: 2, 32, 32>}, {pipeline_mode = #tpu.pipeline_mode<synchronous>, transform_indices = @transform_4, window_bounds = array<i64: 2, 32, 32>}, {pipeline_mode = #tpu.pipeline_mode<synchronous>, transform_indices = @transform_5, window_bounds = array<i64: 1, 32>}, {pipeline_mode = #tpu.pipeline_mode<synchronous>, transform_indices = @transform_6, window_bounds = array<i64: 1, 32>}, {pipeline_mode = #tpu.pipeline_mode<synchronous>, transform_indices = @transform_7, window_bounds = array<i64: 1, 32>}, {pipeline_mode = #tpu.pipeline_mode<synchronous>, transform_indices = @transform_8, window_bounds = array<i64: 1, 32>}, {pipeline_mode = #tpu.pipeline_mode<synchronous>, transform_indices = @transform_9, window_bounds = array<i64: 1, 32>}, {pipeline_mode = #tpu.pipeline_mode<synchronous>, transform_indices = @transform_10, window_bounds = array<i64: 32, 128>}, {pipeline_mode = #tpu.pipeline_mode<synchronous>, transform_indices = @transform_11, window_bounds = array<i64: 1, 128>}, {pipeline_mode = #tpu.pipeline_mode<synchronous>, transform_indices = @transform_12, window_bounds = array<i64: 128, 32>}, {pipeline_mode = #tpu.pipeline_mode<synchronous>, transform_indices = @transform_13, window_bounds = array<i64: 1, 32>}, {transform_indices = @transform_14, window_bounds = array<i64: 2, 8, 32>}]} {
    %c0 = arith.constant 0 : index
    %c0_0 = arith.constant 0 : index
    %c0_1 = arith.constant 0 : index
    %0 = vector.load %arg1[%c0, %c0_0, %c0_1] : memref<2x8x32xf32, #tpu.memory_space<vmem>>, vector<2x8x32xf32>
    %1 = vector.shape_cast %0 : vector<2x8x32xf32> to vector<16x32xf32>
    %2 = arith.truncf %1 : vector<16x32xf32> to vector<16x32xbf16>
    %cst = arith.constant 0.000000e+00 : f32
    %3 = vector.broadcast %cst : f32 to vector<16x32xf32>
    %c0_2 = arith.constant 0 : index
    %c0_3 = arith.constant 0 : index
    %c0_4 = arith.constant 0 : index
    %4 = vector.load %arg2[%c0_2, %c0_3, %c0_4] : memref<2x32x32xbf16, #tpu.memory_space<vmem>>, vector<1x32x32xbf16>
    %5 = vector.shape_cast %4 : vector<1x32x32xbf16> to vector<32x32xbf16>
    %cst_5 = arith.constant dense<0.000000e+00> : vector<16x32xf32>
    %6 = tpu.matmul %2, %5, %cst_5 {dimension_numbers = #tpu.dot_dimension_numbers<[1], [0], [0], [1], [0, 0, 1, 1], [], []>} : vector<16x32xbf16>, vector<32x32xbf16>, vector<16x32xf32> -> vector<16x32xf32>
    %c0_6 = arith.constant 0 : index
    %c0_7 = arith.constant 0 : index
    %c0_8 = arith.constant 0 : index
    %7 = vector.load %arg3[%c0_6, %c0_7, %c0_8] : memref<2x32x32xbf16, #tpu.memory_space<vmem>>, vector<1x32x32xbf16>
    %8 = vector.shape_cast %7 : vector<1x32x32xbf16> to vector<32x32xbf16>
    %cst_9 = arith.constant dense<0.000000e+00> : vector<16x32xf32>
    %9 = tpu.matmul %2, %8, %cst_9 {dimension_numbers = #tpu.dot_dimension_numbers<[1], [0], [0], [1], [0, 0, 1, 1], [], []>} : vector<16x32xbf16>, vector<32x32xbf16>, vector<16x32xf32> -> vector<16x32xf32>
    %c0_10 = arith.constant 0 : index
    %c0_11 = arith.constant 0 : index
    %c0_12 = arith.constant 0 : index
    %10 = vector.load %arg4[%c0_10, %c0_11, %c0_12] : memref<2x32x32xbf16, #tpu.memory_space<vmem>>, vector<1x32x32xbf16>
    %11 = vector.shape_cast %10 : vector<1x32x32xbf16> to vector<32x32xbf16>
    %cst_13 = arith.constant dense<0.000000e+00> : vector<16x32xf32>
    %12 = tpu.matmul %2, %11, %cst_13 {dimension_numbers = #tpu.dot_dimension_numbers<[1], [0], [0], [1], [0, 0, 1, 1], [], []>} : vector<16x32xbf16>, vector<32x32xbf16>, vector<16x32xf32> -> vector<16x32xf32>
    %13 = arith.truncf %6 : vector<16x32xf32> to vector<16x32xbf16>
    %14 = vector.shape_cast %13 : vector<16x32xbf16> to vector<2x8x32xbf16>
    %15 = arith.truncf %9 : vector<16x32xf32> to vector<16x32xbf16>
    %16 = vector.shape_cast %15 : vector<16x32xbf16> to vector<2x8x32xbf16>
    %17 = arith.truncf %12 : vector<16x32xf32> to vector<16x32xbf16>
    %18 = vector.shape_cast %17 : vector<16x32xbf16> to vector<2x8x32xbf16>
    %cst_14 = arith.constant dense<0.000000e+00> : vector<2x8x8xf32>
    %19 = tpu.matmul %14, %16, %cst_14 {dimension_numbers = #tpu.dot_dimension_numbers<[2], [2], [1], [1], [0, 0, 0, 1, 1, 1], [0], [0]>} : vector<2x8x32xbf16>, vector<2x8x32xbf16>, vector<2x8x8xf32> -> vector<2x8x8xf32>
    %cst_15 = arith.constant dense<0xFF800000> : vector<2x8xf32>
    %20 = vector.multi_reduction <maximumf>, %19, %cst_15 [2] : vector<2x8x8xf32> to vector<2x8xf32>
    %21 = vector.shape_cast %20 : vector<2x8xf32> to vector<2x8x1xf32>
    %22 = vector.broadcast %21 : vector<2x8x1xf32> to vector<2x8x8xf32>
    %23 = arith.subf %19, %22 : vector<2x8x8xf32>
    %24 = math.exp %23 : vector<2x8x8xf32>
    %cst_16 = arith.constant dense<0.000000e+00> : vector<2x8xf32>
    %25 = vector.multi_reduction <add>, %24, %cst_16 [2] : vector<2x8x8xf32> to vector<2x8xf32>
    %26 = vector.shape_cast %25 : vector<2x8xf32> to vector<2x8x1xf32>
    %27 = tpu.reciprocal %26 {approx = true} : vector<2x8x1xf32> -> vector<2x8x1xf32>
    %28 = vector.broadcast %27 : vector<2x8x1xf32> to vector<2x8x8xf32>
    %29 = arith.mulf %24, %28 : vector<2x8x8xf32>
    %30 = arith.truncf %29 : vector<2x8x8xf32> to vector<2x8x8xbf16>
    %cst_17 = arith.constant dense<0.000000e+00> : vector<2x8x32xf32>
    %31 = tpu.matmul %30, %18, %cst_17 {dimension_numbers = #tpu.dot_dimension_numbers<[2], [1], [1], [2], [0, 0, 0, 1, 1, 2], [0], [0]>} : vector<2x8x8xbf16>, vector<2x8x32xbf16>, vector<2x8x32xf32> -> vector<2x8x32xf32>
    %32 = vector.shape_cast %31 : vector<2x8x32xf32> to vector<16x32xf32>
    %33 = arith.truncf %32 : vector<16x32xf32> to vector<16x32xbf16>
    %c0_18 = arith.constant 0 : index
    %c0_19 = arith.constant 0 : index
    %c0_20 = arith.constant 0 : index
    %34 = vector.load %arg5[%c0_18, %c0_19, %c0_20] : memref<2x32x32xbf16, #tpu.memory_space<vmem>>, vector<1x32x32xbf16>
    %35 = vector.shape_cast %34 : vector<1x32x32xbf16> to vector<32x32xbf16>
    %cst_21 = arith.constant dense<0.000000e+00> : vector<16x32xf32>
    %36 = tpu.matmul %33, %35, %cst_21 {dimension_numbers = #tpu.dot_dimension_numbers<[1], [0], [0], [1], [0, 0, 1, 1], [], []>} : vector<16x32xbf16>, vector<32x32xbf16>, vector<16x32xf32> -> vector<16x32xf32>
    %37 = arith.addf %3, %36 : vector<16x32xf32>
    %c1 = arith.constant 1 : index
    %c0_22 = arith.constant 0 : index
    %c0_23 = arith.constant 0 : index
    %38 = vector.load %arg2[%c1, %c0_22, %c0_23] : memref<2x32x32xbf16, #tpu.memory_space<vmem>>, vector<1x32x32xbf16>
    %39 = vector.shape_cast %38 : vector<1x32x32xbf16> to vector<32x32xbf16>
    %cst_24 = arith.constant dense<0.000000e+00> : vector<16x32xf32>
    %40 = tpu.matmul %2, %39, %cst_24 {dimension_numbers = #tpu.dot_dimension_numbers<[1], [0], [0], [1], [0, 0, 1, 1], [], []>} : vector<16x32xbf16>, vector<32x32xbf16>, vector<16x32xf32> -> vector<16x32xf32>
    %c1_25 = arith.constant 1 : index
    %c0_26 = arith.constant 0 : index
    %c0_27 = arith.constant 0 : index
    %41 = vector.load %arg3[%c1_25, %c0_26, %c0_27] : memref<2x32x32xbf16, #tpu.memory_space<vmem>>, vector<1x32x32xbf16>
    %42 = vector.shape_cast %41 : vector<1x32x32xbf16> to vector<32x32xbf16>
    %cst_28 = arith.constant dense<0.000000e+00> : vector<16x32xf32>
    %43 = tpu.matmul %2, %42, %cst_28 {dimension_numbers = #tpu.dot_dimension_numbers<[1], [0], [0], [1], [0, 0, 1, 1], [], []>} : vector<16x32xbf16>, vector<32x32xbf16>, vector<16x32xf32> -> vector<16x32xf32>
    %c1_29 = arith.constant 1 : index
    %c0_30 = arith.constant 0 : index
    %c0_31 = arith.constant 0 : index
    %44 = vector.load %arg4[%c1_29, %c0_30, %c0_31] : memref<2x32x32xbf16, #tpu.memory_space<vmem>>, vector<1x32x32xbf16>
    %45 = vector.shape_cast %44 : vector<1x32x32xbf16> to vector<32x32xbf16>
    %cst_32 = arith.constant dense<0.000000e+00> : vector<16x32xf32>
    %46 = tpu.matmul %2, %45, %cst_32 {dimension_numbers = #tpu.dot_dimension_numbers<[1], [0], [0], [1], [0, 0, 1, 1], [], []>} : vector<16x32xbf16>, vector<32x32xbf16>, vector<16x32xf32> -> vector<16x32xf32>
    %47 = arith.truncf %40 : vector<16x32xf32> to vector<16x32xbf16>
    %48 = vector.shape_cast %47 : vector<16x32xbf16> to vector<2x8x32xbf16>
    %49 = arith.truncf %43 : vector<16x32xf32> to vector<16x32xbf16>
    %50 = vector.shape_cast %49 : vector<16x32xbf16> to vector<2x8x32xbf16>
    %51 = arith.truncf %46 : vector<16x32xf32> to vector<16x32xbf16>
    %52 = vector.shape_cast %51 : vector<16x32xbf16> to vector<2x8x32xbf16>
    %cst_33 = arith.constant dense<0.000000e+00> : vector<2x8x8xf32>
    %53 = tpu.matmul %48, %50, %cst_33 {dimension_numbers = #tpu.dot_dimension_numbers<[2], [2], [1], [1], [0, 0, 0, 1, 1, 1], [0], [0]>} : vector<2x8x32xbf16>, vector<2x8x32xbf16>, vector<2x8x8xf32> -> vector<2x8x8xf32>
    %cst_34 = arith.constant dense<0xFF800000> : vector<2x8xf32>
    %54 = vector.multi_reduction <maximumf>, %53, %cst_34 [2] : vector<2x8x8xf32> to vector<2x8xf32>
    %55 = vector.shape_cast %54 : vector<2x8xf32> to vector<2x8x1xf32>
    %56 = vector.broadcast %55 : vector<2x8x1xf32> to vector<2x8x8xf32>
    %57 = arith.subf %53, %56 : vector<2x8x8xf32>
    %58 = math.exp %57 : vector<2x8x8xf32>
    %cst_35 = arith.constant dense<0.000000e+00> : vector<2x8xf32>
    %59 = vector.multi_reduction <add>, %58, %cst_35 [2] : vector<2x8x8xf32> to vector<2x8xf32>
    %60 = vector.shape_cast %59 : vector<2x8xf32> to vector<2x8x1xf32>
    %61 = tpu.reciprocal %60 {approx = true} : vector<2x8x1xf32> -> vector<2x8x1xf32>
    %62 = vector.broadcast %61 : vector<2x8x1xf32> to vector<2x8x8xf32>
    %63 = arith.mulf %58, %62 : vector<2x8x8xf32>
    %64 = arith.truncf %63 : vector<2x8x8xf32> to vector<2x8x8xbf16>
    %cst_36 = arith.constant dense<0.000000e+00> : vector<2x8x32xf32>
    %65 = tpu.matmul %64, %52, %cst_36 {dimension_numbers = #tpu.dot_dimension_numbers<[2], [1], [1], [2], [0, 0, 0, 1, 1, 2], [0], [0]>} : vector<2x8x8xbf16>, vector<2x8x32xbf16>, vector<2x8x32xf32> -> vector<2x8x32xf32>
    %66 = vector.shape_cast %65 : vector<2x8x32xf32> to vector<16x32xf32>
    %67 = arith.truncf %66 : vector<16x32xf32> to vector<16x32xbf16>
    %c1_37 = arith.constant 1 : index
    %c0_38 = arith.constant 0 : index
    %c0_39 = arith.constant 0 : index
    %68 = vector.load %arg5[%c1_37, %c0_38, %c0_39] : memref<2x32x32xbf16, #tpu.memory_space<vmem>>, vector<1x32x32xbf16>
    %69 = vector.shape_cast %68 : vector<1x32x32xbf16> to vector<32x32xbf16>
    %cst_40 = arith.constant dense<0.000000e+00> : vector<16x32xf32>
    %70 = tpu.matmul %67, %69, %cst_40 {dimension_numbers = #tpu.dot_dimension_numbers<[1], [0], [0], [1], [0, 0, 1, 1], [], []>} : vector<16x32xbf16>, vector<32x32xbf16>, vector<16x32xf32> -> vector<16x32xf32>
    %71 = arith.addf %37, %70 : vector<16x32xf32>
    %c0_41 = arith.constant 0 : index
    %c0_42 = arith.constant 0 : index
    %72 = vector.load %arg6[%c0_41, %c0_42] : memref<1x32xf32, #tpu.memory_space<vmem>>, vector<1x32xf32>
    %73 = vector.broadcast %72 : vector<1x32xf32> to vector<16x32xf32>
    %74 = arith.addf %71, %73 : vector<16x32xf32>
    %75 = arith.truncf %74 : vector<16x32xf32> to vector<16x32xbf16>
    %c0_43 = arith.constant 0 : index
    %c0_44 = arith.constant 0 : index
    %76 = vector.load %arg11[%c0_43, %c0_44] : memref<32x128xbf16, #tpu.memory_space<vmem>>, vector<32x128xbf16>
    %cst_45 = arith.constant dense<0.000000e+00> : vector<16x128xf32>
    %77 = tpu.matmul %75, %76, %cst_45 {dimension_numbers = #tpu.dot_dimension_numbers<[1], [0], [0], [1], [0, 0, 1, 1], [], []>} : vector<16x32xbf16>, vector<32x128xbf16>, vector<16x128xf32> -> vector<16x128xf32>
    %c0_46 = arith.constant 0 : index
    %c0_47 = arith.constant 0 : index
    %78 = vector.load %arg12[%c0_46, %c0_47] : memref<1x128xf32, #tpu.memory_space<vmem>>, vector<1x128xf32>
    %79 = vector.broadcast %78 : vector<1x128xf32> to vector<16x128xf32>
    %80 = arith.addf %77, %79 : vector<16x128xf32>
    %cst_48 = arith.constant 0.000000e+00 : f32
    %81 = vector.broadcast %cst_48 : f32 to vector<16x128xf32>
    %82 = arith.maximumf %80, %81 : vector<16x128xf32>
    %83 = arith.truncf %82 : vector<16x128xf32> to vector<16x128xbf16>
    %c0_49 = arith.constant 0 : index
    %c0_50 = arith.constant 0 : index
    %84 = vector.load %arg13[%c0_49, %c0_50] : memref<128x32xbf16, #tpu.memory_space<vmem>>, vector<128x32xbf16>
    %cst_51 = arith.constant dense<0.000000e+00> : vector<16x32xf32>
    %85 = tpu.matmul %83, %84, %cst_51 {dimension_numbers = #tpu.dot_dimension_numbers<[1], [0], [0], [1], [0, 0, 1, 1], [], []>} : vector<16x128xbf16>, vector<128x32xbf16>, vector<16x32xf32> -> vector<16x32xf32>
    %c0_52 = arith.constant 0 : index
    %c0_53 = arith.constant 0 : index
    %86 = vector.load %arg14[%c0_52, %c0_53] : memref<1x32xf32, #tpu.memory_space<vmem>>, vector<1x32xf32>
    %87 = vector.broadcast %86 : vector<1x32xf32> to vector<16x32xf32>
    %88 = arith.addf %85, %87 : vector<16x32xf32>
    %89 = vector.shape_cast %88 : vector<16x32xf32> to vector<2x8x32xf32>
    %c0_54 = arith.constant 0 : index
    %c0_55 = arith.constant 0 : index
    %c0_56 = arith.constant 0 : index
    %90 = vector.load %arg15[%c0_54, %c0_55, %c0_56] : memref<2x8x32xf32, #tpu.memory_space<vmem>>, vector<2x8x32xf32>
    tpu.vector_store %arg15[%c0_54, %c0_55, %c0_56], %89 {strides = array<i32>} : memref<2x8x32xf32, #tpu.memory_space<vmem>>, vector<2x8x32xf32>,
    return
  }
  func.func @transform_0(%arg0: i32) -> (i32, i32, i32) {
    %c0_i32 = arith.constant 0 : i32
    %c0_i32_0 = arith.constant 0 : i32
    %c0_i32_1 = arith.constant 0 : i32
    return %arg0, %c0_i32, %c0_i32_0 : i32, i32, i32
  }
  func.func @transform_1(%arg0: i32) -> (i32, i32, i32) {
    %c0_i32 = arith.constant 0 : i32
    %c0_i32_0 = arith.constant 0 : i32
    %c0_i32_1 = arith.constant 0 : i32
    %c0_i32_2 = arith.constant 0 : i32
    return %c0_i32, %c0_i32_0, %c0_i32_1 : i32, i32, i32
  }
  func.func @transform_2(%arg0: i32) -> (i32, i32, i32) {
    %c0_i32 = arith.constant 0 : i32
    %c0_i32_0 = arith.constant 0 : i32
    %c0_i32_1 = arith.constant 0 : i32
    %c0_i32_2 = arith.constant 0 : i32
    return %c0_i32, %c0_i32_0, %c0_i32_1 : i32, i32, i32
  }
  func.func @transform_3(%arg0: i32) -> (i32, i32, i32) {
    %c0_i32 = arith.constant 0 : i32
    %c0_i32_0 = arith.constant 0 : i32
    %c0_i32_1 = arith.constant 0 : i32
    %c0_i32_2 = arith.constant 0 : i32
    return %c0_i32, %c0_i32_0, %c0_i32_1 : i32, i32, i32
  }
  func.func @transform_4(%arg0: i32) -> (i32, i32, i32) {
    %c0_i32 = arith.constant 0 : i32
    %c0_i32_0 = arith.constant 0 : i32
    %c0_i32_1 = arith.constant 0 : i32
    %c0_i32_2 = arith.constant 0 : i32
    return %c0_i32, %c0_i32_0, %c0_i32_1 : i32, i32, i32
  }
  func.func @transform_5(%arg0: i32) -> (i32, i32) {
    %c0_i32 = arith.constant 0 : i32
    %c0_i32_0 = arith.constant 0 : i32
    %c0_i32_1 = arith.constant 0 : i32
    return %c0_i32, %c0_i32_0 : i32, i32
  }
  func.func @transform_6(%arg0: i32) -> (i32, i32) {
    %c0_i32 = arith.constant 0 : i32
    %c0_i32_0 = arith.constant 0 : i32
    %c0_i32_1 = arith.constant 0 : i32
    return %c0_i32, %c0_i32_0 : i32, i32
  }
  func.func @transform_7(%arg0: i32) -> (i32, i32) {
    %c0_i32 = arith.constant 0 : i32
    %c0_i32_0 = arith.constant 0 : i32
    %c0_i32_1 = arith.constant 0 : i32
    return %c0_i32, %c0_i32_0 : i32, i32
  }
  func.func @transform_8(%arg0: i32) -> (i32, i32) {
    %c0_i32 = arith.constant 0 : i32
    %c0_i32_0 = arith.constant 0 : i32
    %c0_i32_1 = arith.constant 0 : i32
    return %c0_i32, %c0_i32_0 : i32, i32
  }
  func.func @transform_9(%arg0: i32) -> (i32, i32) {
    %c0_i32 = arith.constant 0 : i32
    %c0_i32_0 = arith.constant 0 : i32
    %c0_i32_1 = arith.constant 0 : i32
    return %c0_i32, %c0_i32_0 : i32, i32
  }
  func.func @transform_10(%arg0: i32) -> (i32, i32) {
    %c0_i32 = arith.constant 0 : i32
    %c0_i32_0 = arith.constant 0 : i32
    %c0_i32_1 = arith.constant 0 : i32
    return %c0_i32, %c0_i32_0 : i32, i32
  }
  func.func @transform_11(%arg0: i32) -> (i32, i32) {
    %c0_i32 = arith.constant 0 : i32
    %c0_i32_0 = arith.constant 0 : i32
    %c0_i32_1 = arith.constant 0 : i32
    return %c0_i32, %c0_i32_0 : i32, i32
  }
  func.func @transform_12(%arg0: i32) -> (i32, i32) {
    %c0_i32 = arith.constant 0 : i32
    %c0_i32_0 = arith.constant 0 : i32
    %c0_i32_1 = arith.constant 0 : i32
    return %c0_i32, %c0_i32_0 : i32, i32
  }
  func.func @transform_13(%arg0: i32) -> (i32, i32) {
    %c0_i32 = arith.constant 0 : i32
    %c0_i32_0 = arith.constant 0 : i32
    %c0_i32_1 = arith.constant 0 : i32
    return %c0_i32, %c0_i32_0 : i32, i32
  }
  func.func @transform_14(%arg0: i32) -> (i32, i32, i32) {
    %c0_i32 = arith.constant 0 : i32
    %c0_i32_0 = arith.constant 0 : i32
    %c0_i32_1 = arith.constant 0 : i32
    return %arg0, %c0_i32, %c0_i32_0 : i32, i32, i32
  }
}

</mosaic_0001>

<llo_original>
// kernel: tpu_custom_call.1
$region0: #{tpu_custom_call.1}
  #allocation0 [shape = 'u32[]', space=smem, size = 0x4, offset = 0x4, fixed_abs, tag = 'smem constant byte address 0x4 - core index']
  #allocation1 [shape = 'u32[144,128]{1,0:T(1,128)}', space=vmem, size = 0x12000, scoped, tag = 'internal scratch']
  %s0 = inlined_call_operand.vmem [shape: f32[2,8,32], index: 0, kind: input, shape index: {}]
  %s1 = inlined_call_operand.vmem [shape: bf16[2,32,32], index: 1, kind: input, shape index: {}]
  %s2 = inlined_call_operand.vmem [shape: bf16[2,32,32], index: 2, kind: input, shape index: {}]
  %s3 = inlined_call_operand.hbm [shape: bf16[2,32,32], index: 3, kind: input, shape index: {}]
  %s4 = inlined_call_operand.hbm [shape: bf16[2,32,32], index: 4, kind: input, shape index: {}]
  %s5 = inlined_call_operand.vmem [shape: f32[1,32], index: 5, kind: input, shape index: {}]
  %s6 = inlined_call_operand.vmem [shape: f32[1,32], index: 6, kind: input, shape index: {}]
  %s7 = inlined_call_operand.hbm [shape: f32[1,32], index: 7, kind: input, shape index: {}]
  %s8 = inlined_call_operand.hbm [shape: f32[1,32], index: 8, kind: input, shape index: {}]
  %s9 = inlined_call_operand.hbm [shape: f32[1,32], index: 9, kind: input, shape index: {}]
  %s10 = inlined_call_operand.vmem [shape: bf16[32,128], index: 10, kind: input, shape index: {}]
  %s11 = inlined_call_operand.vmem [shape: f32[1,128], index: 11, kind: input, shape index: {}]
  %s12 = inlined_call_operand.vmem [shape: bf16[128,32], index: 12, kind: input, shape index: {}]
  %s13 = inlined_call_operand.vmem [shape: f32[1,32], index: 13, kind: input, shape index: {}]
  %s14 = inlined_call_operand.hbm [shape: f32[2,8,32], index: 14, kind: output, shape index: {}]
  %s15 = sld [smem:[#allocation0]]
  $region86: #{tpu_custom_call.1} parent=0
    _
  %s17 = ssub.s32 1, %s15
  %s18 = scalar_select 0, %s17, %s15
  $region1: #{tpu_custom_call.1} parent=0
    #allocation2 [shape = 'u8[16384]{0}', space=vmem, size = 0x4000, scoped, tag = 'input window, operand 3, single buffered']
    #allocation3 [shape = 's32[1]{0}', space=sflag, size = 0x4, scoped, tag = 'scoped memory for tpu_custom_call.1']
    #allocation4 [shape = 's32[1]{0}', space=sflag, size = 0x4, scoped, tag = 'scoped memory for tpu_custom_call.1']
    #allocation5 [shape = 'u8[16384]{0}', space=vmem, size = 0x4000, scoped, tag = 'input window, operand 4, single buffered']
    #allocation6 [shape = 's32[1]{0}', space=sflag, size = 0x4, scoped, tag = 'scoped memory for tpu_custom_call.1']
    #allocation7 [shape = 'u8[512]{0}', space=vmem, size = 0x400, scoped, tag = 'input window, operand 7, single buffered']
    #allocation8 [shape = 'u8[512]{0}', space=vmem, size = 0x400, scoped, tag = 'input window, operand 8, single buffered']
    #allocation9 [shape = 's32[1]{0}', space=sflag, size = 0x4, scoped, tag = 'scoped memory for tpu_custom_call.1']
    #allocation10 [shape = 'u8[512]{0}', space=vmem, size = 0x400, scoped, tag = 'input window, operand 9, single buffered']
    #allocation11 [shape = 'u8[8192]{0}', space=vmem, size = 0x2000, scoped, tag = 'output window, operand 0, single buffered']
    %19 = vsyncpa [#allocation3], 0
    %20 = vsyncpa [#allocation6], 0
    %21 = vsyncpa [#allocation9], 0
    %22 = vsyncpa [#allocation4], 0
    // Predicated region
    $region2: #{tpu_custom_call.1} parent=1 // pred_check
      _
    $region3: #{tpu_custom_call.1} parent=1 // pred_check_branch
      %24 = sbr.rel (0) target = $region5
    $region4: #{tpu_custom_call.1} parent=1 // pred_region
      _
    $region5: #{tpu_custom_call.1} parent=1 // pred_fallthru
      _
    // Predicated region
    $region6: #{tpu_custom_call.1} parent=1 // pred_check
      _
    $region7: #{tpu_custom_call.1} parent=1 // pred_check_branch
      %26 = sbr.rel (0) target = $region9
    $region8: #{tpu_custom_call.1} parent=1 // pred_region
      _
    $region9: #{tpu_custom_call.1} parent=1 // pred_fallthru
      _
    // Predicated region
    $region10: #{tpu_custom_call.1} parent=1 // pred_check
      _
    $region11: #{tpu_custom_call.1} parent=1 // pred_check_branch
      %28 = sbr.rel (0) target = $region13
    $region12: #{tpu_custom_call.1} parent=1 // pred_region
      _
    $region13: #{tpu_custom_call.1} parent=1 // pred_fallthru
      _
    // Predicated region
    $region14: #{tpu_custom_call.1} parent=1 // pred_check
      _
    $region15: #{tpu_custom_call.1} parent=1 // pred_check_branch
      %30 = sbr.rel (0) target = $region17
    $region16: #{tpu_custom_call.1} parent=1 // pred_region
      %s32 = ssub.s32 512, 512
      %33 = vsyncadd [#allocation3], %s32
      %s34 = sshll.u32 [#allocation2], 4
      %s35 = int_to_ptr.vmem [resolvable:$true] %s34
      %40 = dma.hbm_to_vmem [thread:$0]  %s3, 512, %s35, [#allocation3], 64, 64, 4
    $region17: #{tpu_custom_call.1} parent=1 // pred_fallthru
      _
    // Predicated region
    $region18: #{tpu_custom_call.1} parent=1 // pred_check
      _
    $region19: #{tpu_custom_call.1} parent=1 // pred_check_branch
      %42 = sbr.rel (0) target = $region21
    $region20: #{tpu_custom_call.1} parent=1 // pred_region
      %s44 = ssub.s32 512, 512
      %45 = vsyncadd [#allocation6], %s44
      %s46 = sshll.u32 [#allocation5], 4
      %s47 = int_to_ptr.vmem [resolvable:$true] %s46
      %52 = dma.hbm_to_vmem [thread:$0]  %s4, 512, %s47, [#allocation6], 64, 64, 4
    $region21: #{tpu_custom_call.1} parent=1 // pred_fallthru
      _
    // Predicated region
    $region22: #{tpu_custom_call.1} parent=1 // pred_check
      _
    $region23: #{tpu_custom_call.1} parent=1 // pred_check_branch
      %54 = sbr.rel (0) target = $region25
    $region24: #{tpu_custom_call.1} parent=1 // pred_region
      _
    $region25: #{tpu_custom_call.1} parent=1 // pred_fallthru
      _
    // Predicated region
    $region26: #{tpu_custom_call.1} parent=1 // pred_check
      _
    $region27: #{tpu_custom_call.1} parent=1 // pred_check_branch
      %56 = sbr.rel (0) target = $region29
    $region28: #{tpu_custom_call.1} parent=1 // pred_region
      _
    $region29: #{tpu_custom_call.1} parent=1 // pred_fallthru
      _
    // Predicated region
    $region30: #{tpu_custom_call.1} parent=1 // pred_check
      _
    $region31: #{tpu_custom_call.1} parent=1 // pred_check_branch
      %58 = sbr.rel (0) target = $region33
    $region32: #{tpu_custom_call.1} parent=1 // pred_region
      %s60 = ssub.s32 16, 16
      %61 = vsyncadd [#allocation6], %s60
      %s63 = sshll.u32 [#allocation7], 4
      %s64 = int_to_ptr.vmem [resolvable:$true] %s63
      %66 = dma.hbm_to_vmem [thread:$0]  %s7, 16, %s64, [#allocation6]
    $region33: #{tpu_custom_call.1} parent=1 // pred_fallthru
      _
    // Predicated region
    $region34: #{tpu_custom_call.1} parent=1 // pred_check
      _
    $region35: #{tpu_custom_call.1} parent=1 // pred_check_branch
      %68 = sbr.rel (0) target = $region37
    $region36: #{tpu_custom_call.1} parent=1 // pred_region
      %s70 = ssub.s32 16, 16
      %71 = vsyncadd [#allocation9], %s70
      %s73 = sshll.u32 [#allocation8], 4
      %s74 = int_to_ptr.vmem [resolvable:$true] %s73
      %76 = dma.hbm_to_vmem [thread:$0]  %s8, 16, %s74, [#allocation9]
    $region37: #{tpu_custom_call.1} parent=1 // pred_fallthru
      _
    // Predicated region
    $region38: #{tpu_custom_call.1} parent=1 // pred_check
      _
    $region39: #{tpu_custom_call.1} parent=1 // pred_check_branch
      %78 = sbr.rel (0) target = $region41
    $region40: #{tpu_custom_call.1} parent=1 // pred_region
      %s80 = ssub.s32 16, 16
      %81 = vsyncadd [#allocation9], %s80
      %s83 = sshll.u32 [#allocation10], 4
      %s84 = int_to_ptr.vmem [resolvable:$true] %s83
      %86 = dma.hbm_to_vmem [thread:$0]  %s9, 16, %s84, [#allocation9]
    $region41: #{tpu_custom_call.1} parent=1 // pred_fallthru
      _
    // Predicated region
    $region42: #{tpu_custom_call.1} parent=1 // pred_check
      _
    $region43: #{tpu_custom_call.1} parent=1 // pred_check_branch
      %88 = sbr.rel (0) target = $region45
    $region44: #{tpu_custom_call.1} parent=1 // pred_region
      _
    $region45: #{tpu_custom_call.1} parent=1 // pred_fallthru
      _
    // Predicated region
    $region46: #{tpu_custom_call.1} parent=1 // pred_check
      _
    $region47: #{tpu_custom_call.1} parent=1 // pred_check_branch
      %90 = sbr.rel (0) target = $region49
    $region48: #{tpu_custom_call.1} parent=1 // pred_region
      _
    $region49: #{tpu_custom_call.1} parent=1 // pred_fallthru
      _
    // Predicated region
    $region50: #{tpu_custom_call.1} parent=1 // pred_check
      _
    $region51: #{tpu_custom_call.1} parent=1 // pred_check_branch
      %92 = sbr.rel (0) target = $region53
    $region52: #{tpu_custom_call.1} parent=1 // pred_region
      _
    $region53: #{tpu_custom_call.1} parent=1 // pred_fallthru
      _
    // Predicated region
    $region54: #{tpu_custom_call.1} parent=1 // pred_check
      _
    $region55: #{tpu_custom_call.1} parent=1 // pred_check_branch
      %94 = sbr.rel (0) target = $region57
    $region56: #{tpu_custom_call.1} parent=1 // pred_region
      _
    $region57: #{tpu_custom_call.1} parent=1 // pred_fallthru
      _
    // Predicated region
    $region58: #{tpu_custom_call.1} parent=1 // pred_check
      _
    $region59: #{tpu_custom_call.1} parent=1 // pred_check_branch
      %96 = sbr.rel (0) target = $region61
    $region60: #{tpu_custom_call.1} parent=1 // pred_region
      %97 = dma.done [#allocation3], 512
    $region61: #{tpu_custom_call.1} parent=1 // pred_fallthru
      _
    // Predicated region
    $region62: #{tpu_custom_call.1} parent=1 // pred_check
      _
    $region63: #{tpu_custom_call.1} parent=1 // pred_check_branch
      %99 = sbr.rel (0) target = $region65
    $region64: #{tpu_custom_call.1} parent=1 // pred_region
      %100 = dma.done [#allocation6], 512
    $region65: #{tpu_custom_call.1} parent=1 // pred_fallthru
      _
    // Predicated region
    $region66: #{tpu_custom_call.1} parent=1 // pred_check
      _
    $region67: #{tpu_custom_call.1} parent=1 // pred_check_branch
      %102 = sbr.rel (0) target = $region69
    $region68: #{tpu_custom_call.1} parent=1 // pred_region
      %103 = dma.done [#allocation6], 16
    $region69: #{tpu_custom_call.1} parent=1 // pred_fallthru
      _
    // Predicated region
    $region70: #{tpu_custom_call.1} parent=1 // pred_check
      _
    $region71: #{tpu_custom_call.1} parent=1 // pred_check_branch
      %105 = sbr.rel (0) target = $region73
    $region72: #{tpu_custom_call.1} parent=1 // pred_region
      %106 = dma.done [#allocation9], 16
    $region73: #{tpu_custom_call.1} parent=1 // pred_fallthru
      _
    // Predicated region
    $region74: #{tpu_custom_call.1} parent=1 // pred_check
      _
    $region75: #{tpu_custom_call.1} parent=1 // pred_check_branch
      %108 = sbr.rel (0) target = $region77
    $region76: #{tpu_custom_call.1} parent=1 // pred_region
      %109 = dma.done [#allocation9], 16
    $region77: #{tpu_custom_call.1} parent=1 // pred_fallthru
      _
    %v111 = vld [vmem:[%s0] sm:$0xff]
    %v112 = vld [vmem:[%s0 + $0x8] sm:$0xff]
    %v113 = vpack.c.bf16 %v112, %v111
    %v114 = vld [vmem:[%s1] sm:$0xf]
    %v115 = vld [vmem:[%s1 + $0x4] sm:$0xf]
    %v116 = vld [vmem:[%s1 + $0x8] sm:$0xf]
    %v117 = vld [vmem:[%s1 + $0xc] sm:$0xf]
    %v122 = vunpack.c.l.b16 %v114
    %v123 = vunpack.c.l.b16 %v115
    %v124 = vunpack.c.l.b16 %v116
    %v125 = vunpack.c.l.b16 %v117
    %v126 = vpack.c.b16 %v123, %v122
    %v127 = vpack.c.b16 %v125, %v124
    %vm130 = vcmask 261120
    %v132 = vsel %vm130, %v113, 0
    %134 = vmatprep.subr.bf16.mxu0 0
    %135 = vmatpush1.bf16.msra.mxu0 %v126
    %136 = vmatprep.subr.bf16.mxu0 0
    %137 = vmatpush1.bf16.msra.mxu0 %v127
    %138 = vmatprep.subr.bf16.mxu0 0
    %139 = vmatpush1.bf16.msra.mxu0 0
    %140 = vmatprep.subr.bf16.mxu0 0
    %141 = vmatpush1.bf16.msra.mxu0 0
    %142 = vmatprep.subr.bf16.mxu0 0
    %143 = vmatpush1.bf16.msra.mxu0 0
    %144 = vmatprep.subr.bf16.mxu0 0
    %145 = vmatpush1.bf16.msra.mxu0 0
    %146 = vmatprep.subr.bf16.mxu0 0
    %147 = vmatpush1.bf16.msra.mxu0 0
    %148 = vmatprep.subr.bf16.mxu0 0
    %149 = vmatpush1.bf16.msra.mxu0 0
    %150 = vmatprep.subr.bf16.mxu0 0
    %151 = vmatpush1.bf16.msra.mxu0 0
    %152 = vmatprep.subr.bf16.mxu0 0
    %153 = vmatpush1.bf16.msra.mxu0 0
    %154 = vmatprep.subr.bf16.mxu0 0
    %155 = vmatpush1.bf16.msra.mxu0 0
    %156 = vmatprep.subr.bf16.mxu0 0
    %157 = vmatpush1.bf16.msra.mxu0 0
    %158 = vmatprep.subr.bf16.mxu0 0
    %159 = vmatpush1.bf16.msra.mxu0 0
    %160 = vmatprep.subr.bf16.mxu0 0
    %161 = vmatpush1.bf16.msra.mxu0 0
    %162 = vmatprep.subr.bf16.mxu0 0
    %163 = vmatpush1.bf16.msra.mxu0 0
    %164 = vmatprep.subr.bf16.mxu0 0
    %165 = vmatpush1.bf16.msra.mxu0 0
    %166 = vmatprep.mubr.bf16.mxu0 0
    %167 = vmatmul.mubr.bf16.gmra.mrb[0].mxu0 %v132
    %v168 = vpop.f32.mrb[0].mxu0
    %v169 = vadd.f32 0.0, %v168
    %v170 = vpop.f32.mrb[0].mxu0
    %v171 = vpop.f32.mrb[0].mxu0
    %v172 = vadd.f32 0.0, %v171
    %v173 = vpop.f32.mrb[0].mxu0
    %174 = vdwg.mxu0
    %v175 = vld [vmem:[%s2] sm:$0xf]
    %v176 = vld [vmem:[%s2 + $0x4] sm:$0xf]
    %v177 = vld [vmem:[%s2 + $0x8] sm:$0xf]
    %v178 = vld [vmem:[%s2 + $0xc] sm:$0xf]
    %v183 = vunpack.c.l.b16 %v175
    %v184 = vunpack.c.l.b16 %v176
    %v185 = vunpack.c.l.b16 %v177
    %v186 = vunpack.c.l.b16 %v178
    %v187 = vpack.c.b16 %v184, %v183
    %v188 = vpack.c.b16 %v186, %v185
    %191 = vmatprep.subr.bf16.mxu0 0
    %192 = vmatpush1.bf16.msra.mxu0 %v187
    %193 = vmatprep.subr.bf16.mxu0 0
    %194 = vmatpush1.bf16.msra.mxu0 %v188
    %195 = vmatprep.subr.bf16.mxu0 0
    %196 = vmatpush1.bf16.msra.mxu0 0
    %197 = vmatprep.subr.bf16.mxu0 0
    %198 = vmatpush1.bf16.msra.mxu0 0
    %199 = vmatprep.subr.bf16.mxu0 0
    %200 = vmatpush1.bf16.msra.mxu0 0
    %201 = vmatprep.subr.bf16.mxu0 0
    %202 = vmatpush1.bf16.msra.mxu0 0
    %203 = vmatprep.subr.bf16.mxu0 0
    %204 = vmatpush1.bf16.msra.mxu0 0
    %205 = vmatprep.subr.bf16.mxu0 0
    %206 = vmatpush1.bf16.msra.mxu0 0
    %207 = vmatprep.subr.bf16.mxu0 0
    %208 = vmatpush1.bf16.msra.mxu0 0
    %209 = vmatprep.subr.bf16.mxu0 0
    %210 = vmatpush1.bf16.msra.mxu0 0
    %211 = vmatprep.subr.bf16.mxu0 0
    %212 = vmatpush1.bf16.msra.mxu0 0
    %213 = vmatprep.subr.bf16.mxu0 0
    %214 = vmatpush1.bf16.msra.mxu0 0
    %215 = vmatprep.subr.bf16.mxu0 0
    %216 = vmatpush1.bf16.msra.mxu0 0
    %217 = vmatprep.subr.bf16.mxu0 0
    %218 = vmatpush1.bf16.msra.mxu0 0
    %219 = vmatprep.subr.bf16.mxu0 0
    %220 = vmatpush1.bf16.msra.mxu0 0
    %221 = vmatprep.subr.bf16.mxu0 0
    %222 = vmatpush1.bf16.msra.mxu0 0
    %223 = vmatprep.mubr.bf16.mxu0 0
    %224 = vmatmul.mubr.bf16.gmra.mrb[0].mxu0 %v132
    %v225 = vpop.f32.mrb[0].mxu0
    %v226 = vadd.f32 0.0, %v225
    %v227 = vpop.f32.mrb[0].mxu0
    %v228 = vpop.f32.mrb[0].mxu0
    %v229 = vadd.f32 0.0, %v228
    %v230 = vpop.f32.mrb[0].mxu0
    %231 = vdwg.mxu0
    %v232 = vld [vmem:[#allocation2] sm:$0xf]
    %v233 = vld [vmem:[#allocation2 + $0x4] sm:$0xf]
    %v234 = vld [vmem:[#allocation2 + $0x8] sm:$0xf]
    %v235 = vld [vmem:[#allocation2 + $0xc] sm:$0xf]
    %v240 = vunpack.c.l.b16 %v232
    %v241 = vunpack.c.l.b16 %v233
    %v242 = vunpack.c.l.b16 %v234
    %v243 = vunpack.c.l.b16 %v235
    %v244 = vpack.c.b16 %v241, %v240
    %v245 = vpack.c.b16 %v243, %v242
    %248 = vmatprep.subr.bf16.mxu0 0
    %249 = vmatpush1.bf16.msra.mxu0 %v244
    %250 = vmatprep.subr.bf16.mxu0 0
    %251 = vmatpush1.bf16.msra.mxu0 %v245
    %252 = vmatprep.subr.bf16.mxu0 0
    %253 = vmatpush1.bf16.msra.mxu0 0
    %254 = vmatprep.subr.bf16.mxu0 0
    %255 = vmatpush1.bf16.msra.mxu0 0
    %256 = vmatprep.subr.bf16.mxu0 0
    %257 = vmatpush1.bf16.msra.mxu0 0
    %258 = vmatprep.subr.bf16.mxu0 0
    %259 = vmatpush1.bf16.msra.mxu0 0
    %260 = vmatprep.subr.bf16.mxu0 0
    %261 = vmatpush1.bf16.msra.mxu0 0
    %262 = vmatprep.subr.bf16.mxu0 0
    %263 = vmatpush1.bf16.msra.mxu0 0
    %264 = vmatprep.subr.bf16.mxu0 0
    %265 = vmatpush1.bf16.msra.mxu0 0
    %266 = vmatprep.subr.bf16.mxu0 0
    %267 = vmatpush1.bf16.msra.mxu0 0
    %268 = vmatprep.subr.bf16.mxu0 0
    %269 = vmatpush1.bf16.msra.mxu0 0
    %270 = vmatprep.subr.bf16.mxu0 0
    %271 = vmatpush1.bf16.msra.mxu0 0
    %272 = vmatprep.subr.bf16.mxu0 0
    %273 = vmatpush1.bf16.msra.mxu0 0
    %274 = vmatprep.subr.bf16.mxu0 0
    %275 = vmatpush1.bf16.msra.mxu0 0
    %276 = vmatprep.subr.bf16.mxu0 0
    %277 = vmatpush1.bf16.msra.mxu0 0
    %278 = vmatprep.subr.bf16.mxu0 0
    %279 = vmatpush1.bf16.msra.mxu0 0
    %280 = vmatprep.mubr.bf16.mxu0 0
    %281 = vmatmul.mubr.bf16.gmra.mrb[0].mxu0 %v132
    %v282 = vpop.f32.mrb[0].mxu0
    %v283 = vadd.f32 0.0, %v282
    %v284 = vpop.f32.mrb[0].mxu0
    %v285 = vpop.f32.mrb[0].mxu0
    %v286 = vadd.f32 0.0, %v285
    %v287 = vpop.f32.mrb[0].mxu0
    %288 = vdwg.mxu0
    %v289 = vpack.c.bf16 %v172, %v169
    %v291 = vunpack.c.l.b16 %v289
    %v292 = vunpack.c.h.b16 %v289
    %v293 = vpack.c.b16 %v291, %v291
    %v294 = vpack.c.b16 %v292, %v292
    %v295 = vpack.c.bf16 %v229, %v226
    %v297 = vunpack.c.l.b16 %v295
    %v298 = vunpack.c.h.b16 %v295
    %v299 = vpack.c.b16 %v297, %v297
    %v300 = vpack.c.b16 %v298, %v298
    %v301 = vpack.c.bf16 %v286, %v283
    %v303 = vunpack.c.l.b16 %v301
    %v304 = vunpack.c.h.b16 %v301
    %v305 = vpack.c.b16 %v303, %v303
    %v306 = vpack.c.b16 %v304, %v304
    %v308 = vsel %vm130, %v293, 0
    %v311 = vsel %vm130, %v299, 0
    %313 = vmatprep.subr.bf16.mxu0 0
    %314 = vmatpush1.bf16.xpose.msra.mxu0 %v311
    %315 = vmatprep.subr.bf16.mxu0 0
    %316 = vmatpush1.bf16.xpose.msra.mxu0 0
    %317 = vmatprep.subr.bf16.mxu0 0
    %318 = vmatpush1.bf16.xpose.msra.mxu0 0
    %319 = vmatprep.subr.bf16.mxu0 0
    %320 = vmatpush1.bf16.xpose.msra.mxu0 0
    %321 = vmatprep.subr.bf16.mxu0 0
    %322 = vmatpush1.bf16.xpose.msra.mxu0 0
    %323 = vmatprep.subr.bf16.mxu0 0
    %324 = vmatpush1.bf16.xpose.msra.mxu0 0
    %325 = vmatprep.subr.bf16.mxu0 0
    %326 = vmatpush1.bf16.xpose.msra.mxu0 0
    %327 = vmatprep.subr.bf16.mxu0 0
    %328 = vmatpush1.bf16.xpose.msra.mxu0 0
    %329 = vmatprep.subr.bf16.mxu0 0
    %330 = vmatpush1.bf16.xpose.msra.mxu0 0
    %331 = vmatprep.subr.bf16.mxu0 0
    %332 = vmatpush1.bf16.xpose.msra.mxu0 0
    %333 = vmatprep.subr.bf16.mxu0 0
    %334 = vmatpush1.bf16.xpose.msra.mxu0 0
    %335 = vmatprep.subr.bf16.mxu0 0
    %336 = vmatpush1.bf16.xpose.msra.mxu0 0
    %337 = vmatprep.subr.bf16.mxu0 0
    %338 = vmatpush1.bf16.xpose.msra.mxu0 0
    %339 = vmatprep.subr.bf16.mxu0 0
    %340 = vmatpush1.bf16.xpose.msra.mxu0 0
    %341 = vmatprep.subr.bf16.mxu0 0
    %342 = vmatpush1.bf16.xpose.msra.mxu0 0
    %343 = vmatprep.subr.bf16.mxu0 0
    %344 = vmatpush1.bf16.xpose.msra.mxu0 0
    %345 = vmatprep.mubr.bf16.mxu0 0
    %346 = vmatmul.mubr.bf16.gmra.mrb[0].mxu0 %v308
    %v347 = vpop.f32.mrb[0].mxu0
    %v348 = vadd.f32 0.0, %v347
    %v349 = vpop.f32.mrb[0].mxu0
    %v350 = vpop.f32.mrb[0].mxu0
    %v351 = vpop.f32.mrb[0].mxu0
    %352 = vdwg.mxu0
    %v354 = vsel %vm130, %v294, 0
    %v357 = vsel %vm130, %v300, 0
    %359 = vmatprep.subr.bf16.mxu0 0
    %360 = vmatpush1.bf16.xpose.msra.mxu0 %v357
    %361 = vmatprep.subr.bf16.mxu0 0
    %362 = vmatpush1.bf16.xpose.msra.mxu0 0
    %363 = vmatprep.subr.bf16.mxu0 0
    %364 = vmatpush1.bf16.xpose.msra.mxu0 0
    %365 = vmatprep.subr.bf16.mxu0 0
    %366 = vmatpush1.bf16.xpose.msra.mxu0 0
    %367 = vmatprep.subr.bf16.mxu0 0
    %368 = vmatpush1.bf16.xpose.msra.mxu0 0
    %369 = vmatprep.subr.bf16.mxu0 0
    %370 = vmatpush1.bf16.xpose.msra.mxu0 0
    %371 = vmatprep.subr.bf16.mxu0 0
    %372 = vmatpush1.bf16.xpose.msra.mxu0 0
    %373 = vmatprep.subr.bf16.mxu0 0
    %374 = vmatpush1.bf16.xpose.msra.mxu0 0
    %375 = vmatprep.subr.bf16.mxu0 0
    %376 = vmatpush1.bf16.xpose.msra.mxu0 0
    %377 = vmatprep.subr.bf16.mxu0 0
    %378 = vmatpush1.bf16.xpose.msra.mxu0 0
    %379 = vmatprep.subr.bf16.mxu0 0
    %380 = vmatpush1.bf16.xpose.msra.mxu0 0
    %381 = vmatprep.subr.bf16.mxu0 0
    %382 = vmatpush1.bf16.xpose.msra.mxu0 0
    %383 = vmatprep.subr.bf16.mxu0 0
    %384 = vmatpush1.bf16.xpose.msra.mxu0 0
    %385 = vmatprep.subr.bf16.mxu0 0
    %386 = vmatpush1.bf16.xpose.msra.mxu0 0
    %387 = vmatprep.subr.bf16.mxu0 0
    %388 = vmatpush1.bf16.xpose.msra.mxu0 0
    %389 = vmatprep.subr.bf16.mxu0 0
    %390 = vmatpush1.bf16.xpose.msra.mxu0 0
    %391 = vmatprep.mubr.bf16.mxu0 0
    %392 = vmatmul.mubr.bf16.gmra.mrb[0].mxu0 %v354
    %v393 = vpop.f32.mrb[0].mxu0
    %v394 = vadd.f32 0.0, %v393
    %v395 = vpop.f32.mrb[0].mxu0
    %v396 = vpop.f32.mrb[0].mxu0
    %v397 = vpop.f32.mrb[0].mxu0
    %398 = vdwg.mxu0
    %vm399 = vcmask 64512
    %v400 = vsel %vm399, %v348, -inf
    %401 = vmax.xlane.f32.xlu0 %v400
    %v402 = vpop.xlane.xlu0 %401
    %v403 = vsel %vm399, %v394, -inf
    %404 = vmax.xlane.f32.xlu0 %v403
    %v405 = vpop.xlane.xlu0 %404
    %v406 = vsub.f32 %v348, %v402
    %v407 = vsub.f32 %v394, %v405
    %v408 = vmul.f32 %v406, 1.442695
    %v409 = vpow.pop %v408
    %v410 = vmul.f32 %v407, 1.442695
    %v411 = vpow.pop %v410
    %v412 = vsel %vm399, %v409, 0.0
    %413 = vadd.xlane.f32.xlu0 %v412
    %v414 = vpop.xlane.xlu0 %413
    %v415 = vsel %vm399, %v411, 0.0
    %416 = vadd.xlane.f32.xlu0 %v415
    %v417 = vpop.xlane.xlu0 %416
    %v418 = vrcp.pop %v414
    %v419 = vrcp.pop %v417
    %v420 = vmul.f32 %v409, %v418
    %v421 = vmul.f32 %v411, %v419
    %v422 = vpack.c.bf16 %v420, %v420
    %v423 = vpack.c.bf16 %v421, %v421
    %v425 = vsel %vm399, %v422, 0
    %vm427 = vcmask 1043456
    %v429 = vsel %vm427, %v305, 0
    %431 = vmatprep.subr.bf16.mxu0 0
    %432 = vmatpush1.bf16.msra.mxu0 %v429
    %433 = vmatprep.subr.bf16.mxu0 0
    %434 = vmatpush1.bf16.msra.mxu0 0
    %435 = vmatprep.subr.bf16.mxu0 0
    %436 = vmatpush1.bf16.msra.mxu0 0
    %437 = vmatprep.subr.bf16.mxu0 0
    %438 = vmatpush1.bf16.msra.mxu0 0
    %439 = vmatprep.subr.bf16.mxu0 0
    %440 = vmatpush1.bf16.msra.mxu0 0
    %441 = vmatprep.subr.bf16.mxu0 0
    %442 = vmatpush1.bf16.msra.mxu0 0
    %443 = vmatprep.subr.bf16.mxu0 0
    %444 = vmatpush1.bf16.msra.mxu0 0
    %445 = vmatprep.subr.bf16.mxu0 0
    %446 = vmatpush1.bf16.msra.mxu0 0
    %447 = vmatprep.subr.bf16.mxu0 0
    %448 = vmatpush1.bf16.msra.mxu0 0
    %449 = vmatprep.subr.bf16.mxu0 0
    %450 = vmatpush1.bf16.msra.mxu0 0
    %451 = vmatprep.subr.bf16.mxu0 0
    %452 = vmatpush1.bf16.msra.mxu0 0
    %453 = vmatprep.subr.bf16.mxu0 0
    %454 = vmatpush1.bf16.msra.mxu0 0
    %455 = vmatprep.subr.bf16.mxu0 0
    %456 = vmatpush1.bf16.msra.mxu0 0
    %457 = vmatprep.subr.bf16.mxu0 0
    %458 = vmatpush1.bf16.msra.mxu0 0
    %459 = vmatprep.subr.bf16.mxu0 0
    %460 = vmatpush1.bf16.msra.mxu0 0
    %461 = vmatprep.subr.bf16.mxu0 0
    %462 = vmatpush1.bf16.msra.mxu0 0
    %463 = vmatprep.mubr.bf16.mxu0 0
    %464 = vmatmul.mubr.bf16.gmra.mrb[0].mxu0 %v425
    %v465 = vpop.f32.mrb[0].mxu0
    %v466 = vadd.f32 0.0, %v465
    %v467 = vpop.f32.mrb[0].mxu0
    %v468 = vpop.f32.mrb[0].mxu0
    %v469 = vpop.f32.mrb[0].mxu0
    %470 = vdwg.mxu0
    %v472 = vsel %vm399, %v423, 0
    %v475 = vsel %vm427, %v306, 0
    %477 = vmatprep.subr.bf16.mxu0 0
    %478 = vmatpush1.bf16.msra.mxu0 %v475
    %479 = vmatprep.subr.bf16.mxu0 0
    %480 = vmatpush1.bf16.msra.mxu0 0
    %481 = vmatprep.subr.bf16.mxu0 0
    %482 = vmatpush1.bf16.msra.mxu0 0
    %483 = vmatprep.subr.bf16.mxu0 0
    %484 = vmatpush1.bf16.msra.mxu0 0
    %485 = vmatprep.subr.bf16.mxu0 0
    %486 = vmatpush1.bf16.msra.mxu0 0
    %487 = vmatprep.subr.bf16.mxu0 0
    %488 = vmatpush1.bf16.msra.mxu0 0
    %489 = vmatprep.subr.bf16.mxu0 0
    %490 = vmatpush1.bf16.msra.mxu0 0
    %491 = vmatprep.subr.bf16.mxu0 0
    %492 = vmatpush1.bf16.msra.mxu0 0
    %493 = vmatprep.subr.bf16.mxu0 0
    %494 = vmatpush1.bf16.msra.mxu0 0
    %495 = vmatprep.subr.bf16.mxu0 0
    %496 = vmatpush1.bf16.msra.mxu0 0
    %497 = vmatprep.subr.bf16.mxu0 0
    %498 = vmatpush1.bf16.msra.mxu0 0
    %499 = vmatprep.subr.bf16.mxu0 0
    %500 = vmatpush1.bf16.msra.mxu0 0
    %501 = vmatprep.subr.bf16.mxu0 0
    %502 = vmatpush1.bf16.msra.mxu0 0
    %503 = vmatprep.subr.bf16.mxu0 0
    %504 = vmatpush1.bf16.msra.mxu0 0
    %505 = vmatprep.subr.bf16.mxu0 0
    %506 = vmatpush1.bf16.msra.mxu0 0
    %507 = vmatprep.subr.bf16.mxu0 0
    %508 = vmatpush1.bf16.msra.mxu0 0
    %509 = vmatprep.mubr.bf16.mxu0 0
    %510 = vmatmul.mubr.bf16.gmra.mrb[0].mxu0 %v472
    %v511 = vpop.f32.mrb[0].mxu0
    %v512 = vadd.f32 0.0, %v511
    %v513 = vpop.f32.mrb[0].mxu0
    %v514 = vpop.f32.mrb[0].mxu0
    %v515 = vpop.f32.mrb[0].mxu0
    %516 = vdwg.mxu0
    %v517 = vpack.c.bf16 %v512, %v466
    %v518 = vld [vmem:[#allocation5] sm:$0xf]
    %v519 = vld [vmem:[#allocation5 + $0x4] sm:$0xf]
    %v520 = vld [vmem:[#allocation5 + $0x8] sm:$0xf]
    %v521 = vld [vmem:[#allocation5 + $0xc] sm:$0xf]
    %s522 = scalar_lea.vmem %s1, 16
    %v523 = vld [vmem:[%s522] sm:$0xf]
    %v524 = vld [vmem:[%s522 + $0x4] sm:$0xf]
    %v525 = vld [vmem:[%s522 + $0x8] sm:$0xf]
    %v526 = vld [vmem:[%s522 + $0xc] sm:$0xf]
    %v531 = vunpack.c.l.b16 %v523
    %v532 = vunpack.c.l.b16 %v524
    %v533 = vunpack.c.l.b16 %v525
    %v534 = vunpack.c.l.b16 %v526
    %v535 = vpack.c.b16 %v532, %v531
    %v536 = vpack.c.b16 %v534, %v533
    %539 = vmatprep.subr.bf16.mxu0 0
    %540 = vmatpush1.bf16.msra.mxu0 %v535
    %541 = vmatprep.subr.bf16.mxu0 0
    %542 = vmatpush1.bf16.msra.mxu0 %v536
    %543 = vmatprep.subr.bf16.mxu0 0
    %544 = vmatpush1.bf16.msra.mxu0 0
    %545 = vmatprep.subr.bf16.mxu0 0
    %546 = vmatpush1.bf16.msra.mxu0 0
    %547 = vmatprep.subr.bf16.mxu0 0
    %548 = vmatpush1.bf16.msra.mxu0 0
    %549 = vmatprep.subr.bf16.mxu0 0
    %550 = vmatpush1.bf16.msra.mxu0 0
    %551 = vmatprep.subr.bf16.mxu0 0
    %552 = vmatpush1.bf16.msra.mxu0 0
    %553 = vmatprep.subr.bf16.mxu0 0
    %554 = vmatpush1.bf16.msra.mxu0 0
    %555 = vmatprep.subr.bf16.mxu0 0
    %556 = vmatpush1.bf16.msra.mxu0 0
    %557 = vmatprep.subr.bf16.mxu0 0
    %558 = vmatpush1.bf16.msra.mxu0 0
    %559 = vmatprep.subr.bf16.mxu0 0
    %560 = vmatpush1.bf16.msra.mxu0 0
    %561 = vmatprep.subr.bf16.mxu0 0
    %562 = vmatpush1.bf16.msra.mxu0 0
    %563 = vmatprep.subr.bf16.mxu0 0
    %564 = vmatpush1.bf16.msra.mxu0 0
    %565 = vmatprep.subr.bf16.mxu0 0
    %566 = vmatpush1.bf16.msra.mxu0 0
    %567 = vmatprep.subr.bf16.mxu0 0
    %568 = vmatpush1.bf16.msra.mxu0 0
    %569 = vmatprep.subr.bf16.mxu0 0
    %570 = vmatpush1.bf16.msra.mxu0 0
    %571 = vmatprep.mubr.bf16.mxu0 0
    %572 = vmatmul.mubr.bf16.gmra.mrb[0].mxu0 %v132
    %v573 = vpop.f32.mrb[0].mxu0
    %v574 = vadd.f32 0.0, %v573
    %v575 = vpop.f32.mrb[0].mxu0
    %v576 = vpop.f32.mrb[0].mxu0
    %v577 = vadd.f32 0.0, %v576
    %v578 = vpop.f32.mrb[0].mxu0
    %579 = vdwg.mxu0
    %s580 = scalar_lea.vmem %s2, 16
    %v581 = vld [vmem:[%s580] sm:$0xf]
    %v582 = vld [vmem:[%s580 + $0x4] sm:$0xf]
    %v583 = vld [vmem:[%s580 + $0x8] sm:$0xf]
    %v584 = vld [vmem:[%s580 + $0xc] sm:$0xf]
    %v589 = vunpack.c.l.b16 %v581
    %v590 = vunpack.c.l.b16 %v582
    %v591 = vunpack.c.l.b16 %v583
    %v592 = vunpack.c.l.b16 %v584
    %v593 = vpack.c.b16 %v590, %v589
    %v594 = vpack.c.b16 %v592, %v591
    %597 = vmatprep.subr.bf16.mxu0 0
    %598 = vmatpush1.bf16.msra.mxu0 %v593
    %599 = vmatprep.subr.bf16.mxu0 0
    %600 = vmatpush1.bf16.msra.mxu0 %v594
    %601 = vmatprep.subr.bf16.mxu0 0
    %602 = vmatpush1.bf16.msra.mxu0 0
    %603 = vmatprep.subr.bf16.mxu0 0
    %604 = vmatpush1.bf16.msra.mxu0 0
    %605 = vmatprep.subr.bf16.mxu0 0
    %606 = vmatpush1.bf16.msra.mxu0 0
    %607 = vmatprep.subr.bf16.mxu0 0
    %608 = vmatpush1.bf16.msra.mxu0 0
    %609 = vmatprep.subr.bf16.mxu0 0
    %610 = vmatpush1.bf16.msra.mxu0 0
    %611 = vmatprep.subr.bf16.mxu0 0
    %612 = vmatpush1.bf16.msra.mxu0 0
    %613 = vmatprep.subr.bf16.mxu0 0
    %614 = vmatpush1.bf16.msra.mxu0 0
    %615 = vmatprep.subr.bf16.mxu0 0
    %616 = vmatpush1.bf16.msra.mxu0 0
    %617 = vmatprep.subr.bf16.mxu0 0
    %618 = vmatpush1.bf16.msra.mxu0 0
    %619 = vmatprep.subr.bf16.mxu0 0
    %620 = vmatpush1.bf16.msra.mxu0 0
    %621 = vmatprep.subr.bf16.mxu0 0
    %622 = vmatpush1.bf16.msra.mxu0 0
    %623 = vmatprep.subr.bf16.mxu0 0
    %624 = vmatpush1.bf16.msra.mxu0 0
    %625 = vmatprep.subr.bf16.mxu0 0
    %626 = vmatpush1.bf16.msra.mxu0 0
    %627 = vmatprep.subr.bf16.mxu0 0
    %628 = vmatpush1.bf16.msra.mxu0 0
    %629 = vmatprep.mubr.bf16.mxu0 0
    %630 = vmatmul.mubr.bf16.gmra.mrb[0].mxu0 %v132
    %v631 = vpop.f32.mrb[0].mxu0
    %v632 = vadd.f32 0.0, %v631
    %v633 = vpop.f32.mrb[0].mxu0
    %v634 = vpop.f32.mrb[0].mxu0
    %v635 = vadd.f32 0.0, %v634
    %v636 = vpop.f32.mrb[0].mxu0
    %637 = vdwg.mxu0
    %s638 = scalar_lea.vmem [#allocation2], 16
    %v639 = vld [vmem:[%s638] sm:$0xf]
    %v640 = vld [vmem:[%s638 + $0x4] sm:$0xf]
    %v641 = vld [vmem:[%s638 + $0x8] sm:$0xf]
    %v642 = vld [vmem:[%s638 + $0xc] sm:$0xf]
    %v647 = vunpack.c.l.b16 %v639
    %v648 = vunpack.c.l.b16 %v640
    %v649 = vunpack.c.l.b16 %v641
    %v650 = vunpack.c.l.b16 %v642
    %v651 = vpack.c.b16 %v648, %v647
    %v652 = vpack.c.b16 %v650, %v649
    %655 = vmatprep.subr.bf16.mxu0 0
    %656 = vmatpush1.bf16.msra.mxu0 %v651
    %657 = vmatprep.subr.bf16.mxu0 0
    %658 = vmatpush1.bf16.msra.mxu0 %v652
    %659 = vmatprep.subr.bf16.mxu0 0
    %660 = vmatpush1.bf16.msra.mxu0 0
    %661 = vmatprep.subr.bf16.mxu0 0
    %662 = vmatpush1.bf16.msra.mxu0 0
    %663 = vmatprep.subr.bf16.mxu0 0
    %664 = vmatpush1.bf16.msra.mxu0 0
    %665 = vmatprep.subr.bf16.mxu0 0
    %666 = vmatpush1.bf16.msra.mxu0 0
    %667 = vmatprep.subr.bf16.mxu0 0
    %668 = vmatpush1.bf16.msra.mxu0 0
    %669 = vmatprep.subr.bf16.mxu0 0
    %670 = vmatpush1.bf16.msra.mxu0 0
    %671 = vmatprep.subr.bf16.mxu0 0
    %672 = vmatpush1.bf16.msra.mxu0 0
    %673 = vmatprep.subr.bf16.mxu0 0
    %674 = vmatpush1.bf16.msra.mxu0 0
    %675 = vmatprep.subr.bf16.mxu0 0
    %676 = vmatpush1.bf16.msra.mxu0 0
    %677 = vmatprep.subr.bf16.mxu0 0
    %678 = vmatpush1.bf16.msra.mxu0 0
    %679 = vmatprep.subr.bf16.mxu0 0
    %680 = vmatpush1.bf16.msra.mxu0 0
    %681 = vmatprep.subr.bf16.mxu0 0
    %682 = vmatpush1.bf16.msra.mxu0 0
    %683 = vmatprep.subr.bf16.mxu0 0
    %684 = vmatpush1.bf16.msra.mxu0 0
    %685 = vmatprep.subr.bf16.mxu0 0
    %686 = vmatpush1.bf16.msra.mxu0 0
    %687 = vmatprep.mubr.bf16.mxu0 0
    %688 = vmatmul.mubr.bf16.gmra.mrb[0].mxu0 %v132
    %v689 = vpop.f32.mrb[0].mxu0
    %v690 = vadd.f32 0.0, %v689
    %v691 = vpop.f32.mrb[0].mxu0
    %v692 = vpop.f32.mrb[0].mxu0
    %v693 = vadd.f32 0.0, %v692
    %v694 = vpop.f32.mrb[0].mxu0
    %695 = vdwg.mxu0
    %v696 = vpack.c.bf16 %v577, %v574
    %v698 = vunpack.c.l.b16 %v696
    %v699 = vunpack.c.h.b16 %v696
    %v700 = vpack.c.b16 %v698, %v698
    %v701 = vpack.c.b16 %v699, %v699
    %v702 = vpack.c.bf16 %v635, %v632
    %v704 = vunpack.c.l.b16 %v702
    %v705 = vunpack.c.h.b16 %v702
    %v706 = vpack.c.b16 %v704, %v704
    %v707 = vpack.c.b16 %v705, %v705
    %v708 = vpack.c.bf16 %v693, %v690
    %v710 = vunpack.c.l.b16 %v708
    %v711 = vunpack.c.h.b16 %v708
    %v712 = vpack.c.b16 %v710, %v710
    %v713 = vpack.c.b16 %v711, %v711
    %v715 = vsel %vm130, %v700, 0
    %v718 = vsel %vm130, %v706, 0
    %720 = vmatprep.subr.bf16.mxu0 0
    %721 = vmatpush1.bf16.xpose.msra.mxu0 %v718
    %722 = vmatprep.subr.bf16.mxu0 0
    %723 = vmatpush1.bf16.xpose.msra.mxu0 0
    %724 = vmatprep.subr.bf16.mxu0 0
    %725 = vmatpush1.bf16.xpose.msra.mxu0 0
    %726 = vmatprep.subr.bf16.mxu0 0
    %727 = vmatpush1.bf16.xpose.msra.mxu0 0
    %728 = vmatprep.subr.bf16.mxu0 0
    %729 = vmatpush1.bf16.xpose.msra.mxu0 0
    %730 = vmatprep.subr.bf16.mxu0 0
    %731 = vmatpush1.bf16.xpose.msra.mxu0 0
    %732 = vmatprep.subr.bf16.mxu0 0
    %733 = vmatpush1.bf16.xpose.msra.mxu0 0
    %734 = vmatprep.subr.bf16.mxu0 0
    %735 = vmatpush1.bf16.xpose.msra.mxu0 0
    %736 = vmatprep.subr.bf16.mxu0 0
    %737 = vmatpush1.bf16.xpose.msra.mxu0 0
    %738 = vmatprep.subr.bf16.mxu0 0
    %739 = vmatpush1.bf16.xpose.msra.mxu0 0
    %740 = vmatprep.subr.bf16.mxu0 0
    %741 = vmatpush1.bf16.xpose.msra.mxu0 0
    %742 = vmatprep.subr.bf16.mxu0 0
    %743 = vmatpush1.bf16.xpose.msra.mxu0 0
    %744 = vmatprep.subr.bf16.mxu0 0
    %745 = vmatpush1.bf16.xpose.msra.mxu0 0
    %746 = vmatprep.subr.bf16.mxu0 0
    %747 = vmatpush1.bf16.xpose.msra.mxu0 0
    %748 = vmatprep.subr.bf16.mxu0 0
    %749 = vmatpush1.bf16.xpose.msra.mxu0 0
    %750 = vmatprep.subr.bf16.mxu0 0
    %751 = vmatpush1.bf16.xpose.msra.mxu0 0
    %752 = vmatprep.mubr.bf16.mxu0 0
    %753 = vmatmul.mubr.bf16.gmra.mrb[0].mxu0 %v715
    %v754 = vpop.f32.mrb[0].mxu0
    %v755 = vadd.f32 0.0, %v754
    %v756 = vpop.f32.mrb[0].mxu0
    %v757 = vpop.f32.mrb[0].mxu0
    %v758 = vpop.f32.mrb[0].mxu0
    %759 = vdwg.mxu0
    %v761 = vsel %vm130, %v701, 0
    %v764 = vsel %vm130, %v707, 0
    %766 = vmatprep.subr.bf16.mxu0 0
    %767 = vmatpush1.bf16.xpose.msra.mxu0 %v764
    %768 = vmatprep.subr.bf16.mxu0 0
    %769 = vmatpush1.bf16.xpose.msra.mxu0 0
    %770 = vmatprep.subr.bf16.mxu0 0
    %771 = vmatpush1.bf16.xpose.msra.mxu0 0
    %772 = vmatprep.subr.bf16.mxu0 0
    %773 = vmatpush1.bf16.xpose.msra.mxu0 0
    %774 = vmatprep.subr.bf16.mxu0 0
    %775 = vmatpush1.bf16.xpose.msra.mxu0 0
    %776 = vmatprep.subr.bf16.mxu0 0
    %777 = vmatpush1.bf16.xpose.msra.mxu0 0
    %778 = vmatprep.subr.bf16.mxu0 0
    %779 = vmatpush1.bf16.xpose.msra.mxu0 0
    %780 = vmatprep.subr.bf16.mxu0 0
    %781 = vmatpush1.bf16.xpose.msra.mxu0 0
    %782 = vmatprep.subr.bf16.mxu0 0
    %783 = vmatpush1.bf16.xpose.msra.mxu0 0
    %784 = vmatprep.subr.bf16.mxu0 0
    %785 = vmatpush1.bf16.xpose.msra.mxu0 0
    %786 = vmatprep.subr.bf16.mxu0 0
    %787 = vmatpush1.bf16.xpose.msra.mxu0 0
    %788 = vmatprep.subr.bf16.mxu0 0
    %789 = vmatpush1.bf16.xpose.msra.mxu0 0
    %790 = vmatprep.subr.bf16.mxu0 0
    %791 = vmatpush1.bf16.xpose.msra.mxu0 0
    %792 = vmatprep.subr.bf16.mxu0 0
    %793 = vmatpush1.bf16.xpose.msra.mxu0 0
    %794 = vmatprep.subr.bf16.mxu0 0
    %795 = vmatpush1.bf16.xpose.msra.mxu0 0
    %796 = vmatprep.subr.bf16.mxu0 0
    %797 = vmatpush1.bf16.xpose.msra.mxu0 0
    %798 = vmatprep.mubr.bf16.mxu0 0
    %799 = vmatmul.mubr.bf16.gmra.mrb[0].mxu0 %v761
    %v800 = vpop.f32.mrb[0].mxu0
    %v801 = vadd.f32 0.0, %v800
    %v802 = vpop.f32.mrb[0].mxu0
    %v803 = vpop.f32.mrb[0].mxu0
    %v804 = vpop.f32.mrb[0].mxu0
    %805 = vdwg.mxu0
    %v806 = vsel %vm399, %v755, -inf
    %807 = vmax.xlane.f32.xlu0 %v806
    %v808 = vpop.xlane.xlu0 %807
    %v809 = vsel %vm399, %v801, -inf
    %810 = vmax.xlane.f32.xlu0 %v809
    %v811 = vpop.xlane.xlu0 %810
    %v812 = vsub.f32 %v755, %v808
    %v813 = vsub.f32 %v801, %v811
    %v814 = vmul.f32 %v812, 1.442695
    %v815 = vpow.pop %v814
    %v816 = vmul.f32 %v813, 1.442695
    %v817 = vpow.pop %v816
    %v818 = vsel %vm399, %v815, 0.0
    %819 = vadd.xlane.f32.xlu0 %v818
    %v820 = vpop.xlane.xlu0 %819
    %v821 = vsel %vm399, %v817, 0.0
    %822 = vadd.xlane.f32.xlu0 %v821
    %v823 = vpop.xlane.xlu0 %822
    %v824 = vrcp.pop %v820
    %v825 = vrcp.pop %v823
    %v826 = vmul.f32 %v815, %v824
    %v827 = vmul.f32 %v817, %v825
    %v828 = vpack.c.bf16 %v826, %v826
    %v829 = vpack.c.bf16 %v827, %v827
    %v831 = vsel %vm399, %v828, 0
    %v834 = vsel %vm427, %v712, 0
    %836 = vmatprep.subr.bf16.mxu0 0
    %837 = vmatpush1.bf16.msra.mxu0 %v834
    %838 = vmatprep.subr.bf16.mxu0 0
    %839 = vmatpush1.bf16.msra.mxu0 0
    %840 = vmatprep.subr.bf16.mxu0 0
    %841 = vmatpush1.bf16.msra.mxu0 0
    %842 = vmatprep.subr.bf16.mxu0 0
    %843 = vmatpush1.bf16.msra.mxu0 0
    %844 = vmatprep.subr.bf16.mxu0 0
    %845 = vmatpush1.bf16.msra.mxu0 0
    %846 = vmatprep.subr.bf16.mxu0 0
    %847 = vmatpush1.bf16.msra.mxu0 0
    %848 = vmatprep.subr.bf16.mxu0 0
    %849 = vmatpush1.bf16.msra.mxu0 0
    %850 = vmatprep.subr.bf16.mxu0 0
    %851 = vmatpush1.bf16.msra.mxu0 0
    %852 = vmatprep.subr.bf16.mxu0 0
    %853 = vmatpush1.bf16.msra.mxu0 0
    %854 = vmatprep.subr.bf16.mxu0 0
    %855 = vmatpush1.bf16.msra.mxu0 0
    %856 = vmatprep.subr.bf16.mxu0 0
    %857 = vmatpush1.bf16.msra.mxu0 0
    %858 = vmatprep.subr.bf16.mxu0 0
    %859 = vmatpush1.bf16.msra.mxu0 0
    %860 = vmatprep.subr.bf16.mxu0 0
    %861 = vmatpush1.bf16.msra.mxu0 0
    %862 = vmatprep.subr.bf16.mxu0 0
    %863 = vmatpush1.bf16.msra.mxu0 0
    %864 = vmatprep.subr.bf16.mxu0 0
    %865 = vmatpush1.bf16.msra.mxu0 0
    %866 = vmatprep.subr.bf16.mxu0 0
    %867 = vmatpush1.bf16.msra.mxu0 0
    %868 = vmatprep.mubr.bf16.mxu0 0
    %869 = vmatmul.mubr.bf16.gmra.mrb[0].mxu0 %v831
    %v870 = vpop.f32.mrb[0].mxu0
    %v871 = vadd.f32 0.0, %v870
    %v872 = vpop.f32.mrb[0].mxu0
    %v873 = vpop.f32.mrb[0].mxu0
    %v874 = vpop.f32.mrb[0].mxu0
    %875 = vdwg.mxu0
    %v877 = vsel %vm399, %v829, 0
    %v880 = vsel %vm427, %v713, 0
    %882 = vmatprep.subr.bf16.mxu0 0
    %883 = vmatpush1.bf16.msra.mxu0 %v880
    %884 = vmatprep.subr.bf16.mxu0 0
    %885 = vmatpush1.bf16.msra.mxu0 0
    %886 = vmatprep.subr.bf16.mxu0 0
    %887 = vmatpush1.bf16.msra.mxu0 0
    %888 = vmatprep.subr.bf16.mxu0 0
    %889 = vmatpush1.bf16.msra.mxu0 0
    %890 = vmatprep.subr.bf16.mxu0 0
    %891 = vmatpush1.bf16.msra.mxu0 0
    %892 = vmatprep.subr.bf16.mxu0 0
    %893 = vmatpush1.bf16.msra.mxu0 0
    %894 = vmatprep.subr.bf16.mxu0 0
    %895 = vmatpush1.bf16.msra.mxu0 0
    %896 = vmatprep.subr.bf16.mxu0 0
    %897 = vmatpush1.bf16.msra.mxu0 0
    %898 = vmatprep.subr.bf16.mxu0 0
    %899 = vmatpush1.bf16.msra.mxu0 0
    %900 = vmatprep.subr.bf16.mxu0 0
    %901 = vmatpush1.bf16.msra.mxu0 0
    %902 = vmatprep.subr.bf16.mxu0 0
    %903 = vmatpush1.bf16.msra.mxu0 0
    %904 = vmatprep.subr.bf16.mxu0 0
    %905 = vmatpush1.bf16.msra.mxu0 0
    %906 = vmatprep.subr.bf16.mxu0 0
    %907 = vmatpush1.bf16.msra.mxu0 0
    %908 = vmatprep.subr.bf16.mxu0 0
    %909 = vmatpush1.bf16.msra.mxu0 0
    %910 = vmatprep.subr.bf16.mxu0 0
    %911 = vmatpush1.bf16.msra.mxu0 0
    %912 = vmatprep.subr.bf16.mxu0 0
    %913 = vmatpush1.bf16.msra.mxu0 0
    %914 = vmatprep.mubr.bf16.mxu0 0
    %915 = vmatmul.mubr.bf16.gmra.mrb[0].mxu0 %v877
    %v916 = vpop.f32.mrb[0].mxu0
    %v917 = vadd.f32 0.0, %v916
    %v918 = vpop.f32.mrb[0].mxu0
    %v919 = vpop.f32.mrb[0].mxu0
    %v920 = vpop.f32.mrb[0].mxu0
    %921 = vdwg.mxu0
    %v922 = vpack.c.bf16 %v917, %v871
    %s923 = scalar_lea.vmem [#allocation5], 16
    %v924 = vld [vmem:[%s923] sm:$0xf]
    %v925 = vld [vmem:[%s923 + $0x4] sm:$0xf]
    %v926 = vld [vmem:[%s923 + $0x8] sm:$0xf]
    %v927 = vld [vmem:[%s923 + $0xc] sm:$0xf]
    %v932 = vunpack.c.l.b16 %v924
    %v933 = vunpack.c.l.b16 %v925
    %v934 = vunpack.c.l.b16 %v926
    %v935 = vunpack.c.l.b16 %v927
    %v936 = vpack.c.b16 %v933, %v932
    %v937 = vpack.c.b16 %v935, %v934
    %v941 = vsel %vm130, %v922, 0
    %943 = vmatprep.subr.bf16.mxu0 0
    %944 = vmatpush1.bf16.msra.mxu0 %v936
    %945 = vmatprep.subr.bf16.mxu0 0
    %946 = vmatpush1.bf16.msra.mxu0 %v937
    %947 = vmatprep.subr.bf16.mxu0 0
    %948 = vmatpush1.bf16.msra.mxu0 0
    %949 = vmatprep.subr.bf16.mxu0 0
    %950 = vmatpush1.bf16.msra.mxu0 0
    %951 = vmatprep.subr.bf16.mxu0 0
    %952 = vmatpush1.bf16.msra.mxu0 0
    %953 = vmatprep.subr.bf16.mxu0 0
    %954 = vmatpush1.bf16.msra.mxu0 0
    %955 = vmatprep.subr.bf16.mxu0 0
    %956 = vmatpush1.bf16.msra.mxu0 0
    %957 = vmatprep.subr.bf16.mxu0 0
    %958 = vmatpush1.bf16.msra.mxu0 0
    %959 = vmatprep.subr.bf16.mxu0 0
    %960 = vmatpush1.bf16.msra.mxu0 0
    %961 = vmatprep.subr.bf16.mxu0 0
    %962 = vmatpush1.bf16.msra.mxu0 0
    %963 = vmatprep.subr.bf16.mxu0 0
    %964 = vmatpush1.bf16.msra.mxu0 0
    %965 = vmatprep.subr.bf16.mxu0 0
    %966 = vmatpush1.bf16.msra.mxu0 0
    %967 = vmatprep.subr.bf16.mxu0 0
    %968 = vmatpush1.bf16.msra.mxu0 0
    %969 = vmatprep.subr.bf16.mxu0 0
    %970 = vmatpush1.bf16.msra.mxu0 0
    %971 = vmatprep.subr.bf16.mxu0 0
    %972 = vmatpush1.bf16.msra.mxu0 0
    %973 = vmatprep.subr.bf16.mxu0 0
    %974 = vmatpush1.bf16.msra.mxu0 0
    %975 = vmatprep.mubr.bf16.mxu0 0
    %976 = vmatmul.mubr.bf16.gmra.mrb[0].mxu0 %v941
    %v977 = vpop.f32.mrb[0].mxu0
    %v978 = vadd.f32 0.0, %v977
    %v979 = vpop.f32.mrb[0].mxu0
    %v980 = vpop.f32.mrb[0].mxu0
    %v981 = vadd.f32 0.0, %v980
    %v982 = vpop.f32.mrb[0].mxu0
    %983 = vdwg.mxu0
    %v988 = vunpack.c.l.b16 %v518
    %v989 = vunpack.c.l.b16 %v519
    %v990 = vunpack.c.l.b16 %v520
    %v991 = vunpack.c.l.b16 %v521
    %v992 = vpack.c.b16 %v989, %v988
    %v993 = vpack.c.b16 %v991, %v990
    %v997 = vsel %vm130, %v517, 0
    %999 = vmatprep.subr.bf16.mxu0 0
    %1000 = vmatpush1.bf16.msra.mxu0 %v992
    %1001 = vmatprep.subr.bf16.mxu0 0
    %1002 = vmatpush1.bf16.msra.mxu0 %v993
    %1003 = vmatprep.subr.bf16.mxu0 0
    %1004 = vmatpush1.bf16.msra.mxu0 0
    %1005 = vmatprep.subr.bf16.mxu0 0
    %1006 = vmatpush1.bf16.msra.mxu0 0
    %1007 = vmatprep.subr.bf16.mxu0 0
    %1008 = vmatpush1.bf16.msra.mxu0 0
    %1009 = vmatprep.subr.bf16.mxu0 0
    %1010 = vmatpush1.bf16.msra.mxu0 0
    %1011 = vmatprep.subr.bf16.mxu0 0
    %1012 = vmatpush1.bf16.msra.mxu0 0
    %1013 = vmatprep.subr.bf16.mxu0 0
    %1014 = vmatpush1.bf16.msra.mxu0 0
    %1015 = vmatprep.subr.bf16.mxu0 0
    %1016 = vmatpush1.bf16.msra.mxu0 0
    %1017 = vmatprep.subr.bf16.mxu0 0
    %1018 = vmatpush1.bf16.msra.mxu0 0
    %1019 = vmatprep.subr.bf16.mxu0 0
    %1020 = vmatpush1.bf16.msra.mxu0 0
    %1021 = vmatprep.subr.bf16.mxu0 0
    %1022 = vmatpush1.bf16.msra.mxu0 0
    %1023 = vmatprep.subr.bf16.mxu0 0
    %1024 = vmatpush1.bf16.msra.mxu0 0
    %1025 = vmatprep.subr.bf16.mxu0 0
    %1026 = vmatpush1.bf16.msra.mxu0 0
    %1027 = vmatprep.subr.bf16.mxu0 0
    %1028 = vmatpush1.bf16.msra.mxu0 0
    %1029 = vmatprep.subr.bf16.mxu0 0
    %1030 = vmatpush1.bf16.msra.mxu0 0
    %1031 = vmatprep.mubr.bf16.mxu0 0
    %1032 = vmatmul.mubr.bf16.gmra.mrb[0].mxu0 %v997
    %v1033 = vpop.f32.mrb[0].mxu0
    %v1034 = vadd.f32 %v978, %v1033
    %v1035 = vpop.f32.mrb[0].mxu0
    %v1036 = vpop.f32.mrb[0].mxu0
    %v1037 = vadd.f32 %v981, %v1036
    %v1038 = vpop.f32.mrb[0].mxu0
    %1039 = vdwg.mxu0
    %v1040 = vld [vmem:[%s5] sm:$0x1]
    %v1042 = vlaneseq
    %v1043 = vshrl.u32 %v1042, 7
    %v1044 = vsub.s32 0, %v1043
    %v1045 = vrot.slane %v1040, %v1044
    %v1047 = vadd.f32 %v1034, %v1045
    %v1048 = vadd.f32 %v1037, %v1045
    %v1049 = vpack.c.bf16 %v1048, %v1047
    %v1050 = vld [vmem:[%s10] sm:$0xf]
    %v1051 = vld [vmem:[%s10 + $0x4] sm:$0xf]
    %v1052 = vld [vmem:[%s10 + $0x8] sm:$0xf]
    %v1053 = vld [vmem:[%s10 + $0xc] sm:$0xf]
    %v1054 = vld [vmem:[%s11] sm:$0x1]
    %v1056 = vlaneseq
    %v1057 = vshrl.u32 %v1056, 7
    %v1058 = vsub.s32 0, %v1057
    %v1059 = vrot.slane %v1054, %v1058
    %v1065 = vunpack.c.l.b16 %v1050
    %v1066 = vunpack.c.l.b16 %v1051
    %v1067 = vunpack.c.l.b16 %v1052
    %v1068 = vunpack.c.l.b16 %v1053
    %v1069 = vpack.c.b16 %v1066, %v1065
    %v1070 = vpack.c.b16 %v1068, %v1067
    %v1074 = vsel %vm130, %v1049, 0
    %1076 = vmatprep.subr.bf16.mxu0 0
    %1077 = vmatpush1.bf16.msra.mxu0 %v1069
    %1078 = vmatprep.subr.bf16.mxu0 0
    %1079 = vmatpush1.bf16.msra.mxu0 %v1070
    %1080 = vmatprep.subr.bf16.mxu0 0
    %1081 = vmatpush1.bf16.msra.mxu0 0
    %1082 = vmatprep.subr.bf16.mxu0 0
    %1083 = vmatpush1.bf16.msra.mxu0 0
    %1084 = vmatprep.subr.bf16.mxu0 0
    %1085 = vmatpush1.bf16.msra.mxu0 0
    %1086 = vmatprep.subr.bf16.mxu0 0
    %1087 = vmatpush1.bf16.msra.mxu0 0
    %1088 = vmatprep.subr.bf16.mxu0 0
    %1089 = vmatpush1.bf16.msra.mxu0 0
    %1090 = vmatprep.subr.bf16.mxu0 0
    %1091 = vmatpush1.bf16.msra.mxu0 0
    %1092 = vmatprep.subr.bf16.mxu0 0
    %1093 = vmatpush1.bf16.msra.mxu0 0
    %1094 = vmatprep.subr.bf16.mxu0 0
    %1095 = vmatpush1.bf16.msra.mxu0 0
    %1096 = vmatprep.subr.bf16.mxu0 0
    %1097 = vmatpush1.bf16.msra.mxu0 0
    %1098 = vmatprep.subr.bf16.mxu0 0
    %1099 = vmatpush1.bf16.msra.mxu0 0
    %1100 = vmatprep.subr.bf16.mxu0 0
    %1101 = vmatpush1.bf16.msra.mxu0 0
    %1102 = vmatprep.subr.bf16.mxu0 0
    %1103 = vmatpush1.bf16.msra.mxu0 0
    %1104 = vmatprep.subr.bf16.mxu0 0
    %1105 = vmatpush1.bf16.msra.mxu0 0
    %1106 = vmatprep.subr.bf16.mxu0 0
    %1107 = vmatpush1.bf16.msra.mxu0 0
    %1108 = vmatprep.mubr.bf16.mxu0 0
    %1109 = vmatmul.mubr.bf16.gmra.mrb[0].mxu0 %v1074
    %v1110 = vpop.f32.mrb[0].mxu0
    %v1111 = vadd.f32 %v1059, %v1110
    %v1112 = vpop.f32.mrb[0].mxu0
    %v1113 = vpop.f32.mrb[0].mxu0
    %v1114 = vadd.f32 %v1059, %v1113
    %v1115 = vpop.f32.mrb[0].mxu0
    %1116 = vdwg.mxu0
    %v1117 = vmax.f32 %v1111, 0.0
    %v1118 = vmax.f32 %v1114, 0.0
    %v1119 = vpack.c.bf16 %v1118, %v1117
    %v1120 = vld [vmem:[%s12] sm:$0xf]
    %v1121 = vld [vmem:[%s12 + $0x4] sm:$0xf]
    %v1122 = vld [vmem:[%s12 + $0x8] sm:$0xf]
    %v1123 = vld [vmem:[%s12 + $0xc] sm:$0xf]
    %v1124 = vld [vmem:[%s12 + $0x10] sm:$0xf]
    %v1125 = vld [vmem:[%s12 + $0x14] sm:$0xf]
    %v1126 = vld [vmem:[%s12 + $0x18] sm:$0xf]
    %v1127 = vld [vmem:[%s12 + $0x1c] sm:$0xf]
    %v1128 = vld [vmem:[%s12 + $0x20] sm:$0xf]
    %v1129 = vld [vmem:[%s12 + $0x24] sm:$0xf]
    %v1130 = vld [vmem:[%s12 + $0x28] sm:$0xf]
    %v1131 = vld [vmem:[%s12 + $0x2c] sm:$0xf]
    %v1132 = vld [vmem:[%s12 + $0x30] sm:$0xf]
    %v1133 = vld [vmem:[%s12 + $0x34] sm:$0xf]
    %v1134 = vld [vmem:[%s12 + $0x38] sm:$0xf]
    %v1135 = vld [vmem:[%s12 + $0x3c] sm:$0xf]
    %v1136 = vld [vmem:[%s13] sm:$0x1]
    %v1138 = vlaneseq
    %v1139 = vshrl.u32 %v1138, 7
    %v1140 = vsub.s32 0, %v1139
    %v1141 = vrot.slane %v1136, %v1140
    %v1159 = vunpack.c.l.b16 %v1120
    %v1160 = vunpack.c.l.b16 %v1121
    %v1161 = vunpack.c.l.b16 %v1122
    %v1162 = vunpack.c.l.b16 %v1123
    %v1163 = vunpack.c.l.b16 %v1124
    %v1164 = vunpack.c.l.b16 %v1125
    %v1165 = vunpack.c.l.b16 %v1126
    %v1166 = vunpack.c.l.b16 %v1127
    %v1167 = vunpack.c.l.b16 %v1128
    %v1168 = vunpack.c.l.b16 %v1129
    %v1169 = vunpack.c.l.b16 %v1130
    %v1170 = vunpack.c.l.b16 %v1131
    %v1171 = vunpack.c.l.b16 %v1132
    %v1172 = vunpack.c.l.b16 %v1133
    %v1173 = vunpack.c.l.b16 %v1134
    %v1174 = vunpack.c.l.b16 %v1135
    %v1175 = vpack.c.b16 %v1160, %v1159
    %v1176 = vpack.c.b16 %v1162, %v1161
    %v1177 = vpack.c.b16 %v1164, %v1163
    %v1178 = vpack.c.b16 %v1166, %v1165
    %v1179 = vpack.c.b16 %v1168, %v1167
    %v1180 = vpack.c.b16 %v1170, %v1169
    %v1181 = vpack.c.b16 %v1172, %v1171
    %v1182 = vpack.c.b16 %v1174, %v1173
    %1191 = vmatprep.subr.bf16.mxu0 0
    %1192 = vmatpush1.bf16.msra.mxu0 %v1175
    %1193 = vmatprep.subr.bf16.mxu0 0
    %1194 = vmatpush1.bf16.msra.mxu0 %v1176
    %1195 = vmatprep.subr.bf16.mxu0 0
    %1196 = vmatpush1.bf16.msra.mxu0 %v1177
    %1197 = vmatprep.subr.bf16.mxu0 0
    %1198 = vmatpush1.bf16.msra.mxu0 %v1178
    %1199 = vmatprep.subr.bf16.mxu0 0
    %1200 = vmatpush1.bf16.msra.mxu0 %v1179
    %1201 = vmatprep.subr.bf16.mxu0 0
    %1202 = vmatpush1.bf16.msra.mxu0 %v1180
    %1203 = vmatprep.subr.bf16.mxu0 0
    %1204 = vmatpush1.bf16.msra.mxu0 %v1181
    %1205 = vmatprep.subr.bf16.mxu0 0
    %1206 = vmatpush1.bf16.msra.mxu0 %v1182
    %1207 = vmatprep.subr.bf16.mxu0 0
    %1208 = vmatpush1.bf16.msra.mxu0 0
    %1209 = vmatprep.subr.bf16.mxu0 0
    %1210 = vmatpush1.bf16.msra.mxu0 0
    %1211 = vmatprep.subr.bf16.mxu0 0
    %1212 = vmatpush1.bf16.msra.mxu0 0
    %1213 = vmatprep.subr.bf16.mxu0 0
    %1214 = vmatpush1.bf16.msra.mxu0 0
    %1215 = vmatprep.subr.bf16.mxu0 0
    %1216 = vmatpush1.bf16.msra.mxu0 0
    %1217 = vmatprep.subr.bf16.mxu0 0
    %1218 = vmatpush1.bf16.msra.mxu0 0
    %1219 = vmatprep.subr.bf16.mxu0 0
    %1220 = vmatpush1.bf16.msra.mxu0 0
    %1221 = vmatprep.subr.bf16.mxu0 0
    %1222 = vmatpush1.bf16.msra.mxu0 0
    %1223 = vmatprep.mubr.bf16.mxu0 0
    %1224 = vmatmul.mubr.bf16.gmra.mrb[0].mxu0 %v1119
    %v1225 = vpop.f32.mrb[0].mxu0
    %v1226 = vadd.f32 %v1141, %v1225
    %v1227 = vpop.f32.mrb[0].mxu0
    %v1228 = vpop.f32.mrb[0].mxu0
    %v1229 = vadd.f32 %v1141, %v1228
    %v1230 = vpop.f32.mrb[0].mxu0
    %1231 = vdwg.mxu0
    %1232 = vst.msk [vmem:[#allocation11] sm:$0xff] %vm130, %v1226
    %1233 = vst.msk [vmem:[#allocation11 + $0x8] sm:$0xff] %vm130, %v1229
    // Predicated region
    $region78: #{tpu_custom_call.1} parent=1 // pred_check
      _
    $region79: #{tpu_custom_call.1} parent=1 // pred_check_branch
      %1235 = sbr.rel (0) target = $region81
    $region80: #{tpu_custom_call.1} parent=1 // pred_region
      %s1237 = ssub.s32 256, 256
      %1238 = vsyncadd [#allocation4], %s1237
      %s1239 = sshll.u32 [#allocation11], 4
      %s1240 = int_to_ptr.vmem [resolvable:$true] %s1239
      %1245 = dma.vmem_to_hbm [thread:$0]  %s1240, 256, %s14, [#allocation4], 128, 128, 8
    $region81: #{tpu_custom_call.1} parent=1 // pred_fallthru
      _
    // Predicated region
    $region82: #{tpu_custom_call.1} parent=1 // pred_check
      _
    $region83: #{tpu_custom_call.1} parent=1 // pred_check_branch
      %1247 = sbr.rel (0) target = $region85
    $region84: #{tpu_custom_call.1} parent=1 // pred_region
      %1248 = dma.done [#allocation4], 256
    $region85: #{tpu_custom_call.1} parent=1 // pred_fallthru
      _
    %1249 = vsyncpa [#allocation3], 1
    %1250 = vsyncpa [#allocation6], 1
    %1251 = vsyncpa [#allocation9], 1
    %1252 = vsyncpa [#allocation4], 1

// kernel: tpu_custom_call.1
$region0: #{tpu_custom_call.1}
  #allocation0 [shape = 'u32[]', space=smem, size = 0x4, offset = 0x4, fixed_abs, tag = 'smem constant byte address 0x4 - core index']
  #allocation1 [shape = 'u32[144,128]{1,0:T(1,128)}', space=vmem, size = 0x12000, scoped, tag = 'internal scratch']
  %s0 = inlined_call_operand.vmem [shape: f32[2,8,32], index: 0, kind: input, shape index: {}]
  %s1 = inlined_call_operand.vmem [shape: bf16[2,32,32], index: 1, kind: input, shape index: {}]
  %s2 = inlined_call_operand.vmem [shape: bf16[2,32,32], index: 2, kind: input, shape index: {}]
  %s3 = inlined_call_operand.hbm [shape: bf16[2,32,32], index: 3, kind: input, shape index: {}]
  %s4 = inlined_call_operand.hbm [shape: bf16[2,32,32], index: 4, kind: input, shape index: {}]
  %s5 = inlined_call_operand.vmem [shape: f32[1,32], index: 5, kind: input, shape index: {}]
  %s6 = inlined_call_operand.vmem [shape: f32[1,32], index: 6, kind: input, shape index: {}]
  %s7 = inlined_call_operand.hbm [shape: f32[1,32], index: 7, kind: input, shape index: {}]
  %s8 = inlined_call_operand.hbm [shape: f32[1,32], index: 8, kind: input, shape index: {}]
  %s9 = inlined_call_operand.hbm [shape: f32[1,32], index: 9, kind: input, shape index: {}]
  %s10 = inlined_call_operand.vmem [shape: bf16[32,128], index: 10, kind: input, shape index: {}]
  %s11 = inlined_call_operand.vmem [shape: f32[1,128], index: 11, kind: input, shape index: {}]
  %s12 = inlined_call_operand.vmem [shape: bf16[128,32], index: 12, kind: input, shape index: {}]
  %s13 = inlined_call_operand.vmem [shape: f32[1,32], index: 13, kind: input, shape index: {}]
  %s14 = inlined_call_operand.hbm [shape: f32[2,8,32], index: 14, kind: output, shape index: {}]
  %s15 = sld [smem:[#allocation0]]
  $region86: #{tpu_custom_call.1} parent=0
    _
  %s17 = ssub.s32 1, %s15
  %s18 = scalar_select 0, %s17, %s15
  $region1: #{tpu_custom_call.1} parent=0
    #allocation2 [shape = 'u8[16384]{0}', space=vmem, size = 0x4000, scoped, tag = 'input window, operand 3, single buffered']
    #allocation3 [shape = 's32[1]{0}', space=sflag, size = 0x4, scoped, tag = 'scoped memory for tpu_custom_call.1']
    #allocation4 [shape = 's32[1]{0}', space=sflag, size = 0x4, scoped, tag = 'scoped memory for tpu_custom_call.1']
    #allocation5 [shape = 'u8[16384]{0}', space=vmem, size = 0x4000, scoped, tag = 'input window, operand 4, single buffered']
    #allocation6 [shape = 's32[1]{0}', space=sflag, size = 0x4, scoped, tag = 'scoped memory for tpu_custom_call.1']
    #allocation7 [shape = 'u8[512]{0}', space=vmem, size = 0x400, scoped, tag = 'input window, operand 7, single buffered']
    #allocation8 [shape = 'u8[512]{0}', space=vmem, size = 0x400, scoped, tag = 'input window, operand 8, single buffered']
    #allocation9 [shape = 's32[1]{0}', space=sflag, size = 0x4, scoped, tag = 'scoped memory for tpu_custom_call.1']
    #allocation10 [shape = 'u8[512]{0}', space=vmem, size = 0x400, scoped, tag = 'input window, operand 9, single buffered']
    #allocation11 [shape = 'u8[8192]{0}', space=vmem, size = 0x2000, scoped, tag = 'output window, operand 0, single buffered']
    %19 = vsyncpa [#allocation3], 0
    %20 = vsyncpa [#allocation6], 0
    %21 = vsyncpa [#allocation9], 0
    %22 = vsyncpa [#allocation4], 0
    // Predicated region
    $region2: #{tpu_custom_call.1} parent=1 // pred_check
      _
    $region3: #{tpu_custom_call.1} parent=1 // pred_check_branch
      %24 = sbr.rel (0) target = $region5
    $region4: #{tpu_custom_call.1} parent=1 // pred_region
      _
    $region5: #{tpu_custom_call.1} parent=1 // pred_fallthru
      _
    // Predicated region
    $region6: #{tpu_custom_call.1} parent=1 // pred_check
      _
    $region7: #{tpu_custom_call.1} parent=1 // pred_check_branch
      %26 = sbr.rel (0) target = $region9
    $region8: #{tpu_custom_call.1} parent=1 // pred_region
      _
    $region9: #{tpu_custom_call.1} parent=1 // pred_fallthru
      _
    // Predicated region
    $region10: #{tpu_custom_call.1} parent=1 // pred_check
      _
    $region11: #{tpu_custom_call.1} parent=1 // pred_check_branch
      %28 = sbr.rel (0) target = $region13
    $region12: #{tpu_custom_call.1} parent=1 // pred_region
      _
    $region13: #{tpu_custom_call.1} parent=1 // pred_fallthru
      _
    // Predicated region
    $region14: #{tpu_custom_call.1} parent=1 // pred_check
      _
    $region15: #{tpu_custom_call.1} parent=1 // pred_check_branch
      %30 = sbr.rel (0) target = $region17
    $region16: #{tpu_custom_call.1} parent=1 // pred_region
      %s32 = ssub.s32 512, 512
      %33 = vsyncadd [#allocation3], %s32
      %s34 = sshll.u32 [#allocation2], 4
      %s35 = int_to_ptr.vmem [resolvable:$true] %s34
      %40 = dma.hbm_to_vmem [thread:$0]  %s3, 512, %s35, [#allocation3], 64, 64, 4
    $region17: #{tpu_custom_call.1} parent=1 // pred_fallthru
      _
    // Predicated region
    $region18: #{tpu_custom_call.1} parent=1 // pred_check
      _
    $region19: #{tpu_custom_call.1} parent=1 // pred_check_branch
      %42 = sbr.rel (0) target = $region21
    $region20: #{tpu_custom_call.1} parent=1 // pred_region
      %s44 = ssub.s32 512, 512
      %45 = vsyncadd [#allocation6], %s44
      %s46 = sshll.u32 [#allocation5], 4
      %s47 = int_to_ptr.vmem [resolvable:$true] %s46
      %52 = dma.hbm_to_vmem [thread:$0]  %s4, 512, %s47, [#allocation6], 64, 64, 4
    $region21: #{tpu_custom_call.1} parent=1 // pred_fallthru
      _
    // Predicated region
    $region22: #{tpu_custom_call.1} parent=1 // pred_check
      _
    $region23: #{tpu_custom_call.1} parent=1 // pred_check_branch
      %54 = sbr.rel (0) target = $region25
    $region24: #{tpu_custom_call.1} parent=1 // pred_region
      _
    $region25: #{tpu_custom_call.1} parent=1 // pred_fallthru
      _
    // Predicated region
    $region26: #{tpu_custom_call.1} parent=1 // pred_check
      _
    $region27: #{tpu_custom_call.1} parent=1 // pred_check_branch
      %56 = sbr.rel (0) target = $region29
    $region28: #{tpu_custom_call.1} parent=1 // pred_region
      _
    $region29: #{tpu_custom_call.1} parent=1 // pred_fallthru
      _
    // Predicated region
    $region30: #{tpu_custom_call.1} parent=1 // pred_check
      _
    $region31: #{tpu_custom_call.1} parent=1 // pred_check_branch
      %58 = sbr.rel (0) target = $region33
    $region32: #{tpu_custom_call.1} parent=1 // pred_region
      %s60 = ssub.s32 16, 16
      %61 = vsyncadd [#allocation6], %s60
      %s63 = sshll.u32 [#allocation7], 4
      %s64 = int_to_ptr.vmem [resolvable:$true] %s63
      %66 = dma.hbm_to_vmem [thread:$0]  %s7, 16, %s64, [#allocation6]
    $region33: #{tpu_custom_call.1} parent=1 // pred_fallthru
      _
    // Predicated region
    $region34: #{tpu_custom_call.1} parent=1 // pred_check
      _
    $region35: #{tpu_custom_call.1} parent=1 // pred_check_branch
      %68 = sbr.rel (0) target = $region37
    $region36: #{tpu_custom_call.1} parent=1 // pred_region
      %s70 = ssub.s32 16, 16
      %71 = vsyncadd [#allocation9], %s70
      %s73 = sshll.u32 [#allocation8], 4
      %s74 = int_to_ptr.vmem [resolvable:$true] %s73
      %76 = dma.hbm_to_vmem [thread:$0]  %s8, 16, %s74, [#allocation9]
    $region37: #{tpu_custom_call.1} parent=1 // pred_fallthru
      _
    // Predicated region
    $region38: #{tpu_custom_call.1} parent=1 // pred_check
      _
    $region39: #{tpu_custom_call.1} parent=1 // pred_check_branch
      %78 = sbr.rel (0) target = $region41
    $region40: #{tpu_custom_call.1} parent=1 // pred_region
      %s80 = ssub.s32 16, 16
      %81 = vsyncadd [#allocation9], %s80
      %s83 = sshll.u32 [#allocation10], 4
      %s84 = int_to_ptr.vmem [resolvable:$true] %s83
      %86 = dma.hbm_to_vmem [thread:$0]  %s9, 16, %s84, [#allocation9]
    $region41: #{tpu_custom_call.1} parent=1 // pred_fallthru
      _
    // Predicated region
    $region42: #{tpu_custom_call.1} parent=1 // pred_check
      _
    $region43: #{tpu_custom_call.1} parent=1 // pred_check_branch
      %88 = sbr.rel (0) target = $region45
    $region44: #{tpu_custom_call.1} parent=1 // pred_region
      _
    $region45: #{tpu_custom_call.1} parent=1 // pred_fallthru
      _
    // Predicated region
    $region46: #{tpu_custom_call.1} parent=1 // pred_check
      _
    $region47: #{tpu_custom_call.1} parent=1 // pred_check_branch
      %90 = sbr.rel (0) target = $region49
    $region48: #{tpu_custom_call.1} parent=1 // pred_region
      _
    $region49: #{tpu_custom_call.1} parent=1 // pred_fallthru
      _
    // Predicated region
    $region50: #{tpu_custom_call.1} parent=1 // pred_check
      _
    $region51: #{tpu_custom_call.1} parent=1 // pred_check_branch
      %92 = sbr.rel (0) target = $region53
    $region52: #{tpu_custom_call.1} parent=1 // pred_region
      _
    $region53: #{tpu_custom_call.1} parent=1 // pred_fallthru
      _
    // Predicated region
    $region54: #{tpu_custom_call.1} parent=1 // pred_check
      _
    $region55: #{tpu_custom_call.1} parent=1 // pred_check_branch
      %94 = sbr.rel (0) target = $region57
    $region56: #{tpu_custom_call.1} parent=1 // pred_region
      _
    $region57: #{tpu_custom_call.1} parent=1 // pred_fallthru
      _
    // Predicated region
    $region58: #{tpu_custom_call.1} parent=1 // pred_check
      _
    $region59: #{tpu_custom_call.1} parent=1 // pred_check_branch
      %96 = sbr.rel (0) target = $region61
    $region60: #{tpu_custom_call.1} parent=1 // pred_region
      %97 = dma.done [#allocation3], 512
    $region61: #{tpu_custom_call.1} parent=1 // pred_fallthru
      _
    // Predicated region
    $region62: #{tpu_custom_call.1} parent=1 // pred_check
      _
    $region63: #{tpu_custom_call.1} parent=1 // pred_check_branch
      %99 = sbr.rel (0) target = $region65
    $region64: #{tpu_custom_call.1} parent=1 // pred_region
      %100 = dma.done [#allocation6], 512
    $region65: #{tpu_custom_call.1} parent=1 // pred_fallthru
      _
    // Predicated region
    $region66: #{tpu_custom_call.1} parent=1 // pred_check
      _
    $region67: #{tpu_custom_call.1} parent=1 // pred_check_branch
      %102 = sbr.rel (0) target = $region69
    $region68: #{tpu_custom_call.1} parent=1 // pred_region
      %103 = dma.done [#allocation6], 16
    $region69: #{tpu_custom_call.1} parent=1 // pred_fallthru
      _
    // Predicated region
    $region70: #{tpu_custom_call.1} parent=1 // pred_check
      _
    $region71: #{tpu_custom_call.1} parent=1 // pred_check_branch
      %105 = sbr.rel (0) target = $region73
    $region72: #{tpu_custom_call.1} parent=1 // pred_region
      %106 = dma.done [#allocation9], 16
    $region73: #{tpu_custom_call.1} parent=1 // pred_fallthru
      _
    // Predicated region
    $region74: #{tpu_custom_call.1} parent=1 // pred_check
      _
    $region75: #{tpu_custom_call.1} parent=1 // pred_check_branch
      %108 = sbr.rel (0) target = $region77
    $region76: #{tpu_custom_call.1} parent=1 // pred_region
      %109 = dma.done [#allocation9], 16
    $region77: #{tpu_custom_call.1} parent=1 // pred_fallthru
      _
    %v111 = vld [vmem:[%s0] sm:$0xff]
    %v112 = vld [vmem:[%s0 + $0x8] sm:$0xff]
    %v113 = vpack.c.bf16 %v112, %v111
    %v114 = vld [vmem:[%s1] sm:$0xf]
    %v115 = vld [vmem:[%s1 + $0x4] sm:$0xf]
    %v116 = vld [vmem:[%s1 + $0x8] sm:$0xf]
    %v117 = vld [vmem:[%s1 + $0xc] sm:$0xf]
    %v122 = vunpack.c.l.b16 %v114
    %v123 = vunpack.c.l.b16 %v115
    %v124 = vunpack.c.l.b16 %v116
    %v125 = vunpack.c.l.b16 %v117
    %v126 = vpack.c.b16 %v123, %v122
    %v127 = vpack.c.b16 %v125, %v124
    %vm130 = vcmask 261120
    %v132 = vsel %vm130, %v113, 0
    %134 = vmatprep.subr.bf16.mxu0 0
    %135 = vmatpush1.bf16.msra.mxu0 %v126
    %136 = vmatprep.subr.bf16.mxu0 0
    %137 = vmatpush1.bf16.msra.mxu0 %v127
    %138 = vmatprep.subr.bf16.mxu0 0
    %139 = vmatpush1.bf16.msra.mxu0 0
    %140 = vmatprep.subr.bf16.mxu0 0
    %141 = vmatpush1.bf16.msra.mxu0 0
    %142 = vmatprep.subr.bf16.mxu0 0
    %143 = vmatpush1.bf16.msra.mxu0 0
    %144 = vmatprep.subr.bf16.mxu0 0
    %145 = vmatpush1.bf16.msra.mxu0 0
    %146 = vmatprep.subr.bf16.mxu0 0
    %147 = vmatpush1.bf16.msra.mxu0 0
    %148 = vmatprep.subr.bf16.mxu0 0
    %149 = vmatpush1.bf16.msra.mxu0 0
    %150 = vmatprep.subr.bf16.mxu0 0
    %151 = vmatpush1.bf16.msra.mxu0 0
    %152 = vmatprep.subr.bf16.mxu0 0
    %153 = vmatpush1.bf16.msra.mxu0 0
    %154 = vmatprep.subr.bf16.mxu0 0
    %155 = vmatpush1.bf16.msra.mxu0 0
    %156 = vmatprep.subr.bf16.mxu0 0
    %157 = vmatpush1.bf16.msra.mxu0 0
    %158 = vmatprep.subr.bf16.mxu0 0
    %159 = vmatpush1.bf16.msra.mxu0 0
    %160 = vmatprep.subr.bf16.mxu0 0
    %161 = vmatpush1.bf16.msra.mxu0 0
    %162 = vmatprep.subr.bf16.mxu0 0
    %163 = vmatpush1.bf16.msra.mxu0 0
    %164 = vmatprep.subr.bf16.mxu0 0
    %165 = vmatpush1.bf16.msra.mxu0 0
    %166 = vmatprep.mubr.bf16.mxu0 0
    %167 = vmatmul.mubr.bf16.gmra.mrb[0].mxu0 %v132
    %v168 = vpop.f32.mrb[0].mxu0
    %v169 = vadd.f32 0.0, %v168
    %v170 = vpop.f32.mrb[0].mxu0
    %v171 = vpop.f32.mrb[0].mxu0
    %v172 = vadd.f32 0.0, %v171
    %v173 = vpop.f32.mrb[0].mxu0
    %174 = vdwg.mxu0
    %v175 = vld [vmem:[%s2] sm:$0xf]
    %v176 = vld [vmem:[%s2 + $0x4] sm:$0xf]
    %v177 = vld [vmem:[%s2 + $0x8] sm:$0xf]
    %v178 = vld [vmem:[%s2 + $0xc] sm:$0xf]
    %v183 = vunpack.c.l.b16 %v175
    %v184 = vunpack.c.l.b16 %v176
    %v185 = vunpack.c.l.b16 %v177
    %v186 = vunpack.c.l.b16 %v178
    %v187 = vpack.c.b16 %v184, %v183
    %v188 = vpack.c.b16 %v186, %v185
    %191 = vmatprep.subr.bf16.mxu0 0
    %192 = vmatpush1.bf16.msra.mxu0 %v187
    %193 = vmatprep.subr.bf16.mxu0 0
    %194 = vmatpush1.bf16.msra.mxu0 %v188
    %195 = vmatprep.subr.bf16.mxu0 0
    %196 = vmatpush1.bf16.msra.mxu0 0
    %197 = vmatprep.subr.bf16.mxu0 0
    %198 = vmatpush1.bf16.msra.mxu0 0
    %199 = vmatprep.subr.bf16.mxu0 0
    %200 = vmatpush1.bf16.msra.mxu0 0
    %201 = vmatprep.subr.bf16.mxu0 0
    %202 = vmatpush1.bf16.msra.mxu0 0
    %203 = vmatprep.subr.bf16.mxu0 0
    %204 = vmatpush1.bf16.msra.mxu0 0
    %205 = vmatprep.subr.bf16.mxu0 0
    %206 = vmatpush1.bf16.msra.mxu0 0
    %207 = vmatprep.subr.bf16.mxu0 0
    %208 = vmatpush1.bf16.msra.mxu0 0
    %209 = vmatprep.subr.bf16.mxu0 0
    %210 = vmatpush1.bf16.msra.mxu0 0
    %211 = vmatprep.subr.bf16.mxu0 0
    %212 = vmatpush1.bf16.msra.mxu0 0
    %213 = vmatprep.subr.bf16.mxu0 0
    %214 = vmatpush1.bf16.msra.mxu0 0
    %215 = vmatprep.subr.bf16.mxu0 0
    %216 = vmatpush1.bf16.msra.mxu0 0
    %217 = vmatprep.subr.bf16.mxu0 0
    %218 = vmatpush1.bf16.msra.mxu0 0
    %219 = vmatprep.subr.bf16.mxu0 0
    %220 = vmatpush1.bf16.msra.mxu0 0
    %221 = vmatprep.subr.bf16.mxu0 0
    %222 = vmatpush1.bf16.msra.mxu0 0
    %223 = vmatprep.mubr.bf16.mxu0 0
    %224 = vmatmul.mubr.bf16.gmra.mrb[0].mxu0 %v132
    %v225 = vpop.f32.mrb[0].mxu0
    %v226 = vadd.f32 0.0, %v225
    %v227 = vpop.f32.mrb[0].mxu0
    %v228 = vpop.f32.mrb[0].mxu0
    %v229 = vadd.f32 0.0, %v228
    %v230 = vpop.f32.mrb[0].mxu0
    %231 = vdwg.mxu0
    %v232 = vld [vmem:[#allocation2] sm:$0xf]
    %v233 = vld [vmem:[#allocation2 + $0x4] sm:$0xf]
    %v234 = vld [vmem:[#allocation2 + $0x8] sm:$0xf]
    %v235 = vld [vmem:[#allocation2 + $0xc] sm:$0xf]
    %v240 = vunpack.c.l.b16 %v232
    %v241 = vunpack.c.l.b16 %v233
    %v242 = vunpack.c.l.b16 %v234
    %v243 = vunpack.c.l.b16 %v235
    %v244 = vpack.c.b16 %v241, %v240
    %v245 = vpack.c.b16 %v243, %v242
    %248 = vmatprep.subr.bf16.mxu0 0
    %249 = vmatpush1.bf16.msra.mxu0 %v244
    %250 = vmatprep.subr.bf16.mxu0 0
    %251 = vmatpush1.bf16.msra.mxu0 %v245
    %252 = vmatprep.subr.bf16.mxu0 0
    %253 = vmatpush1.bf16.msra.mxu0 0
    %254 = vmatprep.subr.bf16.mxu0 0
    %255 = vmatpush1.bf16.msra.mxu0 0
    %256 = vmatprep.subr.bf16.mxu0 0
    %257 = vmatpush1.bf16.msra.mxu0 0
    %258 = vmatprep.subr.bf16.mxu0 0
    %259 = vmatpush1.bf16.msra.mxu0 0
    %260 = vmatprep.subr.bf16.mxu0 0
    %261 = vmatpush1.bf16.msra.mxu0 0
    %262 = vmatprep.subr.bf16.mxu0 0
    %263 = vmatpush1.bf16.msra.mxu0 0
    %264 = vmatprep.subr.bf16.mxu0 0
    %265 = vmatpush1.bf16.msra.mxu0 0
    %266 = vmatprep.subr.bf16.mxu0 0
    %267 = vmatpush1.bf16.msra.mxu0 0
    %268 = vmatprep.subr.bf16.mxu0 0
    %269 = vmatpush1.bf16.msra.mxu0 0
    %270 = vmatprep.subr.bf16.mxu0 0
    %271 = vmatpush1.bf16.msra.mxu0 0
    %272 = vmatprep.subr.bf16.mxu0 0
    %273 = vmatpush1.bf16.msra.mxu0 0
    %274 = vmatprep.subr.bf16.mxu0 0
    %275 = vmatpush1.bf16.msra.mxu0 0
    %276 = vmatprep.subr.bf16.mxu0 0
    %277 = vmatpush1.bf16.msra.mxu0 0
    %278 = vmatprep.subr.bf16.mxu0 0
    %279 = vmatpush1.bf16.msra.mxu0 0
    %280 = vmatprep.mubr.bf16.mxu0 0
    %281 = vmatmul.mubr.bf16.gmra.mrb[0].mxu0 %v132
    %v282 = vpop.f32.mrb[0].mxu0
    %v283 = vadd.f32 0.0, %v282
    %v284 = vpop.f32.mrb[0].mxu0
    %v285 = vpop.f32.mrb[0].mxu0
    %v286 = vadd.f32 0.0, %v285
    %v287 = vpop.f32.mrb[0].mxu0
    %288 = vdwg.mxu0
    %v289 = vpack.c.bf16 %v172, %v169
    %v291 = vunpack.c.l.b16 %v289
    %v292 = vunpack.c.h.b16 %v289
    %v293 = vpack.c.b16 %v291, %v291
    %v294 = vpack.c.b16 %v292, %v292
    %v295 = vpack.c.bf16 %v229, %v226
    %v297 = vunpack.c.l.b16 %v295
    %v298 = vunpack.c.h.b16 %v295
    %v299 = vpack.c.b16 %v297, %v297
    %v300 = vpack.c.b16 %v298, %v298
    %v301 = vpack.c.bf16 %v286, %v283
    %v303 = vunpack.c.l.b16 %v301
    %v304 = vunpack.c.h.b16 %v301
    %v305 = vpack.c.b16 %v303, %v303
    %v306 = vpack.c.b16 %v304, %v304
    %v308 = vsel %vm130, %v293, 0
    %v311 = vsel %vm130, %v299, 0
    %313 = vmatprep.subr.bf16.mxu0 0
    %314 = vmatpush1.bf16.xpose.msra.mxu0 %v311
    %315 = vmatprep.subr.bf16.mxu0 0
    %316 = vmatpush1.bf16.xpose.msra.mxu0 0
    %317 = vmatprep.subr.bf16.mxu0 0
    %318 = vmatpush1.bf16.xpose.msra.mxu0 0
    %319 = vmatprep.subr.bf16.mxu0 0
    %320 = vmatpush1.bf16.xpose.msra.mxu0 0
    %321 = vmatprep.subr.bf16.mxu0 0
    %322 = vmatpush1.bf16.xpose.msra.mxu0 0
    %323 = vmatprep.subr.bf16.mxu0 0
    %324 = vmatpush1.bf16.xpose.msra.mxu0 0
    %325 = vmatprep.subr.bf16.mxu0 0
    %326 = vmatpush1.bf16.xpose.msra.mxu0 0
    %327 = vmatprep.subr.bf16.mxu0 0
    %328 = vmatpush1.bf16.xpose.msra.mxu0 0
    %329 = vmatprep.subr.bf16.mxu0 0
    %330 = vmatpush1.bf16.xpose.msra.mxu0 0
    %331 = vmatprep.subr.bf16.mxu0 0
    %332 = vmatpush1.bf16.xpose.msra.mxu0 0
    %333 = vmatprep.subr.bf16.mxu0 0
    %334 = vmatpush1.bf16.xpose.msra.mxu0 0
    %335 = vmatprep.subr.bf16.mxu0 0
    %336 = vmatpush1.bf16.xpose.msra.mxu0 0
    %337 = vmatprep.subr.bf16.mxu0 0
    %338 = vmatpush1.bf16.xpose.msra.mxu0 0
    %339 = vmatprep.subr.bf16.mxu0 0
    %340 = vmatpush1.bf16.xpose.msra.mxu0 0
    %341 = vmatprep.subr.bf16.mxu0 0
    %342 = vmatpush1.bf16.xpose.msra.mxu0 0
    %343 = vmatprep.subr.bf16.mxu0 0
    %344 = vmatpush1.bf16.xpose.msra.mxu0 0
    %345 = vmatprep.mubr.bf16.mxu0 0
    %346 = vmatmul.mubr.bf16.gmra.mrb[0].mxu0 %v308
    %v347 = vpop.f32.mrb[0].mxu0
    %v348 = vadd.f32 0.0, %v347
    %v349 = vpop.f32.mrb[0].mxu0
    %v350 = vpop.f32.mrb[0].mxu0
    %v351 = vpop.f32.mrb[0].mxu0
    %352 = vdwg.mxu0
    %v354 = vsel %vm130, %v294, 0
    %v357 = vsel %vm130, %v300, 0
    %359 = vmatprep.subr.bf16.mxu0 0
    %360 = vmatpush1.bf16.xpose.msra.mxu0 %v357
    %361 = vmatprep.subr.bf16.mxu0 0
    %362 = vmatpush1.bf16.xpose.msra.mxu0 0
    %363 = vmatprep.subr.bf16.mxu0 0
    %364 = vmatpush1.bf16.xpose.msra.mxu0 0
    %365 = vmatprep.subr.bf16.mxu0 0
    %366 = vmatpush1.bf16.xpose.msra.mxu0 0
    %367 = vmatprep.subr.bf16.mxu0 0
    %368 = vmatpush1.bf16.xpose.msra.mxu0 0
    %369 = vmatprep.subr.bf16.mxu0 0
    %370 = vmatpush1.bf16.xpose.msra.mxu0 0
    %371 = vmatprep.subr.bf16.mxu0 0
    %372 = vmatpush1.bf16.xpose.msra.mxu0 0
    %373 = vmatprep.subr.bf16.mxu0 0
    %374 = vmatpush1.bf16.xpose.msra.mxu0 0
    %375 = vmatprep.subr.bf16.mxu0 0
    %376 = vmatpush1.bf16.xpose.msra.mxu0 0
    %377 = vmatprep.subr.bf16.mxu0 0
    %378 = vmatpush1.bf16.xpose.msra.mxu0 0
    %379 = vmatprep.subr.bf16.mxu0 0
    %380 = vmatpush1.bf16.xpose.msra.mxu0 0
    %381 = vmatprep.subr.bf16.mxu0 0
    %382 = vmatpush1.bf16.xpose.msra.mxu0 0
    %383 = vmatprep.subr.bf16.mxu0 0
    %384 = vmatpush1.bf16.xpose.msra.mxu0 0
    %385 = vmatprep.subr.bf16.mxu0 0
    %386 = vmatpush1.bf16.xpose.msra.mxu0 0
    %387 = vmatprep.subr.bf16.mxu0 0
    %388 = vmatpush1.bf16.xpose.msra.mxu0 0
    %389 = vmatprep.subr.bf16.mxu0 0
    %390 = vmatpush1.bf16.xpose.msra.mxu0 0
    %391 = vmatprep.mubr.bf16.mxu0 0
    %392 = vmatmul.mubr.bf16.gmra.mrb[0].mxu0 %v354
    %v393 = vpop.f32.mrb[0].mxu0
    %v394 = vadd.f32 0.0, %v393
    %v395 = vpop.f32.mrb[0].mxu0
    %v396 = vpop.f32.mrb[0].mxu0
    %v397 = vpop.f32.mrb[0].mxu0
    %398 = vdwg.mxu0
    %vm399 = vcmask 64512
    %v400 = vsel %vm399, %v348, -inf
    %401 = vmax.xlane.f32.xlu0 %v400
    %v402 = vpop.xlane.xlu0 %401
    %v403 = vsel %vm399, %v394, -inf
    %404 = vmax.xlane.f32.xlu0 %v403
    %v405 = vpop.xlane.xlu0 %404
    %v406 = vsub.f32 %v348, %v402
    %v407 = vsub.f32 %v394, %v405
    %v408 = vmul.f32 %v406, 1.442695
    %v409 = vpow.pop %v408
    %v410 = vmul.f32 %v407, 1.442695
    %v411 = vpow.pop %v410
    %v412 = vsel %vm399, %v409, 0.0
    %413 = vadd.xlane.f32.xlu0 %v412
    %v414 = vpop.xlane.xlu0 %413
    %v415 = vsel %vm399, %v411, 0.0
    %416 = vadd.xlane.f32.xlu0 %v415
    %v417 = vpop.xlane.xlu0 %416
    %v418 = vrcp.pop %v414
    %v419 = vrcp.pop %v417
    %v420 = vmul.f32 %v409, %v418
    %v421 = vmul.f32 %v411, %v419
    %v422 = vpack.c.bf16 %v420, %v420
    %v423 = vpack.c.bf16 %v421, %v421
    %v425 = vsel %vm399, %v422, 0
    %vm427 = vcmask 1043456
    %v429 = vsel %vm427, %v305, 0
    %431 = vmatprep.subr.bf16.mxu0 0
    %432 = vmatpush1.bf16.msra.mxu0 %v429
    %433 = vmatprep.subr.bf16.mxu0 0
    %434 = vmatpush1.bf16.msra.mxu0 0
    %435 = vmatprep.subr.bf16.mxu0 0
    %436 = vmatpush1.bf16.msra.mxu0 0
    %437 = vmatprep.subr.bf16.mxu0 0
    %438 = vmatpush1.bf16.msra.mxu0 0
    %439 = vmatprep.subr.bf16.mxu0 0
    %440 = vmatpush1.bf16.msra.mxu0 0
    %441 = vmatprep.subr.bf16.mxu0 0
    %442 = vmatpush1.bf16.msra.mxu0 0
    %443 = vmatprep.subr.bf16.mxu0 0
    %444 = vmatpush1.bf16.msra.mxu0 0
    %445 = vmatprep.subr.bf16.mxu0 0
    %446 = vmatpush1.bf16.msra.mxu0 0
    %447 = vmatprep.subr.bf16.mxu0 0
    %448 = vmatpush1.bf16.msra.mxu0 0
    %449 = vmatprep.subr.bf16.mxu0 0
    %450 = vmatpush1.bf16.msra.mxu0 0
    %451 = vmatprep.subr.bf16.mxu0 0
    %452 = vmatpush1.bf16.msra.mxu0 0
    %453 = vmatprep.subr.bf16.mxu0 0
    %454 = vmatpush1.bf16.msra.mxu0 0
    %455 = vmatprep.subr.bf16.mxu0 0
    %456 = vmatpush1.bf16.msra.mxu0 0
    %457 = vmatprep.subr.bf16.mxu0 0
    %458 = vmatpush1.bf16.msra.mxu0 0
    %459 = vmatprep.subr.bf16.mxu0 0
    %460 = vmatpush1.bf16.msra.mxu0 0
    %461 = vmatprep.subr.bf16.mxu0 0
    %462 = vmatpush1.bf16.msra.mxu0 0
    %463 = vmatprep.mubr.bf16.mxu0 0
    %464 = vmatmul.mubr.bf16.gmra.mrb[0].mxu0 %v425
    %v465 = vpop.f32.mrb[0].mxu0
    %v466 = vadd.f32 0.0, %v465
    %v467 = vpop.f32.mrb[0].mxu0
    %v468 = vpop.f32.mrb[0].mxu0
    %v469 = vpop.f32.mrb[0].mxu0
    %470 = vdwg.mxu0
    %v472 = vsel %vm399, %v423, 0
    %v475 = vsel %vm427, %v306, 0
    %477 = vmatprep.subr.bf16.mxu0 0
    %478 = vmatpush1.bf16.msra.mxu0 %v475
    %479 = vmatprep.subr.bf16.mxu0 0
    %480 = vmatpush1.bf16.msra.mxu0 0
    %481 = vmatprep.subr.bf16.mxu0 0
    %482 = vmatpush1.bf16.msra.mxu0 0
    %483 = vmatprep.subr.bf16.mxu0 0
    %484 = vmatpush1.bf16.msra.mxu0 0
    %485 = vmatprep.subr.bf16.mxu0 0
    %486 = vmatpush1.bf16.msra.mxu0 0
    %487 = vmatprep.subr.bf16.mxu0 0
    %488 = vmatpush1.bf16.msra.mxu0 0
    %489 = vmatprep.subr.bf16.mxu0 0
    %490 = vmatpush1.bf16.msra.mxu0 0
    %491 = vmatprep.subr.bf16.mxu0 0
    %492 = vmatpush1.bf16.msra.mxu0 0
    %493 = vmatprep.subr.bf16.mxu0 0
    %494 = vmatpush1.bf16.msra.mxu0 0
    %495 = vmatprep.subr.bf16.mxu0 0
    %496 = vmatpush1.bf16.msra.mxu0 0
    %497 = vmatprep.subr.bf16.mxu0 0
    %498 = vmatpush1.bf16.msra.mxu0 0
    %499 = vmatprep.subr.bf16.mxu0 0
    %500 = vmatpush1.bf16.msra.mxu0 0
    %501 = vmatprep.subr.bf16.mxu0 0
    %502 = vmatpush1.bf16.msra.mxu0 0
    %503 = vmatprep.subr.bf16.mxu0 0
    %504 = vmatpush1.bf16.msra.mxu0 0
    %505 = vmatprep.subr.bf16.mxu0 0
    %506 = vmatpush1.bf16.msra.mxu0 0
    %507 = vmatprep.subr.bf16.mxu0 0
    %508 = vmatpush1.bf16.msra.mxu0 0
    %509 = vmatprep.mubr.bf16.mxu0 0
    %510 = vmatmul.mubr.bf16.gmra.mrb[0].mxu0 %v472
    %v511 = vpop.f32.mrb[0].mxu0
    %v512 = vadd.f32 0.0, %v511
    %v513 = vpop.f32.mrb[0].mxu0
    %v514 = vpop.f32.mrb[0].mxu0
    %v515 = vpop.f32.mrb[0].mxu0
    %516 = vdwg.mxu0
    %v517 = vpack.c.bf16 %v512, %v466
    %v518 = vld [vmem:[#allocation5] sm:$0xf]
    %v519 = vld [vmem:[#allocation5 + $0x4] sm:$0xf]
    %v520 = vld [vmem:[#allocation5 + $0x8] sm:$0xf]
    %v521 = vld [vmem:[#allocation5 + $0xc] sm:$0xf]
    %s522 = scalar_lea.vmem %s1, 16
    %v523 = vld [vmem:[%s522] sm:$0xf]
    %v524 = vld [vmem:[%s522 + $0x4] sm:$0xf]
    %v525 = vld [vmem:[%s522 + $0x8] sm:$0xf]
    %v526 = vld [vmem:[%s522 + $0xc] sm:$0xf]
    %v531 = vunpack.c.l.b16 %v523
    %v532 = vunpack.c.l.b16 %v524
    %v533 = vunpack.c.l.b16 %v525
    %v534 = vunpack.c.l.b16 %v526
    %v535 = vpack.c.b16 %v532, %v531
    %v536 = vpack.c.b16 %v534, %v533
    %539 = vmatprep.subr.bf16.mxu0 0
    %540 = vmatpush1.bf16.msra.mxu0 %v535
    %541 = vmatprep.subr.bf16.mxu0 0
    %542 = vmatpush1.bf16.msra.mxu0 %v536
    %543 = vmatprep.subr.bf16.mxu0 0
    %544 = vmatpush1.bf16.msra.mxu0 0
    %545 = vmatprep.subr.bf16.mxu0 0
    %546 = vmatpush1.bf16.msra.mxu0 0
    %547 = vmatprep.subr.bf16.mxu0 0
    %548 = vmatpush1.bf16.msra.mxu0 0
    %549 = vmatprep.subr.bf16.mxu0 0
    %550 = vmatpush1.bf16.msra.mxu0 0
    %551 = vmatprep.subr.bf16.mxu0 0
    %552 = vmatpush1.bf16.msra.mxu0 0
    %553 = vmatprep.subr.bf16.mxu0 0
    %554 = vmatpush1.bf16.msra.mxu0 0
    %555 = vmatprep.subr.bf16.mxu0 0
    %556 = vmatpush1.bf16.msra.mxu0 0
    %557 = vmatprep.subr.bf16.mxu0 0
    %558 = vmatpush1.bf16.msra.mxu0 0
    %559 = vmatprep.subr.bf16.mxu0 0
    %560 = vmatpush1.bf16.msra.mxu0 0
    %561 = vmatprep.subr.bf16.mxu0 0
    %562 = vmatpush1.bf16.msra.mxu0 0
    %563 = vmatprep.subr.bf16.mxu0 0
    %564 = vmatpush1.bf16.msra.mxu0 0
    %565 = vmatprep.subr.bf16.mxu0 0
    %566 = vmatpush1.bf16.msra.mxu0 0
    %567 = vmatprep.subr.bf16.mxu0 0
    %568 = vmatpush1.bf16.msra.mxu0 0
    %569 = vmatprep.subr.bf16.mxu0 0
    %570 = vmatpush1.bf16.msra.mxu0 0
    %571 = vmatprep.mubr.bf16.mxu0 0
    %572 = vmatmul.mubr.bf16.gmra.mrb[0].mxu0 %v132
    %v573 = vpop.f32.mrb[0].mxu0
    %v574 = vadd.f32 0.0, %v573
    %v575 = vpop.f32.mrb[0].mxu0
    %v576 = vpop.f32.mrb[0].mxu0
    %v577 = vadd.f32 0.0, %v576
    %v578 = vpop.f32.mrb[0].mxu0
    %579 = vdwg.mxu0
    %s580 = scalar_lea.vmem %s2, 16
    %v581 = vld [vmem:[%s580] sm:$0xf]
    %v582 = vld [vmem:[%s580 + $0x4] sm:$0xf]
    %v583 = vld [vmem:[%s580 + $0x8] sm:$0xf]
    %v584 = vld [vmem:[%s580 + $0xc] sm:$0xf]
    %v589 = vunpack.c.l.b16 %v581
    %v590 = vunpack.c.l.b16 %v582
    %v591 = vunpack.c.l.b16 %v583
    %v592 = vunpack.c.l.b16 %v584
    %v593 = vpack.c.b16 %v590, %v589
    %v594 = vpack.c.b16 %v592, %v591
    %597 = vmatprep.subr.bf16.mxu0 0
    %598 = vmatpush1.bf16.msra.mxu0 %v593
    %599 = vmatprep.subr.bf16.mxu0 0
    %600 = vmatpush1.bf16.msra.mxu0 %v594
    %601 = vmatprep.subr.bf16.mxu0 0
    %602 = vmatpush1.bf16.msra.mxu0 0
    %603 = vmatprep.subr.bf16.mxu0 0
    %604 = vmatpush1.bf16.msra.mxu0 0
    %605 = vmatprep.subr.bf16.mxu0 0
    %606 = vmatpush1.bf16.msra.mxu0 0
    %607 = vmatprep.subr.bf16.mxu0 0
    %608 = vmatpush1.bf16.msra.mxu0 0
    %609 = vmatprep.subr.bf16.mxu0 0
    %610 = vmatpush1.bf16.msra.mxu0 0
    %611 = vmatprep.subr.bf16.mxu0 0
    %612 = vmatpush1.bf16.msra.mxu0 0
    %613 = vmatprep.subr.bf16.mxu0 0
    %614 = vmatpush1.bf16.msra.mxu0 0
    %615 = vmatprep.subr.bf16.mxu0 0
    %616 = vmatpush1.bf16.msra.mxu0 0
    %617 = vmatprep.subr.bf16.mxu0 0
    %618 = vmatpush1.bf16.msra.mxu0 0
    %619 = vmatprep.subr.bf16.mxu0 0
    %620 = vmatpush1.bf16.msra.mxu0 0
    %621 = vmatprep.subr.bf16.mxu0 0
    %622 = vmatpush1.bf16.msra.mxu0 0
    %623 = vmatprep.subr.bf16.mxu0 0
    %624 = vmatpush1.bf16.msra.mxu0 0
    %625 = vmatprep.subr.bf16.mxu0 0
    %626 = vmatpush1.bf16.msra.mxu0 0
    %627 = vmatprep.subr.bf16.mxu0 0
    %628 = vmatpush1.bf16.msra.mxu0 0
    %629 = vmatprep.mubr.bf16.mxu0 0
    %630 = vmatmul.mubr.bf16.gmra.mrb[0].mxu0 %v132
    %v631 = vpop.f32.mrb[0].mxu0
    %v632 = vadd.f32 0.0, %v631
    %v633 = vpop.f32.mrb[0].mxu0
    %v634 = vpop.f32.mrb[0].mxu0
    %v635 = vadd.f32 0.0, %v634
    %v636 = vpop.f32.mrb[0].mxu0
    %637 = vdwg.mxu0
    %s638 = scalar_lea.vmem [#allocation2], 16
    %v639 = vld [vmem:[%s638] sm:$0xf]
    %v640 = vld [vmem:[%s638 + $0x4] sm:$0xf]
    %v641 = vld [vmem:[%s638 + $0x8] sm:$0xf]
    %v642 = vld [vmem:[%s638 + $0xc] sm:$0xf]
    %v647 = vunpack.c.l.b16 %v639
    %v648 = vunpack.c.l.b16 %v640
    %v649 = vunpack.c.l.b16 %v641
    %v650 = vunpack.c.l.b16 %v642
    %v651 = vpack.c.b16 %v648, %v647
    %v652 = vpack.c.b16 %v650, %v649
    %655 = vmatprep.subr.bf16.mxu0 0
    %656 = vmatpush1.bf16.msra.mxu0 %v651
    %657 = vmatprep.subr.bf16.mxu0 0
    %658 = vmatpush1.bf16.msra.mxu0 %v652
    %659 = vmatprep.subr.bf16.mxu0 0
    %660 = vmatpush1.bf16.msra.mxu0 0
    %661 = vmatprep.subr.bf16.mxu0 0
    %662 = vmatpush1.bf16.msra.mxu0 0
    %663 = vmatprep.subr.bf16.mxu0 0
    %664 = vmatpush1.bf16.msra.mxu0 0
    %665 = vmatprep.subr.bf16.mxu0 0
    %666 = vmatpush1.bf16.msra.mxu0 0
    %667 = vmatprep.subr.bf16.mxu0 0
    %668 = vmatpush1.bf16.msra.mxu0 0
    %669 = vmatprep.subr.bf16.mxu0 0
    %670 = vmatpush1.bf16.msra.mxu0 0
    %671 = vmatprep.subr.bf16.mxu0 0
    %672 = vmatpush1.bf16.msra.mxu0 0
    %673 = vmatprep.subr.bf16.mxu0 0
    %674 = vmatpush1.bf16.msra.mxu0 0
    %675 = vmatprep.subr.bf16.mxu0 0
    %676 = vmatpush1.bf16.msra.mxu0 0
    %677 = vmatprep.subr.bf16.mxu0 0
    %678 = vmatpush1.bf16.msra.mxu0 0
    %679 = vmatprep.subr.bf16.mxu0 0
    %680 = vmatpush1.bf16.msra.mxu0 0
    %681 = vmatprep.subr.bf16.mxu0 0
    %682 = vmatpush1.bf16.msra.mxu0 0
    %683 = vmatprep.subr.bf16.mxu0 0
    %684 = vmatpush1.bf16.msra.mxu0 0
    %685 = vmatprep.subr.bf16.mxu0 0
    %686 = vmatpush1.bf16.msra.mxu0 0
    %687 = vmatprep.mubr.bf16.mxu0 0
    %688 = vmatmul.mubr.bf16.gmra.mrb[0].mxu0 %v132
    %v689 = vpop.f32.mrb[0].mxu0
    %v690 = vadd.f32 0.0, %v689
    %v691 = vpop.f32.mrb[0].mxu0
    %v692 = vpop.f32.mrb[0].mxu0
    %v693 = vadd.f32 0.0, %v692
    %v694 = vpop.f32.mrb[0].mxu0
    %695 = vdwg.mxu0
    %v696 = vpack.c.bf16 %v577, %v574
    %v698 = vunpack.c.l.b16 %v696
    %v699 = vunpack.c.h.b16 %v696
    %v700 = vpack.c.b16 %v698, %v698
    %v701 = vpack.c.b16 %v699, %v699
    %v702 = vpack.c.bf16 %v635, %v632
    %v704 = vunpack.c.l.b16 %v702
    %v705 = vunpack.c.h.b16 %v702
    %v706 = vpack.c.b16 %v704, %v704
    %v707 = vpack.c.b16 %v705, %v705
    %v708 = vpack.c.bf16 %v693, %v690
    %v710 = vunpack.c.l.b16 %v708
    %v711 = vunpack.c.h.b16 %v708
    %v712 = vpack.c.b16 %v710, %v710
    %v713 = vpack.c.b16 %v711, %v711
    %v715 = vsel %vm130, %v700, 0
    %v718 = vsel %vm130, %v706, 0
    %720 = vmatprep.subr.bf16.mxu0 0
    %721 = vmatpush1.bf16.xpose.msra.mxu0 %v718
    %722 = vmatprep.subr.bf16.mxu0 0
    %723 = vmatpush1.bf16.xpose.msra.mxu0 0
    %724 = vmatprep.subr.bf16.mxu0 0
    %725 = vmatpush1.bf16.xpose.msra.mxu0 0
    %726 = vmatprep.subr.bf16.mxu0 0
    %727 = vmatpush1.bf16.xpose.msra.mxu0 0
    %728 = vmatprep.subr.bf16.mxu0 0
    %729 = vmatpush1.bf16.xpose.msra.mxu0 0
    %730 = vmatprep.subr.bf16.mxu0 0
    %731 = vmatpush1.bf16.xpose.msra.mxu0 0
    %732 = vmatprep.subr.bf16.mxu0 0
    %733 = vmatpush1.bf16.xpose.msra.mxu0 0
    %734 = vmatprep.subr.bf16.mxu0 0
    %735 = vmatpush1.bf16.xpose.msra.mxu0 0
    %736 = vmatprep.subr.bf16.mxu0 0
    %737 = vmatpush1.bf16.xpose.msra.mxu0 0
    %738 = vmatprep.subr.bf16.mxu0 0
    %739 = vmatpush1.bf16.xpose.msra.mxu0 0
    %740 = vmatprep.subr.bf16.mxu0 0
    %741 = vmatpush1.bf16.xpose.msra.mxu0 0
    %742 = vmatprep.subr.bf16.mxu0 0
    %743 = vmatpush1.bf16.xpose.msra.mxu0 0
    %744 = vmatprep.subr.bf16.mxu0 0
    %745 = vmatpush1.bf16.xpose.msra.mxu0 0
    %746 = vmatprep.subr.bf16.mxu0 0
    %747 = vmatpush1.bf16.xpose.msra.mxu0 0
    %748 = vmatprep.subr.bf16.mxu0 0
    %749 = vmatpush1.bf16.xpose.msra.mxu0 0
    %750 = vmatprep.subr.bf16.mxu0 0
    %751 = vmatpush1.bf16.xpose.msra.mxu0 0
    %752 = vmatprep.mubr.bf16.mxu0 0
    %753 = vmatmul.mubr.bf16.gmra.mrb[0].mxu0 %v715
    %v754 = vpop.f32.mrb[0].mxu0
    %v755 = vadd.f32 0.0, %v754
    %v756 = vpop.f32.mrb[0].mxu0
    %v757 = vpop.f32.mrb[0].mxu0
    %v758 = vpop.f32.mrb[0].mxu0
    %759 = vdwg.mxu0
    %v761 = vsel %vm130, %v701, 0
    %v764 = vsel %vm130, %v707, 0
    %766 = vmatprep.subr.bf16.mxu0 0
    %767 = vmatpush1.bf16.xpose.msra.mxu0 %v764
    %768 = vmatprep.subr.bf16.mxu0 0
    %769 = vmatpush1.bf16.xpose.msra.mxu0 0
    %770 = vmatprep.subr.bf16.mxu0 0
    %771 = vmatpush1.bf16.xpose.msra.mxu0 0
    %772 = vmatprep.subr.bf16.mxu0 0
    %773 = vmatpush1.bf16.xpose.msra.mxu0 0
    %774 = vmatprep.subr.bf16.mxu0 0
    %775 = vmatpush1.bf16.xpose.msra.mxu0 0
    %776 = vmatprep.subr.bf16.mxu0 0
    %777 = vmatpush1.bf16.xpose.msra.mxu0 0
    %778 = vmatprep.subr.bf16.mxu0 0
    %779 = vmatpush1.bf16.xpose.msra.mxu0 0
    %780 = vmatprep.subr.bf16.mxu0 0
    %781 = vmatpush1.bf16.xpose.msra.mxu0 0
    %782 = vmatprep.subr.bf16.mxu0 0
    %783 = vmatpush1.bf16.xpose.msra.mxu0 0
    %784 = vmatprep.subr.bf16.mxu0 0
    %785 = vmatpush1.bf16.xpose.msra.mxu0 0
    %786 = vmatprep.subr.bf16.mxu0 0
    %787 = vmatpush1.bf16.xpose.msra.mxu0 0
    %788 = vmatprep.subr.bf16.mxu0 0
    %789 = vmatpush1.bf16.xpose.msra.mxu0 0
    %790 = vmatprep.subr.bf16.mxu0 0
    %791 = vmatpush1.bf16.xpose.msra.mxu0 0
    %792 = vmatprep.subr.bf16.mxu0 0
    %793 = vmatpush1.bf16.xpose.msra.mxu0 0
    %794 = vmatprep.subr.bf16.mxu0 0
    %795 = vmatpush1.bf16.xpose.msra.mxu0 0
    %796 = vmatprep.subr.bf16.mxu0 0
    %797 = vmatpush1.bf16.xpose.msra.mxu0 0
    %798 = vmatprep.mubr.bf16.mxu0 0
    %799 = vmatmul.mubr.bf16.gmra.mrb[0].mxu0 %v761
    %v800 = vpop.f32.mrb[0].mxu0
    %v801 = vadd.f32 0.0, %v800
    %v802 = vpop.f32.mrb[0].mxu0
    %v803 = vpop.f32.mrb[0].mxu0
    %v804 = vpop.f32.mrb[0].mxu0
    %805 = vdwg.mxu0
    %v806 = vsel %vm399, %v755, -inf
    %807 = vmax.xlane.f32.xlu0 %v806
    %v808 = vpop.xlane.xlu0 %807
    %v809 = vsel %vm399, %v801, -inf
    %810 = vmax.xlane.f32.xlu0 %v809
    %v811 = vpop.xlane.xlu0 %810
    %v812 = vsub.f32 %v755, %v808
    %v813 = vsub.f32 %v801, %v811
    %v814 = vmul.f32 %v812, 1.442695
    %v815 = vpow.pop %v814
    %v816 = vmul.f32 %v813, 1.442695
    %v817 = vpow.pop %v816
    %v818 = vsel %vm399, %v815, 0.0
    %819 = vadd.xlane.f32.xlu0 %v818
    %v820 = vpop.xlane.xlu0 %819
    %v821 = vsel %vm399, %v817, 0.0
    %822 = vadd.xlane.f32.xlu0 %v821
    %v823 = vpop.xlane.xlu0 %822
    %v824 = vrcp.pop %v820
    %v825 = vrcp.pop %v823
    %v826 = vmul.f32 %v815, %v824
    %v827 = vmul.f32 %v817, %v825
    %v828 = vpack.c.bf16 %v826, %v826
    %v829 = vpack.c.bf16 %v827, %v827
    %v831 = vsel %vm399, %v828, 0
    %v834 = vsel %vm427, %v712, 0
    %836 = vmatprep.subr.bf16.mxu0 0
    %837 = vmatpush1.bf16.msra.mxu0 %v834
    %838 = vmatprep.subr.bf16.mxu0 0
    %839 = vmatpush1.bf16.msra.mxu0 0
    %840 = vmatprep.subr.bf16.mxu0 0
    %841 = vmatpush1.bf16.msra.mxu0 0
    %842 = vmatprep.subr.bf16.mxu0 0
    %843 = vmatpush1.bf16.msra.mxu0 0
    %844 = vmatprep.subr.bf16.mxu0 0
    %845 = vmatpush1.bf16.msra.mxu0 0
    %846 = vmatprep.subr.bf16.mxu0 0
    %847 = vmatpush1.bf16.msra.mxu0 0
    %848 = vmatprep.subr.bf16.mxu0 0
    %849 = vmatpush1.bf16.msra.mxu0 0
    %850 = vmatprep.subr.bf16.mxu0 0
    %851 = vmatpush1.bf16.msra.mxu0 0
    %852 = vmatprep.subr.bf16.mxu0 0
    %853 = vmatpush1.bf16.msra.mxu0 0
    %854 = vmatprep.subr.bf16.mxu0 0
    %855 = vmatpush1.bf16.msra.mxu0 0
    %856 = vmatprep.subr.bf16.mxu0 0
    %857 = vmatpush1.bf16.msra.mxu0 0
    %858 = vmatprep.subr.bf16.mxu0 0
    %859 = vmatpush1.bf16.msra.mxu0 0
    %860 = vmatprep.subr.bf16.mxu0 0
    %861 = vmatpush1.bf16.msra.mxu0 0
    %862 = vmatprep.subr.bf16.mxu0 0
    %863 = vmatpush1.bf16.msra.mxu0 0
    %864 = vmatprep.subr.bf16.mxu0 0
    %865 = vmatpush1.bf16.msra.mxu0 0
    %866 = vmatprep.subr.bf16.mxu0 0
    %867 = vmatpush1.bf16.msra.mxu0 0
    %868 = vmatprep.mubr.bf16.mxu0 0
    %869 = vmatmul.mubr.bf16.gmra.mrb[0].mxu0 %v831
    %v870 = vpop.f32.mrb[0].mxu0
    %v871 = vadd.f32 0.0, %v870
    %v872 = vpop.f32.mrb[0].mxu0
    %v873 = vpop.f32.mrb[0].mxu0
    %v874 = vpop.f32.mrb[0].mxu0
    %875 = vdwg.mxu0
    %v877 = vsel %vm399, %v829, 0
    %v880 = vsel %vm427, %v713, 0
    %882 = vmatprep.subr.bf16.mxu0 0
    %883 = vmatpush1.bf16.msra.mxu0 %v880
    %884 = vmatprep.subr.bf16.mxu0 0
    %885 = vmatpush1.bf16.msra.mxu0 0
    %886 = vmatprep.subr.bf16.mxu0 0
    %887 = vmatpush1.bf16.msra.mxu0 0
    %888 = vmatprep.subr.bf16.mxu0 0
    %889 = vmatpush1.bf16.msra.mxu0 0
    %890 = vmatprep.subr.bf16.mxu0 0
    %891 = vmatpush1.bf16.msra.mxu0 0
    %892 = vmatprep.subr.bf16.mxu0 0
    %893 = vmatpush1.bf16.msra.mxu0 0
    %894 = vmatprep.subr.bf16.mxu0 0
    %895 = vmatpush1.bf16.msra.mxu0 0
    %896 = vmatprep.subr.bf16.mxu0 0
    %897 = vmatpush1.bf16.msra.mxu0 0
    %898 = vmatprep.subr.bf16.mxu0 0
    %899 = vmatpush1.bf16.msra.mxu0 0
    %900 = vmatprep.subr.bf16.mxu0 0
    %901 = vmatpush1.bf16.msra.mxu0 0
    %902 = vmatprep.subr.bf16.mxu0 0
    %903 = vmatpush1.bf16.msra.mxu0 0
    %904 = vmatprep.subr.bf16.mxu0 0
    %905 = vmatpush1.bf16.msra.mxu0 0
    %906 = vmatprep.subr.bf16.mxu0 0
    %907 = vmatpush1.bf16.msra.mxu0 0
    %908 = vmatprep.subr.bf16.mxu0 0
    %909 = vmatpush1.bf16.msra.mxu0 0
    %910 = vmatprep.subr.bf16.mxu0 0
    %911 = vmatpush1.bf16.msra.mxu0 0
    %912 = vmatprep.subr.bf16.mxu0 0
    %913 = vmatpush1.bf16.msra.mxu0 0
    %914 = vmatprep.mubr.bf16.mxu0 0
    %915 = vmatmul.mubr.bf16.gmra.mrb[0].mxu0 %v877
    %v916 = vpop.f32.mrb[0].mxu0
    %v917 = vadd.f32 0.0, %v916
    %v918 = vpop.f32.mrb[0].mxu0
    %v919 = vpop.f32.mrb[0].mxu0
    %v920 = vpop.f32.mrb[0].mxu0
    %921 = vdwg.mxu0
    %v922 = vpack.c.bf16 %v917, %v871
    %s923 = scalar_lea.vmem [#allocation5], 16
    %v924 = vld [vmem:[%s923] sm:$0xf]
    %v925 = vld [vmem:[%s923 + $0x4] sm:$0xf]
    %v926 = vld [vmem:[%s923 + $0x8] sm:$0xf]
    %v927 = vld [vmem:[%s923 + $0xc] sm:$0xf]
    %v932 = vunpack.c.l.b16 %v924
    %v933 = vunpack.c.l.b16 %v925
    %v934 = vunpack.c.l.b16 %v926
    %v935 = vunpack.c.l.b16 %v927
    %v936 = vpack.c.b16 %v933, %v932
    %v937 = vpack.c.b16 %v935, %v934
    %v941 = vsel %vm130, %v922, 0
    %943 = vmatprep.subr.bf16.mxu0 0
    %944 = vmatpush1.bf16.msra.mxu0 %v936
    %945 = vmatprep.subr.bf16.mxu0 0
    %946 = vmatpush1.bf16.msra.mxu0 %v937
    %947 = vmatprep.subr.bf16.mxu0 0
    %948 = vmatpush1.bf16.msra.mxu0 0
    %949 = vmatprep.subr.bf16.mxu0 0
    %950 = vmatpush1.bf16.msra.mxu0 0
    %951 = vmatprep.subr.bf16.mxu0 0
    %952 = vmatpush1.bf16.msra.mxu0 0
    %953 = vmatprep.subr.bf16.mxu0 0
    %954 = vmatpush1.bf16.msra.mxu0 0
    %955 = vmatprep.subr.bf16.mxu0 0
    %956 = vmatpush1.bf16.msra.mxu0 0
    %957 = vmatprep.subr.bf16.mxu0 0
    %958 = vmatpush1.bf16.msra.mxu0 0
    %959 = vmatprep.subr.bf16.mxu0 0
    %960 = vmatpush1.bf16.msra.mxu0 0
    %961 = vmatprep.subr.bf16.mxu0 0
    %962 = vmatpush1.bf16.msra.mxu0 0
    %963 = vmatprep.subr.bf16.mxu0 0
    %964 = vmatpush1.bf16.msra.mxu0 0
    %965 = vmatprep.subr.bf16.mxu0 0
    %966 = vmatpush1.bf16.msra.mxu0 0
    %967 = vmatprep.subr.bf16.mxu0 0
    %968 = vmatpush1.bf16.msra.mxu0 0
    %969 = vmatprep.subr.bf16.mxu0 0
    %970 = vmatpush1.bf16.msra.mxu0 0
    %971 = vmatprep.subr.bf16.mxu0 0
    %972 = vmatpush1.bf16.msra.mxu0 0
    %973 = vmatprep.subr.bf16.mxu0 0
    %974 = vmatpush1.bf16.msra.mxu0 0
    %975 = vmatprep.mubr.bf16.mxu0 0
    %976 = vmatmul.mubr.bf16.gmra.mrb[0].mxu0 %v941
    %v977 = vpop.f32.mrb[0].mxu0
    %v978 = vadd.f32 0.0, %v977
    %v979 = vpop.f32.mrb[0].mxu0
    %v980 = vpop.f32.mrb[0].mxu0
    %v981 = vadd.f32 0.0, %v980
    %v982 = vpop.f32.mrb[0].mxu0
    %983 = vdwg.mxu0
    %v988 = vunpack.c.l.b16 %v518
    %v989 = vunpack.c.l.b16 %v519
    %v990 = vunpack.c.l.b16 %v520
    %v991 = vunpack.c.l.b16 %v521
    %v992 = vpack.c.b16 %v989, %v988
    %v993 = vpack.c.b16 %v991, %v990
    %v997 = vsel %vm130, %v517, 0
    %999 = vmatprep.subr.bf16.mxu0 0
    %1000 = vmatpush1.bf16.msra.mxu0 %v992
    %1001 = vmatprep.subr.bf16.mxu0 0
    %1002 = vmatpush1.bf16.msra.mxu0 %v993
    %1003 = vmatprep.subr.bf16.mxu0 0
    %1004 = vmatpush1.bf16.msra.mxu0 0
    %1005 = vmatprep.subr.bf16.mxu0 0
    %1006 = vmatpush1.bf16.msra.mxu0 0
    %1007 = vmatprep.subr.bf16.mxu0 0
    %1008 = vmatpush1.bf16.msra.mxu0 0
    %1009 = vmatprep.subr.bf16.mxu0 0
    %1010 = vmatpush1.bf16.msra.mxu0 0
    %1011 = vmatprep.subr.bf16.mxu0 0
    %1012 = vmatpush1.bf16.msra.mxu0 0
    %1013 = vmatprep.subr.bf16.mxu0 0
    %1014 = vmatpush1.bf16.msra.mxu0 0
    %1015 = vmatprep.subr.bf16.mxu0 0
    %1016 = vmatpush1.bf16.msra.mxu0 0
    %1017 = vmatprep.subr.bf16.mxu0 0
    %1018 = vmatpush1.bf16.msra.mxu0 0
    %1019 = vmatprep.subr.bf16.mxu0 0
    %1020 = vmatpush1.bf16.msra.mxu0 0
    %1021 = vmatprep.subr.bf16.mxu0 0
    %1022 = vmatpush1.bf16.msra.mxu0 0
    %1023 = vmatprep.subr.bf16.mxu0 0
    %1024 = vmatpush1.bf16.msra.mxu0 0
    %1025 = vmatprep.subr.bf16.mxu0 0
    %1026 = vmatpush1.bf16.msra.mxu0 0
    %1027 = vmatprep.subr.bf16.mxu0 0
    %1028 = vmatpush1.bf16.msra.mxu0 0
    %1029 = vmatprep.subr.bf16.mxu0 0
    %1030 = vmatpush1.bf16.msra.mxu0 0
    %1031 = vmatprep.mubr.bf16.mxu0 0
    %1032 = vmatmul.mubr.bf16.gmra.mrb[0].mxu0 %v997
    %v1033 = vpop.f32.mrb[0].mxu0
    %v1034 = vadd.f32 %v978, %v1033
    %v1035 = vpop.f32.mrb[0].mxu0
    %v1036 = vpop.f32.mrb[0].mxu0
    %v1037 = vadd.f32 %v981, %v1036
    %v1038 = vpop.f32.mrb[0].mxu0
    %1039 = vdwg.mxu0
    %v1040 = vld [vmem:[%s5] sm:$0x1]
    %v1042 = vlaneseq
    %v1043 = vshrl.u32 %v1042, 7
    %v1044 = vsub.s32 0, %v1043
    %v1045 = vrot.slane %v1040, %v1044
    %v1047 = vadd.f32 %v1034, %v1045
    %v1048 = vadd.f32 %v1037, %v1045
    %v1049 = vpack.c.bf16 %v1048, %v1047
    %v1050 = vld [vmem:[%s10] sm:$0xf]
    %v1051 = vld [vmem:[%s10 + $0x4] sm:$0xf]
    %v1052 = vld [vmem:[%s10 + $0x8] sm:$0xf]
    %v1053 = vld [vmem:[%s10 + $0xc] sm:$0xf]
    %v1054 = vld [vmem:[%s11] sm:$0x1]
    %v1056 = vlaneseq
    %v1057 = vshrl.u32 %v1056, 7
    %v1058 = vsub.s32 0, %v1057
    %v1059 = vrot.slane %v1054, %v1058
    %v1065 = vunpack.c.l.b16 %v1050
    %v1066 = vunpack.c.l.b16 %v1051
    %v1067 = vunpack.c.l.b16 %v1052
    %v1068 = vunpack.c.l.b16 %v1053
    %v1069 = vpack.c.b16 %v1066, %v1065
    %v1070 = vpack.c.b16 %v1068, %v1067
    %v1074 = vsel %vm130, %v1049, 0
    %1076 = vmatprep.subr.bf16.mxu0 0
    %1077 = vmatpush1.bf16.msra.mxu0 %v1069
    %1078 = vmatprep.subr.bf16.mxu0 0
    %1079 = vmatpush1.bf16.msra.mxu0 %v1070
    %1080 = vmatprep.subr.bf16.mxu0 0
    %1081 = vmatpush1.bf16.msra.mxu0 0
    %1082 = vmatprep.subr.bf16.mxu0 0
    %1083 = vmatpush1.bf16.msra.mxu0 0
    %1084 = vmatprep.subr.bf16.mxu0 0
    %1085 = vmatpush1.bf16.msra.mxu0 0
    %1086 = vmatprep.subr.bf16.mxu0 0
    %1087 = vmatpush1.bf16.msra.mxu0 0
    %1088 = vmatprep.subr.bf16.mxu0 0
    %1089 = vmatpush1.bf16.msra.mxu0 0
    %1090 = vmatprep.subr.bf16.mxu0 0
    %1091 = vmatpush1.bf16.msra.mxu0 0
    %1092 = vmatprep.subr.bf16.mxu0 0
    %1093 = vmatpush1.bf16.msra.mxu0 0
    %1094 = vmatprep.subr.bf16.mxu0 0
    %1095 = vmatpush1.bf16.msra.mxu0 0
    %1096 = vmatprep.subr.bf16.mxu0 0
    %1097 = vmatpush1.bf16.msra.mxu0 0
    %1098 = vmatprep.subr.bf16.mxu0 0
    %1099 = vmatpush1.bf16.msra.mxu0 0
    %1100 = vmatprep.subr.bf16.mxu0 0
    %1101 = vmatpush1.bf16.msra.mxu0 0
    %1102 = vmatprep.subr.bf16.mxu0 0
    %1103 = vmatpush1.bf16.msra.mxu0 0
    %1104 = vmatprep.subr.bf16.mxu0 0
    %1105 = vmatpush1.bf16.msra.mxu0 0
    %1106 = vmatprep.subr.bf16.mxu0 0
    %1107 = vmatpush1.bf16.msra.mxu0 0
    %1108 = vmatprep.mubr.bf16.mxu0 0
    %1109 = vmatmul.mubr.bf16.gmra.mrb[0].mxu0 %v1074
    %v1110 = vpop.f32.mrb[0].mxu0
    %v1111 = vadd.f32 %v1059, %v1110
    %v1112 = vpop.f32.mrb[0].mxu0
    %v1113 = vpop.f32.mrb[0].mxu0
    %v1114 = vadd.f32 %v1059, %v1113
    %v1115 = vpop.f32.mrb[0].mxu0
    %1116 = vdwg.mxu0
    %v1117 = vmax.f32 %v1111, 0.0
    %v1118 = vmax.f32 %v1114, 0.0
    %v1119 = vpack.c.bf16 %v1118, %v1117
    %v1120 = vld [vmem:[%s12] sm:$0xf]
    %v1121 = vld [vmem:[%s12 + $0x4] sm:$0xf]
    %v1122 = vld [vmem:[%s12 + $0x8] sm:$0xf]
    %v1123 = vld [vmem:[%s12 + $0xc] sm:$0xf]
    %v1124 = vld [vmem:[%s12 + $0x10] sm:$0xf]
    %v1125 = vld [vmem:[%s12 + $0x14] sm:$0xf]
    %v1126 = vld [vmem:[%s12 + $0x18] sm:$0xf]
    %v1127 = vld [vmem:[%s12 + $0x1c] sm:$0xf]
    %v1128 = vld [vmem:[%s12 + $0x20] sm:$0xf]
    %v1129 = vld [vmem:[%s12 + $0x24] sm:$0xf]
    %v1130 = vld [vmem:[%s12 + $0x28] sm:$0xf]
    %v1131 = vld [vmem:[%s12 + $0x2c] sm:$0xf]
    %v1132 = vld [vmem:[%s12 + $0x30] sm:$0xf]
    %v1133 = vld [vmem:[%s12 + $0x34] sm:$0xf]
    %v1134 = vld [vmem:[%s12 + $0x38] sm:$0xf]
    %v1135 = vld [vmem:[%s12 + $0x3c] sm:$0xf]
    %v1136 = vld [vmem:[%s13] sm:$0x1]
    %v1138 = vlaneseq
    %v1139 = vshrl.u32 %v1138, 7
    %v1140 = vsub.s32 0, %v1139
    %v1141 = vrot.slane %v1136, %v1140
    %v1159 = vunpack.c.l.b16 %v1120
    %v1160 = vunpack.c.l.b16 %v1121
    %v1161 = vunpack.c.l.b16 %v1122
    %v1162 = vunpack.c.l.b16 %v1123
    %v1163 = vunpack.c.l.b16 %v1124
    %v1164 = vunpack.c.l.b16 %v1125
    %v1165 = vunpack.c.l.b16 %v1126
    %v1166 = vunpack.c.l.b16 %v1127
    %v1167 = vunpack.c.l.b16 %v1128
    %v1168 = vunpack.c.l.b16 %v1129
    %v1169 = vunpack.c.l.b16 %v1130
    %v1170 = vunpack.c.l.b16 %v1131
    %v1171 = vunpack.c.l.b16 %v1132
    %v1172 = vunpack.c.l.b16 %v1133
    %v1173 = vunpack.c.l.b16 %v1134
    %v1174 = vunpack.c.l.b16 %v1135
    %v1175 = vpack.c.b16 %v1160, %v1159
    %v1176 = vpack.c.b16 %v1162, %v1161
    %v1177 = vpack.c.b16 %v1164, %v1163
    %v1178 = vpack.c.b16 %v1166, %v1165
    %v1179 = vpack.c.b16 %v1168, %v1167
    %v1180 = vpack.c.b16 %v1170, %v1169
    %v1181 = vpack.c.b16 %v1172, %v1171
    %v1182 = vpack.c.b16 %v1174, %v1173
    %1191 = vmatprep.subr.bf16.mxu0 0
    %1192 = vmatpush1.bf16.msra.mxu0 %v1175
    %1193 = vmatprep.subr.bf16.mxu0 0
    %1194 = vmatpush1.bf16.msra.mxu0 %v1176
    %1195 = vmatprep.subr.bf16.mxu0 0
    %1196 = vmatpush1.bf16.msra.mxu0 %v1177
    %1197 = vmatprep.subr.bf16.mxu0 0
    %1198 = vmatpush1.bf16.msra.mxu0 %v1178
    %1199 = vmatprep.subr.bf16.mxu0 0
    %1200 = vmatpush1.bf16.msra.mxu0 %v1179
    %1201 = vmatprep.subr.bf16.mxu0 0
    %1202 = vmatpush1.bf16.msra.mxu0 %v1180
    %1203 = vmatprep.subr.bf16.mxu0 0
    %1204 = vmatpush1.bf16.msra.mxu0 %v1181
    %1205 = vmatprep.subr.bf16.mxu0 0
    %1206 = vmatpush1.bf16.msra.mxu0 %v1182
    %1207 = vmatprep.subr.bf16.mxu0 0
    %1208 = vmatpush1.bf16.msra.mxu0 0
    %1209 = vmatprep.subr.bf16.mxu0 0
    %1210 = vmatpush1.bf16.msra.mxu0 0
    %1211 = vmatprep.subr.bf16.mxu0 0
    %1212 = vmatpush1.bf16.msra.mxu0 0
    %1213 = vmatprep.subr.bf16.mxu0 0
    %1214 = vmatpush1.bf16.msra.mxu0 0
    %1215 = vmatprep.subr.bf16.mxu0 0
    %1216 = vmatpush1.bf16.msra.mxu0 0
    %1217 = vmatprep.subr.bf16.mxu0 0
    %1218 = vmatpush1.bf16.msra.mxu0 0
    %1219 = vmatprep.subr.bf16.mxu0 0
    %1220 = vmatpush1.bf16.msra.mxu0 0
    %1221 = vmatprep.subr.bf16.mxu0 0
    %1222 = vmatpush1.bf16.msra.mxu0 0
    %1223 = vmatprep.mubr.bf16.mxu0 0
    %1224 = vmatmul.mubr.bf16.gmra.mrb[0].mxu0 %v1119
    %v1225 = vpop.f32.mrb[0].mxu0
    %v1226 = vadd.f32 %v1141, %v1225
    %v1227 = vpop.f32.mrb[0].mxu0
    %v1228 = vpop.f32.mrb[0].mxu0
    %v1229 = vadd.f32 %v1141, %v1228
    %v1230 = vpop.f32.mrb[0].mxu0
    %1231 = vdwg.mxu0
    %1232 = vst.msk [vmem:[#allocation11] sm:$0xff] %vm130, %v1226
    %1233 = vst.msk [vmem:[#allocation11 + $0x8] sm:$0xff] %vm130, %v1229
    // Predicated region
    $region78: #{tpu_custom_call.1} parent=1 // pred_check
      _
    $region79: #{tpu_custom_call.1} parent=1 // pred_check_branch
      %1235 = sbr.rel (0) target = $region81
    $region80: #{tpu_custom_call.1} parent=1 // pred_region
      %s1237 = ssub.s32 256, 256
      %1238 = vsyncadd [#allocation4], %s1237
      %s1239 = sshll.u32 [#allocation11], 4
      %s1240 = int_to_ptr.vmem [resolvable:$true] %s1239
      %1245 = dma.vmem_to_hbm [thread:$0]  %s1240, 256, %s14, [#allocation4], 128, 128, 8
    $region81: #{tpu_custom_call.1} parent=1 // pred_fallthru
      _
    // Predicated region
    $region82: #{tpu_custom_call.1} parent=1 // pred_check
      _
    $region83: #{tpu_custom_call.1} parent=1 // pred_check_branch
      %1247 = sbr.rel (0) target = $region85
    $region84: #{tpu_custom_call.1} parent=1 // pred_region
      %1248 = dma.done [#allocation4], 256
    $region85: #{tpu_custom_call.1} parent=1 // pred_fallthru
      _
    %1249 = vsyncpa [#allocation3], 1
    %1250 = vsyncpa [#allocation6], 1
    %1251 = vsyncpa [#allocation9], 1
    %1252 = vsyncpa [#allocation4], 1

</llo_original>
